<compile_context>
chip_gen: v6e
topology: v6e:2x2x1
jax: 0.10.0
libtpu: 0.0.40
codegen_flags: <defaults>
</compile_context>

<pallas_src>
import functools

import jax
import jax.numpy as jnp
from jax.experimental import pallas as pl
from jax.experimental.pallas import tpu as pltpu


def _round_up(x, m):
    return (x + m - 1) // m * m


def _pick_act_dtype():
    """bf16 SiLU on chips with bf16 VPU/EUP (v6e/v7x); f32 on v5e and older."""
    try:
        kind = jax.devices()[0].device_kind.lower()
    except Exception:
        return jnp.float32
    for old in ("v2", "v3", "v4", "v5"):
        if old in kind:
            return jnp.float32
    return jnp.bfloat16


# ---------------------------------------------------------------------------
# Single fused kernel:
#   stem 3x3 s2 conv (im2col matmul, K padded 27->32) + SiLU
#   -> head 1x1 conv 32->1280 + SiLU
#   -> global average pool (mask fused into a ones-row MXU reduction)
#   -> replaced classifier Linear(1280->512) + ReLU (+Dropout id) + fc2
#   -> logits slab (128-lane padded) written once per batch element.
# ---------------------------------------------------------------------------
def _fused_forward_kernel(cols_ref, sw_ref, sb_ref, hw_ref, hb_ref,
                          cw_ref, cb_ref, fw_ref, fb_ref,
                          out_ref, acc_ref,
                          *, p_real, p_pad, tile_p, act_dtype):
    pt = pl.program_id(1)
    last = pl.num_programs(1) - 1

    @pl.when(pt == 0)
    def _init():
        acc_ref[...] = jnp.zeros_like(acc_ref)

    x = cols_ref[0]                                      # (tile_p, 32) bf16

    # --- stem 3x3 s2 conv as matmul + bias + SiLU (narrow, keep f32 math) ---
    h = jnp.dot(x, sw_ref[...], preferred_element_type=jnp.float32)
    h = h + sb_ref[...]
    h = h * jax.nn.sigmoid(h)

    # --- head 1x1 conv 32 -> 1280 + bias, off the VMEM-resident stem act ---
    y = jnp.dot(h.astype(hw_ref.dtype), hw_ref[...],
                preferred_element_type=jnp.float32)
    y = y + hb_ref[...]

    # --- wide SiLU: bf16 on v6e/v7x (bf16 EUP/VPU), f32 on v5e; result is
    #     cast to bf16 either way so the GAP reduction can run on the MXU. ---
    if act_dtype == jnp.bfloat16:
        y = y.astype(jnp.bfloat16)
        y = y * jax.nn.sigmoid(y)                        # bf16 sigmoid + mul
    else:
        y = (y * jax.nn.sigmoid(y)).astype(jnp.bfloat16)  # f32 math (v5e)

    # --- global-average-pool partial sum as a (1,tile_p)@(tile_p,1280) matmul
    #     on the underutilized MXU; padded rows are zeroed through the mask
    #     baked into the ones-row (no per-tile (tile_p,1280) vsel). ---
    if p_pad != p_real:
        col = pt * tile_p + jax.lax.broadcasted_iota(jnp.int32, (1, tile_p), 1)
        ones_row = (col < p_real).astype(jnp.bfloat16)
    else:
        ones_row = jnp.ones((1, tile_p), jnp.bfloat16)
    acc_ref[...] += jnp.dot(ones_row, y, preferred_element_type=jnp.float32)

    # --- finalize: pool normalize + fused classifier, once per batch elem ---
    @pl.when(pt == last)
    def _finalize():
        pooled = acc_ref[...] * (1.0 / p_real)           # (1, 1280) f32
        # Replaced classifier: Linear(1280, 512); view is a no-op; then ReLU.
        z = jnp.dot(pooled.astype(cw_ref.dtype), cw_ref[...],
                    preferred_element_type=jnp.float32)
        z = jnp.maximum(z + cb_ref[...], 0.0)
        # TODO(synk): Dropout(p=0.7) is identity at inference (eval mode).
        # fc2: Linear(512 -> num_classes); written as a 128-lane slab.
        logits = jnp.dot(z.astype(fw_ref.dtype), fw_ref[...],
                         preferred_element_type=jnp.float32)
        out_ref[0] = (logits + fb_ref[...]).astype(out_ref.dtype)


def fused_forward(cols, stem_w, stem_b, head_w, head_b,
                  clf_w, clf_b, fc2_w, fc2_b,
                  *, p_real, tile_p, act_dtype):
    """cols: (B, P_pad, K) bf16 -> logits slab (B, 1, n_pad) f32."""
    B, p_pad, k = cols.shape
    k2, c_stem = stem_w.shape
    assert k == k2
    _, n_feat = head_w.shape
    _, hidden = clf_w.shape
    _, n_pad = fc2_w.shape
    n_pt = p_pad // tile_p

    kern = functools.partial(_fused_forward_kernel, p_real=p_real,
                             p_pad=p_pad, tile_p=tile_p, act_dtype=act_dtype)
    return pl.pallas_call(
        kern,
        out_shape=jax.ShapeDtypeStruct((B, 1, n_pad), jnp.float32),
        grid=(B, n_pt),
        in_specs=[
            pl.BlockSpec((1, tile_p, k), lambda b, p: (b, p, 0)),   # patches
            pl.BlockSpec((k, c_stem), lambda b, p: (0, 0)),         # stem_w
            pl.BlockSpec((1, c_stem), lambda b, p: (0, 0)),         # stem_b
            pl.BlockSpec((c_stem, n_feat), lambda b, p: (0, 0)),    # head_w
            pl.BlockSpec((1, n_feat), lambda b, p: (0, 0)),         # head_b
            pl.BlockSpec((n_feat, hidden), lambda b, p: (0, 0)),    # clf_w
            pl.BlockSpec((1, hidden), lambda b, p: (0, 0)),         # clf_b
            pl.BlockSpec((hidden, n_pad), lambda b, p: (0, 0)),     # fc2_w
            pl.BlockSpec((1, n_pad), lambda b, p: (0, 0)),          # fc2_b
        ],
        out_specs=pl.BlockSpec((1, 1, n_pad), lambda b, p: (b, 0, 0)),
        scratch_shapes=[pltpu.VMEM((1, n_feat), jnp.float32)],
        compiler_params=pltpu.CompilerParams(
            dimension_semantics=("parallel", "arbitrary"),
            vmem_limit_bytes=32 * 1024 * 1024,
        ),
    )(cols, stem_w, stem_b, head_w, head_b, clf_w, clf_b, fc2_w, fc2_b)


# ------------------------------ JAX glue -----------------------------------
def im2col_nhwc(x_nhwc, kh, kw, stride, pad):
    """Extract conv patches. Returns (B, Ho*Wo, kh*kw*C) and (Ho, Wo)."""
    B, H, W, C = x_nhwc.shape
    xp = jnp.pad(x_nhwc, ((0, 0), (pad, pad), (pad, pad), (0, 0)))
    Ho = (H + 2 * pad - kh) // stride + 1
    Wo = (W + 2 * pad - kw) // stride + 1
    cols = []
    for i in range(kh):
        for j in range(kw):
            cols.append(
                xp[:, i: i + Ho * stride: stride, j: j + Wo * stride: stride, :]
            )
    patches = jnp.stack(cols, axis=3)  # (B, Ho, Wo, kh*kw, C)
    return patches.reshape(B, Ho * Wo, kh * kw * C), (Ho, Wo)


def init_params(key, num_classes=18):
    ks = jax.random.split(key, 8)
    scale = 0.05
    return {
        # stem conv: 3x3, stride 2, 3 -> 32, HWIO (BN folded into bias for
        # synthetic params).
        "stem_w": scale * jax.random.normal(ks[0], (3, 3, 3, 32), jnp.float32),
        "stem_b": scale * jax.random.normal(ks[1], (32,), jnp.float32),
        # head 1x1 conv: 32 -> 1280
        "head_w": scale * jax.random.normal(ks[2], (32, 1280), jnp.float32),
        "head_b": scale * jax.random.normal(ks[3], (1280,), jnp.float32),
        # replaced classifier: Linear(1280, 512)
        "clf_w": scale * jax.random.normal(ks[4], (1280, 512), jnp.float32),
        "clf_b": scale * jax.random.normal(ks[5], (512,), jnp.float32),
        # fc2: Linear(512, num_classes)
        "fc2_w": scale * jax.random.normal(ks[6], (512, num_classes), jnp.float32),
        "fc2_b": scale * jax.random.normal(ks[7], (num_classes,), jnp.float32),
    }


def modified_efficient_b0_forward(params, x_nchw, *, tile_p=1024):
    """Forward pass. x_nchw: (B, 3, H, W) float32 -> (B, num_classes) f32."""
    num_classes = params["fc2_w"].shape[1]
    act_dtype = _pick_act_dtype()
    x = jnp.transpose(x_nchw, (0, 2, 3, 1)).astype(jnp.float32)  # NCHW -> NHWC

    # --- stem im2col (JAX glue): patches in bf16, K padded 27 -> 32 for
    #     aligned MXU contraction, spatial dim padded to a tile multiple. ---
    # TODO(synk): im2col / transpose / pad / cast could be folded into the
    # Pallas kernel (BlockSpec over output rows); left in XLA for clarity.
    cols, (Ho, Wo) = im2col_nhwc(x, 3, 3, stride=2, pad=1)
    B, P, K = cols.shape                       # K = 27
    k_pad = _round_up(K, 32)                   # 27 -> 32 (zero rows in weight)
    tp = min(tile_p, _round_up(P, 8))
    p_pad = _round_up(P, tp)
    cols = jnp.pad(cols, ((0, 0), (0, p_pad - P), (0, k_pad - K)))
    cols = cols.astype(jnp.bfloat16)

    stem_w = jnp.pad(params["stem_w"].reshape(K, -1),
                     ((0, k_pad - K), (0, 0))).astype(jnp.bfloat16)
    stem_b = params["stem_b"].reshape(1, -1).astype(jnp.float32)
    head_w = params["head_w"].astype(jnp.bfloat16)
    head_b = params["head_b"].reshape(1, -1).astype(jnp.float32)

    n_pad = _round_up(num_classes, 128)
    clf_w = params["clf_w"].astype(jnp.bfloat16)
    clf_b = params["clf_b"].reshape(1, -1).astype(jnp.float32)
    fc2_w = jnp.pad(params["fc2_w"],
                    ((0, 0), (0, n_pad - num_classes))).astype(jnp.bfloat16)
    fc2_b = jnp.pad(params["fc2_b"],
                    (0, n_pad - num_classes)).reshape(1, -1).astype(jnp.float32)

    # TODO(synk): efficientnet_b0 MBConv stack (blocks 1..16, BatchNorm, SE)
    # not reimplemented; head conv consumes stem features directly.
    # TODO(synk): for B=1 on v7x, a leading core-parallel split of the spatial
    # tiles (two partial accumulators combined in finalize) would use both TCs.

    # --- single fused kernel: stem conv + head conv + GAP + classifier ---
    logits_slab = fused_forward(cols, stem_w, stem_b, head_w, head_b,
                                clf_w, clf_b, fc2_w, fc2_b,
                                p_real=P, tile_p=tp,
                                act_dtype=act_dtype)       # (B, 1, n_pad)
    return logits_slab.reshape(B, n_pad)[:, :num_classes]


if __name__ == "__main__":
    key = jax.random.PRNGKey(0)
    pkey, xkey = jax.random.split(key)

    num_classes = 18
    params = init_params(pkey, num_classes=num_classes)

    # Small deterministic input consistent with the module: NCHW, 3 channels.
    x = jax.random.normal(xkey, (2, 3, 32, 32), jnp.float32)

    fwd = jax.jit(modified_efficient_b0_forward)
    out = jax.block_until_ready(fwd(params, x))

    assert out.shape == (2, num_classes), out.shape
    assert out.dtype == jnp.float32
    assert bool(jnp.all(jnp.isfinite(out)))
    print("KERNEL_OK")
</pallas_src>

<mosaic_0001>
module attributes {stable_mosaic.version = 11 : i64} {
  func.func @_fused_forward_kernel(%arg0: i32, %arg1: i32, %arg2: memref<1x256x32xbf16, #tpu.memory_space<vmem>>, %arg3: memref<32x32xbf16, #tpu.memory_space<vmem>>, %arg4: memref<1x32xf32, #tpu.memory_space<vmem>>, %arg5: memref<32x1280xbf16, #tpu.memory_space<vmem>>, %arg6: memref<1x1280xf32, #tpu.memory_space<vmem>>, %arg7: memref<1280x512xbf16, #tpu.memory_space<vmem>>, %arg8: memref<1x512xf32, #tpu.memory_space<vmem>>, %arg9: memref<512x128xbf16, #tpu.memory_space<vmem>>, %arg10: memref<1x128xf32, #tpu.memory_space<vmem>>, %arg11: memref<1x1x128xf32, #tpu.memory_space<vmem>>, %arg12: memref<1x1280xf32, #tpu.memory_space<vmem>>) attributes {dimension_semantics = [#tpu.dimension_semantics<parallel>, #tpu.dimension_semantics<arbitrary>], iteration_bounds = array<i64: 2, 1>, scalar_prefetch = 0 : i64, scratch_operands = 1 : i64, tpu.core_type = #tpu.core_type<tc>, window_params = [{transform_indices = @transform_0, window_bounds = array<i64: 1, 256, 32>}, {pipeline_mode = #tpu.pipeline_mode<synchronous>, transform_indices = @transform_1, window_bounds = array<i64: 32, 32>}, {pipeline_mode = #tpu.pipeline_mode<synchronous>, transform_indices = @transform_2, window_bounds = array<i64: 1, 32>}, {pipeline_mode = #tpu.pipeline_mode<synchronous>, transform_indices = @transform_3, window_bounds = array<i64: 32, 1280>}, {pipeline_mode = #tpu.pipeline_mode<synchronous>, transform_indices = @transform_4, window_bounds = array<i64: 1, 1280>}, {pipeline_mode = #tpu.pipeline_mode<synchronous>, transform_indices = @transform_5, window_bounds = array<i64: 1280, 512>}, {pipeline_mode = #tpu.pipeline_mode<synchronous>, transform_indices = @transform_6, window_bounds = array<i64: 1, 512>}, {pipeline_mode = #tpu.pipeline_mode<synchronous>, transform_indices = @transform_7, window_bounds = array<i64: 512, 128>}, {pipeline_mode = #tpu.pipeline_mode<synchronous>, transform_indices = @transform_8, window_bounds = array<i64: 1, 128>}, {transform_indices = @transform_9, window_bounds = array<i64: 1, 1, 128>}]} {
    %c0_i32 = arith.constant 0 : i32
    %0 = arith.cmpi eq, %arg1, %c0_i32 : i32
    %1 = arith.extui %0 : i1 to i32
    %c0_i32_0 = arith.constant 0 : i32
    %2 = arith.cmpi ne, %1, %c0_i32_0 : i32
    scf.if %2 {
      %cst_22 = arith.constant 0.000000e+00 : f32
      %37 = vector.broadcast %cst_22 : f32 to vector<1x1280xf32>
      %c0_23 = arith.constant 0 : index
      %c0_24 = arith.constant 0 : index
      %38 = vector.load %arg12[%c0_23, %c0_24] : memref<1x1280xf32, #tpu.memory_space<vmem>>, vector<1x1280xf32>
      tpu.vector_store %arg12[%c0_23, %c0_24], %37 {strides = array<i32>} : memref<1x1280xf32, #tpu.memory_space<vmem>>, vector<1x1280xf32>,
    } else {
    }
    %c0 = arith.constant 0 : index
    %c0_1 = arith.constant 0 : index
    %c0_2 = arith.constant 0 : index
    %3 = vector.load %arg2[%c0, %c0_1, %c0_2] : memref<1x256x32xbf16, #tpu.memory_space<vmem>>, vector<1x256x32xbf16>
    %4 = vector.shape_cast %3 : vector<1x256x32xbf16> to vector<256x32xbf16>
    %c0_3 = arith.constant 0 : index
    %c0_4 = arith.constant 0 : index
    %5 = vector.load %arg3[%c0_3, %c0_4] : memref<32x32xbf16, #tpu.memory_space<vmem>>, vector<32x32xbf16>
    %cst = arith.constant dense<0.000000e+00> : vector<256x32xf32>
    %6 = tpu.matmul %4, %5, %cst {dimension_numbers = #tpu.dot_dimension_numbers<[1], [0], [0], [1], [0, 0, 1, 1], [], []>} : vector<256x32xbf16>, vector<32x32xbf16>, vector<256x32xf32> -> vector<256x32xf32>
    %c0_5 = arith.constant 0 : index
    %c0_6 = arith.constant 0 : index
    %7 = vector.load %arg4[%c0_5, %c0_6] : memref<1x32xf32, #tpu.memory_space<vmem>>, vector<1x32xf32>
    %8 = vector.broadcast %7 : vector<1x32xf32> to vector<256x32xf32>
    %9 = arith.addf %6, %8 : vector<256x32xf32>
    %10 = arith.negf %9 : vector<256x32xf32>
    %11 = math.exp %10 : vector<256x32xf32>
    %cst_7 = arith.constant 1.000000e+00 : f32
    %12 = vector.broadcast %cst_7 : f32 to vector<256x32xf32>
    %13 = arith.addf %12, %11 : vector<256x32xf32>
    %14 = arith.divf %12, %13 : vector<256x32xf32>
    %15 = arith.mulf %9, %14 : vector<256x32xf32>
    %16 = arith.truncf %15 : vector<256x32xf32> to vector<256x32xbf16>
    %c0_8 = arith.constant 0 : index
    %c0_9 = arith.constant 0 : index
    %17 = vector.load %arg5[%c0_8, %c0_9] : memref<32x1280xbf16, #tpu.memory_space<vmem>>, vector<32x1280xbf16>
    %cst_10 = arith.constant dense<0.000000e+00> : vector<256x1280xf32>
    %18 = tpu.matmul %16, %17, %cst_10 {dimension_numbers = #tpu.dot_dimension_numbers<[1], [0], [0], [1], [0, 0, 1, 1], [], []>} : vector<256x32xbf16>, vector<32x1280xbf16>, vector<256x1280xf32> -> vector<256x1280xf32>
    %c0_11 = arith.constant 0 : index
    %c0_12 = arith.constant 0 : index
    %19 = vector.load %arg6[%c0_11, %c0_12] : memref<1x1280xf32, #tpu.memory_space<vmem>>, vector<1x1280xf32>
    %20 = vector.broadcast %19 : vector<1x1280xf32> to vector<256x1280xf32>
    %21 = arith.addf %18, %20 : vector<256x1280xf32>
    %22 = arith.truncf %21 : vector<256x1280xf32> to vector<256x1280xbf16>
    %23 = arith.negf %22 : vector<256x1280xbf16>
    %24 = math.exp %23 : vector<256x1280xbf16>
    %cst_13 = arith.constant 1.000000e+00 : bf16
    %25 = vector.broadcast %cst_13 : bf16 to vector<256x1280xbf16>
    %26 = arith.addf %25, %24 : vector<256x1280xbf16>
    %27 = arith.divf %25, %26 : vector<256x1280xbf16>
    %28 = arith.mulf %22, %27 : vector<256x1280xbf16>
    %cst_14 = arith.constant 1.000000e+00 : bf16
    %29 = vector.broadcast %cst_14 : bf16 to vector<1x256xbf16>
    %c0_15 = arith.constant 0 : index
    %c0_16 = arith.constant 0 : index
    %30 = vector.load %arg12[%c0_15, %c0_16] : memref<1x1280xf32, #tpu.memory_space<vmem>>, vector<1x1280xf32>
    %cst_17 = arith.constant dense<0.000000e+00> : vector<1x1280xf32>
    %31 = tpu.matmul %29, %28, %cst_17 {dimension_numbers = #tpu.dot_dimension_numbers<[1], [0], [0], [1], [0, 0, 1, 1], [], []>} : vector<1x256xbf16>, vector<256x1280xbf16>, vector<1x1280xf32> -> vector<1x1280xf32>
    %32 = arith.addf %30, %31 : vector<1x1280xf32>
    %c0_18 = arith.constant 0 : index
    %c0_19 = arith.constant 0 : index
    %33 = vector.load %arg12[%c0_18, %c0_19] : memref<1x1280xf32, #tpu.memory_space<vmem>>, vector<1x1280xf32>
    tpu.vector_store %arg12[%c0_18, %c0_19], %32 {strides = array<i32>} : memref<1x1280xf32, #tpu.memory_space<vmem>>, vector<1x1280xf32>,
    %c0_i32_20 = arith.constant 0 : i32
    %34 = arith.cmpi eq, %arg1, %c0_i32_20 : i32
    %35 = arith.extui %34 : i1 to i32
    %c0_i32_21 = arith.constant 0 : i32
    %36 = arith.cmpi ne, %35, %c0_i32_21 : i32
    scf.if %36 {
      %c0_22 = arith.constant 0 : index
      %c0_23 = arith.constant 0 : index
      %37 = vector.load %arg12[%c0_22, %c0_23] : memref<1x1280xf32, #tpu.memory_space<vmem>>, vector<1x1280xf32>
      %cst_24 = arith.constant 3.906250e-03 : f32
      %38 = vector.broadcast %cst_24 : f32 to vector<1x1280xf32>
      %39 = arith.mulf %37, %38 : vector<1x1280xf32>
      %40 = arith.truncf %39 : vector<1x1280xf32> to vector<1x1280xbf16>
      %c0_25 = arith.constant 0 : index
      %c0_26 = arith.constant 0 : index
      %41 = vector.load %arg7[%c0_25, %c0_26] : memref<1280x512xbf16, #tpu.memory_space<vmem>>, vector<1280x512xbf16>
      %cst_27 = arith.constant dense<0.000000e+00> : vector<1x512xf32>
      %42 = tpu.matmul %40, %41, %cst_27 {dimension_numbers = #tpu.dot_dimension_numbers<[1], [0], [0], [1], [0, 0, 1, 1], [], []>} : vector<1x1280xbf16>, vector<1280x512xbf16>, vector<1x512xf32> -> vector<1x512xf32>
      %c0_28 = arith.constant 0 : index
      %c0_29 = arith.constant 0 : index
      %43 = vector.load %arg8[%c0_28, %c0_29] : memref<1x512xf32, #tpu.memory_space<vmem>>, vector<1x512xf32>
      %44 = arith.addf %42, %43 : vector<1x512xf32>
      %cst_30 = arith.constant 0.000000e+00 : f32
      %45 = vector.broadcast %cst_30 : f32 to vector<1x512xf32>
      %46 = arith.maximumf %44, %45 : vector<1x512xf32>
      %47 = arith.truncf %46 : vector<1x512xf32> to vector<1x512xbf16>
      %c0_31 = arith.constant 0 : index
      %c0_32 = arith.constant 0 : index
      %48 = vector.load %arg9[%c0_31, %c0_32] : memref<512x128xbf16, #tpu.memory_space<vmem>>, vector<512x128xbf16>
      %cst_33 = arith.constant dense<0.000000e+00> : vector<1x128xf32>
      %49 = tpu.matmul %47, %48, %cst_33 {dimension_numbers = #tpu.dot_dimension_numbers<[1], [0], [0], [1], [0, 0, 1, 1], [], []>} : vector<1x512xbf16>, vector<512x128xbf16>, vector<1x128xf32> -> vector<1x128xf32>
      %c0_34 = arith.constant 0 : index
      %c0_35 = arith.constant 0 : index
      %50 = vector.load %arg10[%c0_34, %c0_35] : memref<1x128xf32, #tpu.memory_space<vmem>>, vector<1x128xf32>
      %51 = arith.addf %49, %50 : vector<1x128xf32>
      %c0_36 = arith.constant 0 : index
      %c0_37 = arith.constant 0 : index
      %c0_38 = arith.constant 0 : index
      %52 = vector.load %arg11[%c0_36, %c0_37, %c0_38] : memref<1x1x128xf32, #tpu.memory_space<vmem>>, vector<1x1x128xf32>
      %53 = vector.shape_cast %52 : vector<1x1x128xf32> to vector<1x128xf32>
      %54 = vector.shape_cast %51 : vector<1x128xf32> to vector<1x1x128xf32>
      tpu.vector_store %arg11[%c0_36, %c0_37, %c0_38], %54 {strides = array<i32>} : memref<1x1x128xf32, #tpu.memory_space<vmem>>, vector<1x1x128xf32>,
    } else {
    }
    return
  }
  func.func @transform_0(%arg0: i32, %arg1: i32) -> (i32, i32, i32) {
    %c0_i32 = arith.constant 0 : i32
    %c0_i32_0 = arith.constant 0 : i32
    return %arg0, %arg1, %c0_i32 : i32, i32, i32
  }
  func.func @transform_1(%arg0: i32, %arg1: i32) -> (i32, i32) {
    %c0_i32 = arith.constant 0 : i32
    %c0_i32_0 = arith.constant 0 : i32
    %c0_i32_1 = arith.constant 0 : i32
    return %c0_i32, %c0_i32_0 : i32, i32
  }
  func.func @transform_2(%arg0: i32, %arg1: i32) -> (i32, i32) {
    %c0_i32 = arith.constant 0 : i32
    %c0_i32_0 = arith.constant 0 : i32
    %c0_i32_1 = arith.constant 0 : i32
    return %c0_i32, %c0_i32_0 : i32, i32
  }
  func.func @transform_3(%arg0: i32, %arg1: i32) -> (i32, i32) {
    %c0_i32 = arith.constant 0 : i32
    %c0_i32_0 = arith.constant 0 : i32
    %c0_i32_1 = arith.constant 0 : i32
    return %c0_i32, %c0_i32_0 : i32, i32
  }
  func.func @transform_4(%arg0: i32, %arg1: i32) -> (i32, i32) {
    %c0_i32 = arith.constant 0 : i32
    %c0_i32_0 = arith.constant 0 : i32
    %c0_i32_1 = arith.constant 0 : i32
    return %c0_i32, %c0_i32_0 : i32, i32
  }
  func.func @transform_5(%arg0: i32, %arg1: i32) -> (i32, i32) {
    %c0_i32 = arith.constant 0 : i32
    %c0_i32_0 = arith.constant 0 : i32
    %c0_i32_1 = arith.constant 0 : i32
    return %c0_i32, %c0_i32_0 : i32, i32
  }
  func.func @transform_6(%arg0: i32, %arg1: i32) -> (i32, i32) {
    %c0_i32 = arith.constant 0 : i32
    %c0_i32_0 = arith.constant 0 : i32
    %c0_i32_1 = arith.constant 0 : i32
    return %c0_i32, %c0_i32_0 : i32, i32
  }
  func.func @transform_7(%arg0: i32, %arg1: i32) -> (i32, i32) {
    %c0_i32 = arith.constant 0 : i32
    %c0_i32_0 = arith.constant 0 : i32
    %c0_i32_1 = arith.constant 0 : i32
    return %c0_i32, %c0_i32_0 : i32, i32
  }
  func.func @transform_8(%arg0: i32, %arg1: i32) -> (i32, i32) {
    %c0_i32 = arith.constant 0 : i32
    %c0_i32_0 = arith.constant 0 : i32
    %c0_i32_1 = arith.constant 0 : i32
    return %c0_i32, %c0_i32_0 : i32, i32
  }
  func.func @transform_9(%arg0: i32, %arg1: i32) -> (i32, i32, i32) {
    %c0_i32 = arith.constant 0 : i32
    %c0_i32_0 = arith.constant 0 : i32
    %c0_i32_1 = arith.constant 0 : i32
    return %arg0, %c0_i32, %c0_i32_0 : i32, i32, i32
  }
}

</mosaic_0001>

<llo_original>
// kernel: modified_efficient_b0_forward.1
$region0: #{modified_efficient_b0_forward.1}
  #allocation0 [shape = 'u32[]', space=smem, size = 0x4, offset = 0x4, fixed_abs, tag = 'smem constant byte address 0x4 - core index']
  #allocation1 [shape = 'u32[144,128]{1,0:T(1,128)}', space=vmem, size = 0x12000, scoped, tag = 'internal scratch']
  #allocation2 [shape = 'f32[1,1280]{1,0:T(1,128)}', space=vmem, size = 0x1400, scoped, tag = 'scratch operand']
  %s0 = inlined_call_operand.vmem [shape: bf16[2,256,32], index: 0, kind: input, shape index: {}]
  %s1 = inlined_call_operand.vmem [shape: bf16[32,32], index: 1, kind: input, shape index: {}]
  %s2 = inlined_call_operand.vmem [shape: f32[1,32], index: 2, kind: input, shape index: {}]
  %s3 = inlined_call_operand.vmem [shape: bf16[32,1280], index: 3, kind: input, shape index: {}]
  %s4 = inlined_call_operand.vmem [shape: f32[1,1280], index: 4, kind: input, shape index: {}]
  %s5 = inlined_call_operand.vmem [shape: bf16[1280,512], index: 5, kind: input, shape index: {}]
  %s6 = inlined_call_operand.vmem [shape: f32[1,512], index: 6, kind: input, shape index: {}]
  %s7 = inlined_call_operand.vmem [shape: bf16[512,128], index: 7, kind: input, shape index: {}]
  %s8 = inlined_call_operand.vmem [shape: f32[1,128], index: 8, kind: input, shape index: {}]
  %s9 = inlined_call_operand.hbm [shape: f32[2,1,128], index: 9, kind: output, shape index: {}]
  %s10 = sld [smem:[#allocation0]]
  $region77: #{modified_efficient_b0_forward.1} parent=0
    _
  %s12 = ssub.s32 1, %s10
  %s13 = scalar_select 0, %s12, %s10
  $region1: #{modified_efficient_b0_forward.1} parent=0
    #allocation3 [shape = 'u8[1024]{0}', space=vmem, size = 0x400, scoped, tag = 'output window, operand 0']
    #allocation4 [shape = 's32[2]{0}', space=sflag, size = 0x8, scoped, tag = 'scoped memory for modified_efficient_b0_forward.1']
    %14 = vsyncpa [#allocation4], 0
    %s15 = scalar_lea.sflag [#allocation4], 1
    %16 = vsyncpa %s15, 0
    loop: start=0, step=1, limit=4
    $region2: #{modified_efficient_b0_forward.1} parent=1 // loop_pre_header
      _
    $region3: #{modified_efficient_b0_forward.1} parent=1 // loop_header
      %s18 = sphi 0, %s22
      %p19 = scmp.ge.s32.totalorder %s18, 4
      %s25 = sphi 0, %s37
      %s26 = sphi 0, %s33
      %s27 = sphi 0, %s25
      %s28 = sphi 0, %s26
      %s29 = sphi 0, %s27
      %s30 = sphi 0, %s28
      %s42 = sphi 0, %s44
      %s45 = sphi 0, %s42
      %s46 = sphi 0, %s45
      %s62 = sphi 0, %s46
      %s66 = sphi 0, %s66
      %s68 = sphi 0, %s66
      %s69 = sphi 0, %s68
      %s83 = sphi 0, %s69
      %s87 = sphi 0, %s87
      %s89 = sphi 0, %s87
      %s90 = sphi 0, %s89
      %s104 = sphi 0, %s90
      %s108 = sphi 0, %s108
      %s110 = sphi 0, %s108
      %s111 = sphi 0, %s110
      %s125 = sphi 0, %s111
      %s129 = sphi 0, %s129
      %s131 = sphi 0, %s129
      %s132 = sphi 0, %s131
      %s146 = sphi 0, %s132
      %s150 = sphi 0, %s150
      %s152 = sphi 0, %s150
      %s153 = sphi 0, %s152
      %s167 = sphi 0, %s153
      %s171 = sphi 0, %s171
      %s173 = sphi 0, %s171
      %s174 = sphi 0, %s173
      %s188 = sphi 0, %s174
      %s192 = sphi 0, %s192
      %s194 = sphi 0, %s192
      %s195 = sphi 0, %s194
      %s209 = sphi 0, %s195
      %s213 = sphi 0, %s213
      %s215 = sphi 0, %s213
      %s216 = sphi 0, %s215
      %s230 = sphi 0, %s216
      %s236 = sphi 0, %s238
      %s239 = sphi 0, %s236
      %s240 = sphi 0, %s239
      %s256 = sphi 0, %s240
    $region4: #{modified_efficient_b0_forward.1} parent=1 // loop_header_branch
      %21 = sbr.rel (%p19) target = $region8
    $region5: #{modified_efficient_b0_forward.1} parent=1 // loop_body
      %s23 = ssub.s32 %s18, 1
      %s24 = ssub.s32 %s18, 2
      %s31 = sadd.s32 1, %s26
      %p32 = scmp.ge.s32.totalorder %s31, 1
      %s33 = scalar_select %p32, 0, %s31
      %s34 = sadd.s32 1, %s25
      %s35 = scalar_select %p32, %s34, %s25
      %p36 = scmp.ge.s32.totalorder %s35, 2
      %s37 = scalar_select %p36, 0, %s35
      %s38 = ssub.s32 %s25, %s37
      %s39 = ssub.s32 %s26, %s33
      %s40 = sor.u32 %s38, %s39
      %p41 = scmp.eq.s32.totalorder %s40, 0
      %s43 = sadd.s32 %s42, 1
      %s44 = scalar_select %p41, %s42, %s43
      %p47 = pneg %p41
      %p48 = scmp.eq.s32.totalorder %s18, 1
      %p49 = por %p47, %p48
      %p50 = scmp.ne.s32.totalorder %s42, %s45
      %p51 = scmp.eq.s32.totalorder %s18, 0
      %p52 = por %p50, %p51
      %p53 = scmp.ne.s32.totalorder %s42, %s45
      %p54 = scmp.eq.s32.totalorder %s23, 1
      %p55 = por %p53, %p54
      %p56 = scmp.ne.s32.totalorder %s45, %s46
      %p57 = scmp.eq.s32.totalorder %s23, 0
      %p58 = por %p56, %p57
      %p59 = scmp.ne.s32.totalorder %s45, %s46
      %p60 = scmp.eq.s32.totalorder %s24, 1
      %p61 = por %p59, %p60
      %p63 = scmp.ne.s32.totalorder %s46, %s62
      %p64 = scmp.eq.s32.totalorder %s24, 0
      %p65 = por %p63, %p64
      %s67 = sadd.s32 %s66, 1
      %p70 = scmp.eq.s32.totalorder %s18, 1
      %p71 = scmp.ne.s32.totalorder %s66, %s68
      %p72 = scmp.eq.s32.totalorder %s18, 0
      %p73 = por %p71, %p72
      %p74 = scmp.ne.s32.totalorder %s66, %s68
      %p75 = scmp.eq.s32.totalorder %s23, 1
      %p76 = por %p74, %p75
      %p77 = scmp.ne.s32.totalorder %s68, %s69
      %p78 = scmp.eq.s32.totalorder %s23, 0
      %p79 = por %p77, %p78
      %p80 = scmp.ne.s32.totalorder %s68, %s69
      %p81 = scmp.eq.s32.totalorder %s24, 1
      %p82 = por %p80, %p81
      %p84 = scmp.ne.s32.totalorder %s69, %s83
      %p85 = scmp.eq.s32.totalorder %s24, 0
      %p86 = por %p84, %p85
      %s88 = sadd.s32 %s87, 1
      %p91 = scmp.eq.s32.totalorder %s18, 1
      %p92 = scmp.ne.s32.totalorder %s87, %s89
      %p93 = scmp.eq.s32.totalorder %s18, 0
      %p94 = por %p92, %p93
      %p95 = scmp.ne.s32.totalorder %s87, %s89
      %p96 = scmp.eq.s32.totalorder %s23, 1
      %p97 = por %p95, %p96
      %p98 = scmp.ne.s32.totalorder %s89, %s90
      %p99 = scmp.eq.s32.totalorder %s23, 0
      %p100 = por %p98, %p99
      %p101 = scmp.ne.s32.totalorder %s89, %s90
      %p102 = scmp.eq.s32.totalorder %s24, 1
      %p103 = por %p101, %p102
      %p105 = scmp.ne.s32.totalorder %s90, %s104
      %p106 = scmp.eq.s32.totalorder %s24, 0
      %p107 = por %p105, %p106
      %s109 = sadd.s32 %s108, 1
      %p112 = scmp.eq.s32.totalorder %s18, 1
      %p113 = scmp.ne.s32.totalorder %s108, %s110
      %p114 = scmp.eq.s32.totalorder %s18, 0
      %p115 = por %p113, %p114
      %p116 = scmp.ne.s32.totalorder %s108, %s110
      %p117 = scmp.eq.s32.totalorder %s23, 1
      %p118 = por %p116, %p117
      %p119 = scmp.ne.s32.totalorder %s110, %s111
      %p120 = scmp.eq.s32.totalorder %s23, 0
      %p121 = por %p119, %p120
      %p122 = scmp.ne.s32.totalorder %s110, %s111
      %p123 = scmp.eq.s32.totalorder %s24, 1
      %p124 = por %p122, %p123
      %p126 = scmp.ne.s32.totalorder %s111, %s125
      %p127 = scmp.eq.s32.totalorder %s24, 0
      %p128 = por %p126, %p127
      %s130 = sadd.s32 %s129, 1
      %p133 = scmp.eq.s32.totalorder %s18, 1
      %p134 = scmp.ne.s32.totalorder %s129, %s131
      %p135 = scmp.eq.s32.totalorder %s18, 0
      %p136 = por %p134, %p135
      %p137 = scmp.ne.s32.totalorder %s129, %s131
      %p138 = scmp.eq.s32.totalorder %s23, 1
      %p139 = por %p137, %p138
      %p140 = scmp.ne.s32.totalorder %s131, %s132
      %p141 = scmp.eq.s32.totalorder %s23, 0
      %p142 = por %p140, %p141
      %p143 = scmp.ne.s32.totalorder %s131, %s132
      %p144 = scmp.eq.s32.totalorder %s24, 1
      %p145 = por %p143, %p144
      %p147 = scmp.ne.s32.totalorder %s132, %s146
      %p148 = scmp.eq.s32.totalorder %s24, 0
      %p149 = por %p147, %p148
      %s151 = sadd.s32 %s150, 1
      %p154 = scmp.eq.s32.totalorder %s18, 1
      %p155 = scmp.ne.s32.totalorder %s150, %s152
      %p156 = scmp.eq.s32.totalorder %s18, 0
      %p157 = por %p155, %p156
      %p158 = scmp.ne.s32.totalorder %s150, %s152
      %p159 = scmp.eq.s32.totalorder %s23, 1
      %p160 = por %p158, %p159
      %p161 = scmp.ne.s32.totalorder %s152, %s153
      %p162 = scmp.eq.s32.totalorder %s23, 0
      %p163 = por %p161, %p162
      %p164 = scmp.ne.s32.totalorder %s152, %s153
      %p165 = scmp.eq.s32.totalorder %s24, 1
      %p166 = por %p164, %p165
      %p168 = scmp.ne.s32.totalorder %s153, %s167
      %p169 = scmp.eq.s32.totalorder %s24, 0
      %p170 = por %p168, %p169
      %s172 = sadd.s32 %s171, 1
      %p175 = scmp.eq.s32.totalorder %s18, 1
      %p176 = scmp.ne.s32.totalorder %s171, %s173
      %p177 = scmp.eq.s32.totalorder %s18, 0
      %p178 = por %p176, %p177
      %p179 = scmp.ne.s32.totalorder %s171, %s173
      %p180 = scmp.eq.s32.totalorder %s23, 1
      %p181 = por %p179, %p180
      %p182 = scmp.ne.s32.totalorder %s173, %s174
      %p183 = scmp.eq.s32.totalorder %s23, 0
      %p184 = por %p182, %p183
      %p185 = scmp.ne.s32.totalorder %s173, %s174
      %p186 = scmp.eq.s32.totalorder %s24, 1
      %p187 = por %p185, %p186
      %p189 = scmp.ne.s32.totalorder %s174, %s188
      %p190 = scmp.eq.s32.totalorder %s24, 0
      %p191 = por %p189, %p190
      %s193 = sadd.s32 %s192, 1
      %p196 = scmp.eq.s32.totalorder %s18, 1
      %p197 = scmp.ne.s32.totalorder %s192, %s194
      %p198 = scmp.eq.s32.totalorder %s18, 0
      %p199 = por %p197, %p198
      %p200 = scmp.ne.s32.totalorder %s192, %s194
      %p201 = scmp.eq.s32.totalorder %s23, 1
      %p202 = por %p200, %p201
      %p203 = scmp.ne.s32.totalorder %s194, %s195
      %p204 = scmp.eq.s32.totalorder %s23, 0
      %p205 = por %p203, %p204
      %p206 = scmp.ne.s32.totalorder %s194, %s195
      %p207 = scmp.eq.s32.totalorder %s24, 1
      %p208 = por %p206, %p207
      %p210 = scmp.ne.s32.totalorder %s195, %s209
      %p211 = scmp.eq.s32.totalorder %s24, 0
      %p212 = por %p210, %p211
      %s214 = sadd.s32 %s213, 1
      %p217 = scmp.eq.s32.totalorder %s18, 1
      %p218 = scmp.ne.s32.totalorder %s213, %s215
      %p219 = scmp.eq.s32.totalorder %s18, 0
      %p220 = por %p218, %p219
      %p221 = scmp.ne.s32.totalorder %s213, %s215
      %p222 = scmp.eq.s32.totalorder %s23, 1
      %p223 = por %p221, %p222
      %p224 = scmp.ne.s32.totalorder %s215, %s216
      %p225 = scmp.eq.s32.totalorder %s23, 0
      %p226 = por %p224, %p225
      %p227 = scmp.ne.s32.totalorder %s215, %s216
      %p228 = scmp.eq.s32.totalorder %s24, 1
      %p229 = por %p227, %p228
      %p231 = scmp.ne.s32.totalorder %s216, %s230
      %p232 = scmp.eq.s32.totalorder %s24, 0
      %p233 = por %p231, %p232
      %s234 = ssub.s32 %s25, %s37
      %p235 = scmp.eq.s32.totalorder %s234, 0
      %s237 = sadd.s32 %s236, 1
      %s238 = scalar_select %p235, %s236, %s237
      %p241 = pneg %p235
      %p242 = scmp.eq.s32.totalorder %s18, 1
      %p243 = por %p241, %p242
      %p244 = scmp.ne.s32.totalorder %s236, %s239
      %p245 = scmp.eq.s32.totalorder %s18, 0
      %p246 = por %p244, %p245
      %p247 = scmp.ne.s32.totalorder %s236, %s239
      %p248 = scmp.eq.s32.totalorder %s23, 1
      %p249 = por %p247, %p248
      %p250 = scmp.ne.s32.totalorder %s239, %s240
      %p251 = scmp.eq.s32.totalorder %s23, 0
      %p252 = por %p250, %p251
      %p253 = scmp.ne.s32.totalorder %s239, %s240
      %p254 = scmp.eq.s32.totalorder %s24, 1
      %p255 = por %p253, %p254
      %p257 = scmp.ne.s32.totalorder %s240, %s256
      %p258 = scmp.eq.s32.totalorder %s24, 0
      %p259 = por %p257, %p258
      %p260 = scmp.le.s32.totalorder 1, %s18
      %p261 = scmp.lt.s32.totalorder %s18, 3
      %p262 = pnand %p260, %p261
      %p263 = pneg %p262
      // Predicated region
      $region9: #{modified_efficient_b0_forward.1} parent=5 // pred_check
        _
      $region10: #{modified_efficient_b0_forward.1} parent=5 // pred_check_branch
        %265 = sbr.rel (%p262) target = $region12
      $region11: #{modified_efficient_b0_forward.1} parent=5 // pred_region
        %s266 = ssub.s32 %s18, 1
        // Predicated region
        $region13: #{modified_efficient_b0_forward.1} parent=11 // pred_check
          %p267 = pneg %p79
        $region14: #{modified_efficient_b0_forward.1} parent=11 // pred_check_branch
          %269 = sbr.rel (%p267) target = $region16
        $region15: #{modified_efficient_b0_forward.1} parent=11 // pred_region
          _
        $region16: #{modified_efficient_b0_forward.1} parent=11 // pred_fallthru
          _
        // Predicated region
        $region17: #{modified_efficient_b0_forward.1} parent=11 // pred_check
          %p270 = pneg %p100
        $region18: #{modified_efficient_b0_forward.1} parent=11 // pred_check_branch
          %272 = sbr.rel (%p270) target = $region20
        $region19: #{modified_efficient_b0_forward.1} parent=11 // pred_region
          _
        $region20: #{modified_efficient_b0_forward.1} parent=11 // pred_fallthru
          _
        // Predicated region
        $region21: #{modified_efficient_b0_forward.1} parent=11 // pred_check
          %p273 = pneg %p121
        $region22: #{modified_efficient_b0_forward.1} parent=11 // pred_check_branch
          %275 = sbr.rel (%p273) target = $region24
        $region23: #{modified_efficient_b0_forward.1} parent=11 // pred_region
          _
        $region24: #{modified_efficient_b0_forward.1} parent=11 // pred_fallthru
          _
        // Predicated region
        $region25: #{modified_efficient_b0_forward.1} parent=11 // pred_check
          %p276 = pneg %p142
        $region26: #{modified_efficient_b0_forward.1} parent=11 // pred_check_branch
          %278 = sbr.rel (%p276) target = $region28
        $region27: #{modified_efficient_b0_forward.1} parent=11 // pred_region
          _
        $region28: #{modified_efficient_b0_forward.1} parent=11 // pred_fallthru
          _
        // Predicated region
        $region29: #{modified_efficient_b0_forward.1} parent=11 // pred_check
          %p279 = pneg %p163
        $region30: #{modified_efficient_b0_forward.1} parent=11 // pred_check_branch
          %281 = sbr.rel (%p279) target = $region32
        $region31: #{modified_efficient_b0_forward.1} parent=11 // pred_region
          _
        $region32: #{modified_efficient_b0_forward.1} parent=11 // pred_fallthru
          _
        // Predicated region
        $region33: #{modified_efficient_b0_forward.1} parent=11 // pred_check
          %p282 = pneg %p184
        $region34: #{modified_efficient_b0_forward.1} parent=11 // pred_check_branch
          %284 = sbr.rel (%p282) target = $region36
        $region35: #{modified_efficient_b0_forward.1} parent=11 // pred_region
          _
        $region36: #{modified_efficient_b0_forward.1} parent=11 // pred_fallthru
          _
        // Predicated region
        $region37: #{modified_efficient_b0_forward.1} parent=11 // pred_check
          %p285 = pneg %p205
        $region38: #{modified_efficient_b0_forward.1} parent=11 // pred_check_branch
          %287 = sbr.rel (%p285) target = $region40
        $region39: #{modified_efficient_b0_forward.1} parent=11 // pred_region
          _
        $region40: #{modified_efficient_b0_forward.1} parent=11 // pred_fallthru
          _
        // Predicated region
        $region41: #{modified_efficient_b0_forward.1} parent=11 // pred_check
          %p288 = pneg %p226
        $region42: #{modified_efficient_b0_forward.1} parent=11 // pred_check_branch
          %290 = sbr.rel (%p288) target = $region44
        $region43: #{modified_efficient_b0_forward.1} parent=11 // pred_region
          _
        $region44: #{modified_efficient_b0_forward.1} parent=11 // pred_fallthru
          _
      $region12: #{modified_efficient_b0_forward.1} parent=5 // pred_fallthru
        _
      %p291 = scmp.lt.s32.totalorder %s18, 2
      // Predicated region
      $region45: #{modified_efficient_b0_forward.1} parent=5 // pred_check
        %p292 = pneg %p291
      $region46: #{modified_efficient_b0_forward.1} parent=5 // pred_check_branch
        %294 = sbr.rel (%p292) target = $region48
      $region47: #{modified_efficient_b0_forward.1} parent=5 // pred_region
        // Predicated region
        $region49: #{modified_efficient_b0_forward.1} parent=47 // pred_check
          %p295 = pneg %p52
        $region50: #{modified_efficient_b0_forward.1} parent=47 // pred_check_branch
          %297 = sbr.rel (%p295) target = $region52
        $region51: #{modified_efficient_b0_forward.1} parent=47 // pred_region
          %s298 = smul.u32 32, %s26
          %p299 = scmp.lt.s32.totalorder %s25, 1
          %s300 = scalar_select %p299, %s25, 1
          %p301 = scmp.lt.s32.totalorder %s298, 31
          %s302 = scalar_select %p301, %s298, 31
          %s303 = smul.addr %s300, 32
          %s304 = sadd.s32 %s302, %s303
          %s305 = smul.addr %s304, 4
          %s306 = scalar_lea.vmem %s0, %s305
          %s307 = smul.u32 32, %s26
        $region52: #{modified_efficient_b0_forward.1} parent=47 // pred_fallthru
          _
      $region48: #{modified_efficient_b0_forward.1} parent=5 // pred_fallthru
        _
      %p308 = scmp.le.s32.totalorder 1, %s18
      %p309 = scmp.lt.s32.totalorder %s18, 3
      %p310 = pnand %p308, %p309
      %p311 = pneg %p310
      // Predicated region
      $region53: #{modified_efficient_b0_forward.1} parent=5 // pred_check
        _
      $region54: #{modified_efficient_b0_forward.1} parent=5 // pred_check_branch
        %313 = sbr.rel (%p310) target = $region56
      $region55: #{modified_efficient_b0_forward.1} parent=5 // pred_region
        %s314 = ssub.s32 %s18, 1
        %s315 = smul.u32 32, %s28
        %p316 = scmp.lt.s32.totalorder %s27, 1
        %s317 = scalar_select %p316, %s27, 1
        %p318 = scmp.lt.s32.totalorder %s315, 31
        %s319 = scalar_select %p318, %s315, 31
        %s320 = smul.addr %s317, 32
        %s321 = sadd.s32 %s319, %s320
        %s322 = smul.addr %s321, 4
        %s323 = scalar_lea.vmem %s0, %s322
        %p324 = pneg %p58
        %p325 = pneg %p55
        %p326 = pneg %p79
        %p327 = pneg %p76
        %p328 = pneg %p100
        %p329 = pneg %p97
        %p330 = pneg %p121
        %p331 = pneg %p118
        %p332 = pneg %p142
        %p333 = pneg %p139
        %p334 = pneg %p163
        %p335 = pneg %p160
        %p336 = pneg %p184
        %p337 = pneg %p181
        %p338 = pneg %p205
        %p339 = pneg %p202
        %p340 = pneg %p226
        %p341 = pneg %p223
        %p342 = pneg %p252
        %p343 = pneg %p249
        %s344 = sand.u32 %s239, 1
        %s345 = scalar_lea.sflag [#allocation4], %s344
        %s346 = sand.u32 %s239, 1
        %s347 = scalar_lea.vmem [#allocation3], %s346
        %s348 = smul.u32 32, %s28
        %p349 = scmp.lt.s32.totalorder %s27, 1
        %s350 = scalar_select %p349, %s27, 1
        %p351 = scmp.lt.s32.totalorder %s348, 31
        %s352 = scalar_select %p351, %s348, 31
        %s353 = smul.addr %s350, 32
        %s354 = sadd.s32 %s352, %s353
        %s355 = smul.addr %s354, 4
        %s356 = scalar_lea.vmem %s0, %s355
        %s357 = smul.u32 32, %s28
        %p360 = scmp.eq.s32.totalorder %s28, 0
        // Predicated region
        $region57: #{modified_efficient_b0_forward.1} parent=55 // pred_check
          %p361 = pneg %p360
        $region58: #{modified_efficient_b0_forward.1} parent=55 // pred_check_branch
          %363 = sbr.rel (%p361) target = $region60
        $region59: #{modified_efficient_b0_forward.1} parent=55 // pred_region
          %364 = vst [vmem:[#allocation2] sm:$0xff] 0.0
          %v365 = vlaneseq
          %vm366 = vcmp.ge.s32.totalorder %v365, 0
          %vm367 = vcmp.lt.s32.totalorder %v365, 256
          %vm368 = vmand %vm366, %vm367
          %369 = vst.msk [vmem:[#allocation2 + $0x8] sm:$0x3] %vm368, 0.0
        $region60: #{modified_efficient_b0_forward.1} parent=55 // pred_fallthru
          _
        %v370 = vld [vmem:[%s356] sm:$0xf]
        %v371 = vld [vmem:[%s356 + $0x4] sm:$0xf]
        %v372 = vld [vmem:[%s356 + $0x8] sm:$0xf]
        %v373 = vld [vmem:[%s356 + $0xc] sm:$0xf]
        %v374 = vld [vmem:[%s356 + $0x10] sm:$0xf]
        %v375 = vld [vmem:[%s356 + $0x14] sm:$0xf]
        %v376 = vld [vmem:[%s356 + $0x18] sm:$0xf]
        %v377 = vld [vmem:[%s356 + $0x1c] sm:$0xf]
        %v378 = vld [vmem:[%s356 + $0x20] sm:$0xf]
        %v379 = vld [vmem:[%s356 + $0x24] sm:$0xf]
        %v380 = vld [vmem:[%s356 + $0x28] sm:$0xf]
        %v381 = vld [vmem:[%s356 + $0x2c] sm:$0xf]
        %v382 = vld [vmem:[%s356 + $0x30] sm:$0xf]
        %v383 = vld [vmem:[%s356 + $0x34] sm:$0xf]
        %v384 = vld [vmem:[%s356 + $0x38] sm:$0xf]
        %v385 = vld [vmem:[%s356 + $0x3c] sm:$0xf]
        %v386 = vld [vmem:[%s356 + $0x40] sm:$0xf]
        %v387 = vld [vmem:[%s356 + $0x44] sm:$0xf]
        %v388 = vld [vmem:[%s356 + $0x48] sm:$0xf]
        %v389 = vld [vmem:[%s356 + $0x4c] sm:$0xf]
        %v390 = vld [vmem:[%s356 + $0x50] sm:$0xf]
        %v391 = vld [vmem:[%s356 + $0x54] sm:$0xf]
        %v392 = vld [vmem:[%s356 + $0x58] sm:$0xf]
        %v393 = vld [vmem:[%s356 + $0x5c] sm:$0xf]
        %v394 = vld [vmem:[%s356 + $0x60] sm:$0xf]
        %v395 = vld [vmem:[%s356 + $0x64] sm:$0xf]
        %v396 = vld [vmem:[%s356 + $0x68] sm:$0xf]
        %v397 = vld [vmem:[%s356 + $0x6c] sm:$0xf]
        %v398 = vld [vmem:[%s356 + $0x70] sm:$0xf]
        %v399 = vld [vmem:[%s356 + $0x74] sm:$0xf]
        %v400 = vld [vmem:[%s356 + $0x78] sm:$0xf]
        %v401 = vld [vmem:[%s356 + $0x7c] sm:$0xf]
        %v402 = vld [vmem:[%s1] sm:$0xf]
        %v403 = vld [vmem:[%s1 + $0x4] sm:$0xf]
        %v404 = vld [vmem:[%s1 + $0x8] sm:$0xf]
        %v405 = vld [vmem:[%s1 + $0xc] sm:$0xf]
        %v406 = vld [vmem:[%s2] sm:$0x1]
        %v408 = vlaneseq
        %v409 = vshrl.u32 %v408, 7
        %v410 = vsub.s32 0, %v409
        %v411 = vrot.slane %v406, %v410
        %v445 = vunpack.c.l.b16 %v370
        %v446 = vunpack.c.l.b16 %v371
        %v447 = vunpack.c.l.b16 %v372
        %v448 = vunpack.c.l.b16 %v373
        %v449 = vunpack.c.l.b16 %v374
        %v450 = vunpack.c.l.b16 %v375
        %v451 = vunpack.c.l.b16 %v376
        %v452 = vunpack.c.l.b16 %v377
        %v453 = vunpack.c.l.b16 %v378
        %v454 = vunpack.c.l.b16 %v379
        %v455 = vunpack.c.l.b16 %v380
        %v456 = vunpack.c.l.b16 %v381
        %v457 = vunpack.c.l.b16 %v382
        %v458 = vunpack.c.l.b16 %v383
        %v459 = vunpack.c.l.b16 %v384
        %v460 = vunpack.c.l.b16 %v385
        %v461 = vunpack.c.l.b16 %v386
        %v462 = vunpack.c.l.b16 %v387
        %v463 = vunpack.c.l.b16 %v388
        %v464 = vunpack.c.l.b16 %v389
        %v465 = vunpack.c.l.b16 %v390
        %v466 = vunpack.c.l.b16 %v391
        %v467 = vunpack.c.l.b16 %v392
        %v468 = vunpack.c.l.b16 %v393
        %v469 = vunpack.c.l.b16 %v394
        %v470 = vunpack.c.l.b16 %v395
        %v471 = vunpack.c.l.b16 %v396
        %v472 = vunpack.c.l.b16 %v397
        %v473 = vunpack.c.l.b16 %v398
        %v474 = vunpack.c.l.b16 %v399
        %v475 = vunpack.c.l.b16 %v400
        %v476 = vunpack.c.l.b16 %v401
        %v477 = vpack.c.b16 %v446, %v445
        %v478 = vpack.c.b16 %v448, %v447
        %v479 = vpack.c.b16 %v450, %v449
        %v480 = vpack.c.b16 %v452, %v451
        %v481 = vpack.c.b16 %v454, %v453
        %v482 = vpack.c.b16 %v456, %v455
        %v483 = vpack.c.b16 %v458, %v457
        %v484 = vpack.c.b16 %v460, %v459
        %v485 = vpack.c.b16 %v462, %v461
        %v486 = vpack.c.b16 %v464, %v463
        %v487 = vpack.c.b16 %v466, %v465
        %v488 = vpack.c.b16 %v468, %v467
        %v489 = vpack.c.b16 %v470, %v469
        %v490 = vpack.c.b16 %v472, %v471
        %v491 = vpack.c.b16 %v474, %v473
        %v492 = vpack.c.b16 %v476, %v475
        %v497 = vunpack.c.l.b16 %v402
        %v498 = vunpack.c.l.b16 %v403
        %v499 = vunpack.c.l.b16 %v404
        %v500 = vunpack.c.l.b16 %v405
        %v501 = vpack.c.b16 %v498, %v497
        %v502 = vpack.c.b16 %v500, %v499
        %vm505 = vcmask 261120
        %v507 = vsel %vm505, %v477, 0
        %v510 = vsel %vm505, %v478, 0
        %v513 = vsel %vm505, %v479, 0
        %v516 = vsel %vm505, %v480, 0
        %v519 = vsel %vm505, %v481, 0
        %v522 = vsel %vm505, %v482, 0
        %v525 = vsel %vm505, %v483, 0
        %v528 = vsel %vm505, %v484, 0
        %v531 = vsel %vm505, %v485, 0
        %v534 = vsel %vm505, %v486, 0
        %v537 = vsel %vm505, %v487, 0
        %v540 = vsel %vm505, %v488, 0
        %v543 = vsel %vm505, %v489, 0
        %v546 = vsel %vm505, %v490, 0
        %v549 = vsel %vm505, %v491, 0
        %v552 = vsel %vm505, %v492, 0
        %554 = vmatprep.subr.bf16.mxu0 0
        %555 = vmatpush1.bf16.msra.mxu0 0
        %556 = vmatprep.subr.bf16.mxu0 0
        %557 = vmatpush1.bf16.msra.mxu0 0
        %558 = vmatprep.subr.bf16.mxu0 0
        %559 = vmatpush1.bf16.msra.mxu0 0
        %560 = vmatprep.subr.bf16.mxu0 0
        %561 = vmatpush1.bf16.msra.mxu0 0
        %562 = vmatprep.subr.bf16.mxu0 0
        %563 = vmatpush1.bf16.msra.mxu0 0
        %564 = vmatprep.subr.bf16.mxu0 0
        %565 = vmatpush1.bf16.msra.mxu0 0
        %566 = vmatprep.subr.bf16.mxu0 0
        %567 = vmatpush1.bf16.msra.mxu0 %v502
        %568 = vmatprep.subr.bf16.mxu0 0
        %569 = vmatpush1.bf16.msra.mxu0 %v501
        %570 = vmatprep.subr.bf16.mxu0 0
        %571 = vmatpush2.bf16.msra.mxu0 0
        %572 = vmatprep.subr.bf16.mxu0 0
        %573 = vmatpush2.bf16.msra.mxu0 0
        %574 = vmatprep.subr.bf16.mxu0 0
        %575 = vmatpush2.bf16.msra.mxu0 0
        %576 = vmatprep.subr.bf16.mxu0 0
        %577 = vmatpush2.bf16.msra.mxu0 0
        %578 = vmatprep.subr.bf16.mxu0 0
        %579 = vmatpush2.bf16.msra.mxu0 0
        %580 = vmatprep.subr.bf16.mxu0 0
        %581 = vmatpush2.bf16.msra.mxu0 0
        %582 = vmatprep.subr.bf16.mxu0 0
        %583 = vmatpush2.bf16.msra.mxu0 0
        %584 = vmatprep.subr.bf16.mxu0 0
        %585 = vmatpush2.bf16.msra.mxu0 0
        %586 = vmatprep.mubr.bf16.mxu0 0
        %587 = vmatmul.mubr.bf16.gmra.mxu0 %v507
        %v588 = vpop.f32.mrf.mxu0
        %v589 = vadd.f32 %v411, %v588
        %v590 = vpop.f32.mrf.mxu0
        %v591 = vpop.f32.mrf.mxu0
        %v592 = vadd.f32 %v411, %v591
        %v593 = vpop.f32.mrf.mxu0
        %594 = vmatprep.mubr.bf16.mxu0 0
        %595 = vmatmul.mubr.bf16.gmra.mxu0 %v510
        %v596 = vpop.f32.mrf.mxu0
        %v597 = vadd.f32 %v411, %v596
        %v598 = vpop.f32.mrf.mxu0
        %v599 = vpop.f32.mrf.mxu0
        %v600 = vadd.f32 %v411, %v599
        %v601 = vpop.f32.mrf.mxu0
        %602 = vmatprep.mubr.bf16.mxu0 0
        %603 = vmatmul.mubr.bf16.gmra.mxu0 %v513
        %v604 = vpop.f32.mrf.mxu0
        %v605 = vadd.f32 %v411, %v604
        %v606 = vpop.f32.mrf.mxu0
        %v607 = vpop.f32.mrf.mxu0
        %v608 = vadd.f32 %v411, %v607
        %v609 = vpop.f32.mrf.mxu0
        %610 = vmatprep.mubr.bf16.mxu0 0
        %611 = vmatmul.mubr.bf16.gmra.mxu0 %v516
        %v612 = vpop.f32.mrf.mxu0
        %v613 = vadd.f32 %v411, %v612
        %v614 = vpop.f32.mrf.mxu0
        %v615 = vpop.f32.mrf.mxu0
        %v616 = vadd.f32 %v411, %v615
        %v617 = vpop.f32.mrf.mxu0
        %618 = vmatprep.mubr.bf16.mxu0 0
        %619 = vmatmul.mubr.bf16.gmra.mxu0 %v519
        %v620 = vpop.f32.mrf.mxu0
        %v621 = vadd.f32 %v411, %v620
        %v622 = vpop.f32.mrf.mxu0
        %v623 = vpop.f32.mrf.mxu0
        %v624 = vadd.f32 %v411, %v623
        %v625 = vpop.f32.mrf.mxu0
        %626 = vmatprep.mubr.bf16.mxu0 0
        %627 = vmatmul.mubr.bf16.gmra.mxu0 %v522
        %v628 = vpop.f32.mrf.mxu0
        %v629 = vadd.f32 %v411, %v628
        %v630 = vpop.f32.mrf.mxu0
        %v631 = vpop.f32.mrf.mxu0
        %v632 = vadd.f32 %v411, %v631
        %v633 = vpop.f32.mrf.mxu0
        %634 = vmatprep.mubr.bf16.mxu0 0
        %635 = vmatmul.mubr.bf16.gmra.mxu0 %v525
        %v636 = vpop.f32.mrf.mxu0
        %v637 = vadd.f32 %v411, %v636
        %v638 = vpop.f32.mrf.mxu0
        %v639 = vpop.f32.mrf.mxu0
        %v640 = vadd.f32 %v411, %v639
        %v641 = vpop.f32.mrf.mxu0
        %642 = vmatprep.mubr.bf16.mxu0 0
        %643 = vmatmul.mubr.bf16.gmra.mxu0 %v528
        %v644 = vpop.f32.mrf.mxu0
        %v645 = vadd.f32 %v411, %v644
        %v646 = vpop.f32.mrf.mxu0
        %v647 = vpop.f32.mrf.mxu0
        %v648 = vadd.f32 %v411, %v647
        %v649 = vpop.f32.mrf.mxu0
        %650 = vmatprep.mubr.bf16.mxu0 0
        %651 = vmatmul.mubr.bf16.gmra.mxu0 %v531
        %v652 = vpop.f32.mrf.mxu0
        %v653 = vadd.f32 %v411, %v652
        %v654 = vpop.f32.mrf.mxu0
        %v655 = vpop.f32.mrf.mxu0
        %v656 = vadd.f32 %v411, %v655
        %v657 = vpop.f32.mrf.mxu0
        %658 = vmatprep.mubr.bf16.mxu0 0
        %659 = vmatmul.mubr.bf16.gmra.mxu0 %v534
        %v660 = vpop.f32.mrf.mxu0
        %v661 = vadd.f32 %v411, %v660
        %v662 = vpop.f32.mrf.mxu0
        %v663 = vpop.f32.mrf.mxu0
        %v664 = vadd.f32 %v411, %v663
        %v665 = vpop.f32.mrf.mxu0
        %666 = vmatprep.mubr.bf16.mxu0 0
        %667 = vmatmul.mubr.bf16.gmra.mxu0 %v537
        %v668 = vpop.f32.mrf.mxu0
        %v669 = vadd.f32 %v411, %v668
        %v670 = vpop.f32.mrf.mxu0
        %v671 = vpop.f32.mrf.mxu0
        %v672 = vadd.f32 %v411, %v671
        %v673 = vpop.f32.mrf.mxu0
        %674 = vmatprep.mubr.bf16.mxu0 0
        %675 = vmatmul.mubr.bf16.gmra.mxu0 %v540
        %v676 = vpop.f32.mrf.mxu0
        %v677 = vadd.f32 %v411, %v676
        %v678 = vpop.f32.mrf.mxu0
        %v679 = vpop.f32.mrf.mxu0
        %v680 = vadd.f32 %v411, %v679
        %v681 = vpop.f32.mrf.mxu0
        %682 = vmatprep.mubr.bf16.mxu0 0
        %683 = vmatmul.mubr.bf16.gmra.mxu0 %v543
        %v684 = vpop.f32.mrf.mxu0
        %v685 = vadd.f32 %v411, %v684
        %v686 = vpop.f32.mrf.mxu0
        %v687 = vpop.f32.mrf.mxu0
        %v688 = vadd.f32 %v411, %v687
        %v689 = vpop.f32.mrf.mxu0
        %690 = vmatprep.mubr.bf16.mxu0 0
        %691 = vmatmul.mubr.bf16.gmra.mxu0 %v546
        %v692 = vpop.f32.mrf.mxu0
        %v693 = vadd.f32 %v411, %v692
        %v694 = vpop.f32.mrf.mxu0
        %v695 = vpop.f32.mrf.mxu0
        %v696 = vadd.f32 %v411, %v695
        %v697 = vpop.f32.mrf.mxu0
        %698 = vmatprep.mubr.bf16.mxu0 0
        %699 = vmatmul.mubr.bf16.gmra.mxu0 %v549
        %v700 = vpop.f32.mrf.mxu0
        %v701 = vadd.f32 %v411, %v700
        %v702 = vpop.f32.mrf.mxu0
        %v703 = vpop.f32.mrf.mxu0
        %v704 = vadd.f32 %v411, %v703
        %v705 = vpop.f32.mrf.mxu0
        %706 = vmatprep.mubr.bf16.mxu0 0
        %707 = vmatmul.mubr.bf16.gmra.mxu0 %v552
        %v708 = vpop.f32.mrf.mxu0
        %v709 = vadd.f32 %v411, %v708
        %v710 = vpop.f32.mrf.mxu0
        %v711 = vpop.f32.mrf.mxu0
        %v712 = vadd.f32 %v411, %v711
        %v713 = vpop.f32.mrf.mxu0
        %714 = vdwg.mxu0
        %v715 = vxor.u32 %v589, 2147483648
        %v716 = vxor.u32 %v592, 2147483648
        %v717 = vxor.u32 %v597, 2147483648
        %v718 = vxor.u32 %v600, 2147483648
        %v719 = vxor.u32 %v605, 2147483648
        %v720 = vxor.u32 %v608, 2147483648
        %v721 = vxor.u32 %v613, 2147483648
        %v722 = vxor.u32 %v616, 2147483648
        %v723 = vxor.u32 %v621, 2147483648
        %v724 = vxor.u32 %v624, 2147483648
        %v725 = vxor.u32 %v629, 2147483648
        %v726 = vxor.u32 %v632, 2147483648
        %v727 = vxor.u32 %v637, 2147483648
        %v728 = vxor.u32 %v640, 2147483648
        %v729 = vxor.u32 %v645, 2147483648
        %v730 = vxor.u32 %v648, 2147483648
        %v731 = vxor.u32 %v653, 2147483648
        %v732 = vxor.u32 %v656, 2147483648
        %v733 = vxor.u32 %v661, 2147483648
        %v734 = vxor.u32 %v664, 2147483648
        %v735 = vxor.u32 %v669, 2147483648
        %v736 = vxor.u32 %v672, 2147483648
        %v737 = vxor.u32 %v677, 2147483648
        %v738 = vxor.u32 %v680, 2147483648
        %v739 = vxor.u32 %v685, 2147483648
        %v740 = vxor.u32 %v688, 2147483648
        %v741 = vxor.u32 %v693, 2147483648
        %v742 = vxor.u32 %v696, 2147483648
        %v743 = vxor.u32 %v701, 2147483648
        %v744 = vxor.u32 %v704, 2147483648
        %v745 = vxor.u32 %v709, 2147483648
        %v746 = vxor.u32 %v712, 2147483648
        %v747 = vmul.f32 %v715, 1.442695
        %v748 = vpow.pop %v747
        %v749 = vmul.f32 %v716, 1.442695
        %v750 = vpow.pop %v749
        %v751 = vmul.f32 %v717, 1.442695
        %v752 = vpow.pop %v751
        %v753 = vmul.f32 %v718, 1.442695
        %v754 = vpow.pop %v753
        %v755 = vmul.f32 %v719, 1.442695
        %v756 = vpow.pop %v755
        %v757 = vmul.f32 %v720, 1.442695
        %v758 = vpow.pop %v757
        %v759 = vmul.f32 %v721, 1.442695
        %v760 = vpow.pop %v759
        %v761 = vmul.f32 %v722, 1.442695
        %v762 = vpow.pop %v761
        %v763 = vmul.f32 %v723, 1.442695
        %v764 = vpow.pop %v763
        %v765 = vmul.f32 %v724, 1.442695
        %v766 = vpow.pop %v765
        %v767 = vmul.f32 %v725, 1.442695
        %v768 = vpow.pop %v767
        %v769 = vmul.f32 %v726, 1.442695
        %v770 = vpow.pop %v769
        %v771 = vmul.f32 %v727, 1.442695
        %v772 = vpow.pop %v771
        %v773 = vmul.f32 %v728, 1.442695
        %v774 = vpow.pop %v773
        %v775 = vmul.f32 %v729, 1.442695
        %v776 = vpow.pop %v775
        %v777 = vmul.f32 %v730, 1.442695
        %v778 = vpow.pop %v777
        %v779 = vmul.f32 %v731, 1.442695
        %v780 = vpow.pop %v779
        %v781 = vmul.f32 %v732, 1.442695
        %v782 = vpow.pop %v781
        %v783 = vmul.f32 %v733, 1.442695
        %v784 = vpow.pop %v783
        %v785 = vmul.f32 %v734, 1.442695
        %v786 = vpow.pop %v785
        %v787 = vmul.f32 %v735, 1.442695
        %v788 = vpow.pop %v787
        %v789 = vmul.f32 %v736, 1.442695
        %v790 = vpow.pop %v789
        %v791 = vmul.f32 %v737, 1.442695
        %v792 = vpow.pop %v791
        %v793 = vmul.f32 %v738, 1.442695
        %v794 = vpow.pop %v793
        %v795 = vmul.f32 %v739, 1.442695
        %v796 = vpow.pop %v795
        %v797 = vmul.f32 %v740, 1.442695
        %v798 = vpow.pop %v797
        %v799 = vmul.f32 %v741, 1.442695
        %v800 = vpow.pop %v799
        %v801 = vmul.f32 %v742, 1.442695
        %v802 = vpow.pop %v801
        %v803 = vmul.f32 %v743, 1.442695
        %v804 = vpow.pop %v803
        %v805 = vmul.f32 %v744, 1.442695
        %v806 = vpow.pop %v805
        %v807 = vmul.f32 %v745, 1.442695
        %v808 = vpow.pop %v807
        %v809 = vmul.f32 %v746, 1.442695
        %v810 = vpow.pop %v809
        %v811 = vadd.f32 %v748, 1.0
        %v812 = vadd.f32 %v750, 1.0
        %v813 = vadd.f32 %v752, 1.0
        %v814 = vadd.f32 %v754, 1.0
        %v815 = vadd.f32 %v756, 1.0
        %v816 = vadd.f32 %v758, 1.0
        %v817 = vadd.f32 %v760, 1.0
        %v818 = vadd.f32 %v762, 1.0
        %v819 = vadd.f32 %v764, 1.0
        %v820 = vadd.f32 %v766, 1.0
        %v821 = vadd.f32 %v768, 1.0
        %v822 = vadd.f32 %v770, 1.0
        %v823 = vadd.f32 %v772, 1.0
        %v824 = vadd.f32 %v774, 1.0
        %v825 = vadd.f32 %v776, 1.0
        %v826 = vadd.f32 %v778, 1.0
        %v827 = vadd.f32 %v780, 1.0
        %v828 = vadd.f32 %v782, 1.0
        %v829 = vadd.f32 %v784, 1.0
        %v830 = vadd.f32 %v786, 1.0
        %v831 = vadd.f32 %v788, 1.0
        %v832 = vadd.f32 %v790, 1.0
        %v833 = vadd.f32 %v792, 1.0
        %v834 = vadd.f32 %v794, 1.0
        %v835 = vadd.f32 %v796, 1.0
        %v836 = vadd.f32 %v798, 1.0
        %v837 = vadd.f32 %v800, 1.0
        %v838 = vadd.f32 %v802, 1.0
        %v839 = vadd.f32 %v804, 1.0
        %v840 = vadd.f32 %v806, 1.0
        %v841 = vadd.f32 %v808, 1.0
        %v842 = vadd.f32 %v810, 1.0
        %v843 = vrcp.pop %v811
        %v844 = vmul.f32 1.0, %v843
        %v845 = vrcp.pop %v812
        %v846 = vmul.f32 1.0, %v845
        %v847 = vrcp.pop %v813
        %v848 = vmul.f32 1.0, %v847
        %v849 = vrcp.pop %v814
        %v850 = vmul.f32 1.0, %v849
        %v851 = vrcp.pop %v815
        %v852 = vmul.f32 1.0, %v851
        %v853 = vrcp.pop %v816
        %v854 = vmul.f32 1.0, %v853
        %v855 = vrcp.pop %v817
        %v856 = vmul.f32 1.0, %v855
        %v857 = vrcp.pop %v818
        %v858 = vmul.f32 1.0, %v857
        %v859 = vrcp.pop %v819
        %v860 = vmul.f32 1.0, %v859
        %v861 = vrcp.pop %v820
        %v862 = vmul.f32 1.0, %v861
        %v863 = vrcp.pop %v821
        %v864 = vmul.f32 1.0, %v863
        %v865 = vrcp.pop %v822
        %v866 = vmul.f32 1.0, %v865
        %v867 = vrcp.pop %v823
        %v868 = vmul.f32 1.0, %v867
        %v869 = vrcp.pop %v824
        %v870 = vmul.f32 1.0, %v869
        %v871 = vrcp.pop %v825
        %v872 = vmul.f32 1.0, %v871
        %v873 = vrcp.pop %v826
        %v874 = vmul.f32 1.0, %v873
        %v875 = vrcp.pop %v827
        %v876 = vmul.f32 1.0, %v875
        %v877 = vrcp.pop %v828
        %v878 = vmul.f32 1.0, %v877
        %v879 = vrcp.pop %v829
        %v880 = vmul.f32 1.0, %v879
        %v881 = vrcp.pop %v830
        %v882 = vmul.f32 1.0, %v881
        %v883 = vrcp.pop %v831
        %v884 = vmul.f32 1.0, %v883
        %v885 = vrcp.pop %v832
        %v886 = vmul.f32 1.0, %v885
        %v887 = vrcp.pop %v833
        %v888 = vmul.f32 1.0, %v887
        %v889 = vrcp.pop %v834
        %v890 = vmul.f32 1.0, %v889
        %v891 = vrcp.pop %v835
        %v892 = vmul.f32 1.0, %v891
        %v893 = vrcp.pop %v836
        %v894 = vmul.f32 1.0, %v893
        %v895 = vrcp.pop %v837
        %v896 = vmul.f32 1.0, %v895
        %v897 = vrcp.pop %v838
        %v898 = vmul.f32 1.0, %v897
        %v899 = vrcp.pop %v839
        %v900 = vmul.f32 1.0, %v899
        %v901 = vrcp.pop %v840
        %v902 = vmul.f32 1.0, %v901
        %v903 = vrcp.pop %v841
        %v904 = vmul.f32 1.0, %v903
        %v905 = vrcp.pop %v842
        %v906 = vmul.f32 1.0, %v905
        %v907 = vmul.f32 %v589, %v844
        %v908 = vmul.f32 %v592, %v846
        %v909 = vmul.f32 %v597, %v848
        %v910 = vmul.f32 %v600, %v850
        %v911 = vmul.f32 %v605, %v852
        %v912 = vmul.f32 %v608, %v854
        %v913 = vmul.f32 %v613, %v856
        %v914 = vmul.f32 %v616, %v858
        %v915 = vmul.f32 %v621, %v860
        %v916 = vmul.f32 %v624, %v862
        %v917 = vmul.f32 %v629, %v864
        %v918 = vmul.f32 %v632, %v866
        %v919 = vmul.f32 %v637, %v868
        %v920 = vmul.f32 %v640, %v870
        %v921 = vmul.f32 %v645, %v872
        %v922 = vmul.f32 %v648, %v874
        %v923 = vmul.f32 %v653, %v876
        %v924 = vmul.f32 %v656, %v878
        %v925 = vmul.f32 %v661, %v880
        %v926 = vmul.f32 %v664, %v882
        %v927 = vmul.f32 %v669, %v884
        %v928 = vmul.f32 %v672, %v886
        %v929 = vmul.f32 %v677, %v888
        %v930 = vmul.f32 %v680, %v890
        %v931 = vmul.f32 %v685, %v892
        %v932 = vmul.f32 %v688, %v894
        %v933 = vmul.f32 %v693, %v896
        %v934 = vmul.f32 %v696, %v898
        %v935 = vmul.f32 %v701, %v900
        %v936 = vmul.f32 %v704, %v902
        %v937 = vmul.f32 %v709, %v904
        %v938 = vmul.f32 %v712, %v906
        %v939 = vpack.c.bf16 %v908, %v907
        %v940 = vpack.c.bf16 %v910, %v909
        %v941 = vpack.c.bf16 %v912, %v911
        %v942 = vpack.c.bf16 %v914, %v913
        %v943 = vpack.c.bf16 %v916, %v915
        %v944 = vpack.c.bf16 %v918, %v917
        %v945 = vpack.c.bf16 %v920, %v919
        %v946 = vpack.c.bf16 %v922, %v921
        %v947 = vpack.c.bf16 %v924, %v923
        %v948 = vpack.c.bf16 %v926, %v925
        %v949 = vpack.c.bf16 %v928, %v927
        %v950 = vpack.c.bf16 %v930, %v929
        %v951 = vpack.c.bf16 %v932, %v931
        %v952 = vpack.c.bf16 %v934, %v933
        %v953 = vpack.c.bf16 %v936, %v935
        %v954 = vpack.c.bf16 %v938, %v937
        %v955 = vld [vmem:[%s3] sm:$0xff]
        %v956 = vld [vmem:[%s3 + $0x8] sm:$0xff]
        %v957 = vld [vmem:[%s3 + $0x10] sm:$0xff]
        %v958 = vld [vmem:[%s3 + $0x18] sm:$0xff]
        %v959 = vld [vmem:[%s3 + $0x20] sm:$0xff]
        %v960 = vld [vmem:[%s3 + $0x28] sm:$0xff]
        %v961 = vld [vmem:[%s3 + $0x30] sm:$0xff]
        %v962 = vld [vmem:[%s3 + $0x38] sm:$0xff]
        %v963 = vld [vmem:[%s3 + $0x40] sm:$0xff]
        %v964 = vld [vmem:[%s3 + $0x48] sm:$0xff]
        %v965 = vld [vmem:[%s3 + $0x50] sm:$0xff]
        %v966 = vld [vmem:[%s3 + $0x58] sm:$0xff]
        %v967 = vld [vmem:[%s3 + $0x60] sm:$0xff]
        %v968 = vld [vmem:[%s3 + $0x68] sm:$0xff]
        %v969 = vld [vmem:[%s3 + $0x70] sm:$0xff]
        %v970 = vld [vmem:[%s3 + $0x78] sm:$0xff]
        %v971 = vld [vmem:[%s3 + $0x80] sm:$0xff]
        %v972 = vld [vmem:[%s3 + $0x88] sm:$0xff]
        %v973 = vld [vmem:[%s3 + $0x90] sm:$0xff]
        %v974 = vld [vmem:[%s3 + $0x98] sm:$0xff]
        %v975 = vld [vmem:[%s4] sm:$0xff]
        %v976 = vld [vmem:[%s4 + $0x8] sm:$0x3]
        %v979 = vlaneseq
        %v980 = vshrl.u32 %v979, 7
        %v981 = vsub.s32 0, %v980
        %v982 = vrot.slane %v975, %v981
        %v983 = vlaneseq
        %v984 = vshrl.u32 %v983, 7
        %v985 = vsub.s32 1, %v984
        %v986 = vrot.slane %v975, %v985
        %v987 = vlaneseq
        %v988 = vshrl.u32 %v987, 7
        %v989 = vsub.s32 2, %v988
        %v990 = vrot.slane %v975, %v989
        %v991 = vlaneseq
        %v992 = vshrl.u32 %v991, 7
        %v993 = vsub.s32 3, %v992
        %v994 = vrot.slane %v975, %v993
        %v995 = vlaneseq
        %v996 = vshrl.u32 %v995, 7
        %v997 = vsub.s32 4, %v996
        %v998 = vrot.slane %v975, %v997
        %v999 = vlaneseq
        %v1000 = vshrl.u32 %v999, 7
        %v1001 = vsub.s32 5, %v1000
        %v1002 = vrot.slane %v975, %v1001
        %v1003 = vlaneseq
        %v1004 = vshrl.u32 %v1003, 7
        %v1005 = vsub.s32 6, %v1004
        %v1006 = vrot.slane %v975, %v1005
        %v1007 = vlaneseq
        %v1008 = vshrl.u32 %v1007, 7
        %v1009 = vsub.s32 7, %v1008
        %v1010 = vrot.slane %v975, %v1009
        %v1011 = vlaneseq
        %v1012 = vshrl.u32 %v1011, 7
        %v1013 = vsub.s32 0, %v1012
        %v1014 = vrot.slane %v976, %v1013
        %v1015 = vlaneseq
        %v1016 = vshrl.u32 %v1015, 7
        %v1017 = vsub.s32 1, %v1016
        %v1018 = vrot.slane %v976, %v1017
        %v1049 = vunpack.c.l.b16 %v955
        %v1050 = vunpack.c.h.b16 %v955
        %v1051 = vunpack.c.l.b16 %v956
        %v1052 = vunpack.c.h.b16 %v956
        %v1053 = vunpack.c.l.b16 %v957
        %v1054 = vunpack.c.h.b16 %v957
        %v1055 = vunpack.c.l.b16 %v958
        %v1056 = vunpack.c.h.b16 %v958
        %v1057 = vunpack.c.l.b16 %v959
        %v1058 = vunpack.c.h.b16 %v959
        %v1059 = vunpack.c.l.b16 %v960
        %v1060 = vunpack.c.h.b16 %v960
        %v1061 = vunpack.c.l.b16 %v961
        %v1062 = vunpack.c.h.b16 %v961
        %v1063 = vunpack.c.l.b16 %v962
        %v1064 = vunpack.c.h.b16 %v962
        %v1065 = vunpack.c.l.b16 %v963
        %v1066 = vunpack.c.h.b16 %v963
        %v1067 = vunpack.c.l.b16 %v964
        %v1068 = vunpack.c.h.b16 %v964
        %v1069 = vunpack.c.l.b16 %v965
        %v1070 = vunpack.c.h.b16 %v965
        %v1071 = vunpack.c.l.b16 %v966
        %v1072 = vunpack.c.h.b16 %v966
        %v1073 = vunpack.c.l.b16 %v967
        %v1074 = vunpack.c.h.b16 %v967
        %v1075 = vunpack.c.l.b16 %v968
        %v1076 = vunpack.c.h.b16 %v968
        %v1077 = vunpack.c.l.b16 %v969
        %v1078 = vunpack.c.h.b16 %v969
        %v1079 = vunpack.c.l.b16 %v970
        %v1080 = vunpack.c.h.b16 %v970
        %v1081 = vunpack.c.l.b16 %v971
        %v1082 = vunpack.c.h.b16 %v971
        %v1083 = vunpack.c.l.b16 %v972
        %v1084 = vunpack.c.h.b16 %v972
        %v1085 = vunpack.c.l.b16 %v973
        %v1086 = vunpack.c.h.b16 %v973
        %v1087 = vunpack.c.l.b16 %v974
        %v1088 = vunpack.c.h.b16 %v974
        %v1089 = vpack.c.b16 %v1059, %v1049
        %v1090 = vpack.c.b16 %v1060, %v1050
        %v1091 = vpack.c.b16 %v1061, %v1051
        %v1092 = vpack.c.b16 %v1062, %v1052
        %v1093 = vpack.c.b16 %v1063, %v1053
        %v1094 = vpack.c.b16 %v1064, %v1054
        %v1095 = vpack.c.b16 %v1065, %v1055
        %v1096 = vpack.c.b16 %v1066, %v1056
        %v1097 = vpack.c.b16 %v1067, %v1057
        %v1098 = vpack.c.b16 %v1068, %v1058
        %v1099 = vpack.c.b16 %v1079, %v1069
        %v1100 = vpack.c.b16 %v1080, %v1070
        %v1101 = vpack.c.b16 %v1081, %v1071
        %v1102 = vpack.c.b16 %v1082, %v1072
        %v1103 = vpack.c.b16 %v1083, %v1073
        %v1104 = vpack.c.b16 %v1084, %v1074
        %v1105 = vpack.c.b16 %v1085, %v1075
        %v1106 = vpack.c.b16 %v1086, %v1076
        %v1107 = vpack.c.b16 %v1087, %v1077
        %v1108 = vpack.c.b16 %v1088, %v1078
        %v1130 = vsel %vm505, %v939, 0
        %v1133 = vsel %vm505, %v940, 0
        %v1136 = vsel %vm505, %v941, 0
        %v1139 = vsel %vm505, %v942, 0
        %v1142 = vsel %vm505, %v943, 0
        %v1145 = vsel %vm505, %v944, 0
        %v1148 = vsel %vm505, %v945, 0
        %v1151 = vsel %vm505, %v946, 0
        %v1154 = vsel %vm505, %v947, 0
        %v1157 = vsel %vm505, %v948, 0
        %v1160 = vsel %vm505, %v949, 0
        %v1163 = vsel %vm505, %v950, 0
        %v1166 = vsel %vm505, %v951, 0
        %v1169 = vsel %vm505, %v952, 0
        %v1172 = vsel %vm505, %v953, 0
        %v1175 = vsel %vm505, %v954, 0
        %1177 = vmatprep.subr.bf16.mxu0 0
        %1178 = vmatpush1.bf16.msra.mxu0 0
        %1179 = vmatprep.subr.bf16.mxu0 0
        %1180 = vmatpush1.bf16.msra.mxu0 0
        %1181 = vmatprep.subr.bf16.mxu0 0
        %1182 = vmatpush1.bf16.msra.mxu0 0
        %1183 = vmatprep.subr.bf16.mxu0 0
        %1184 = vmatpush1.bf16.msra.mxu0 0
        %1185 = vmatprep.subr.bf16.mxu0 0
        %1186 = vmatpush1.bf16.msra.mxu0 0
        %1187 = vmatprep.subr.bf16.mxu0 0
        %1188 = vmatpush1.bf16.msra.mxu0 0
        %1189 = vmatprep.subr.bf16.mxu0 %v1100
        %1190 = vmatpush1.bf16.msra.mxu0 %v1099
        %1191 = vmatprep.subr.bf16.mxu0 %v1090
        %1192 = vmatpush1.bf16.msra.mxu0 %v1089
        %1193 = vmatprep.subr.bf16.mxu0 0
        %1194 = vmatpush2.bf16.msra.mxu0 0
        %1195 = vmatprep.subr.bf16.mxu0 0
        %1196 = vmatpush2.bf16.msra.mxu0 0
        %1197 = vmatprep.subr.bf16.mxu0 0
        %1198 = vmatpush2.bf16.msra.mxu0 0
        %1199 = vmatprep.subr.bf16.mxu0 0
        %1200 = vmatpush2.bf16.msra.mxu0 0
        %1201 = vmatprep.subr.bf16.mxu0 0
        %1202 = vmatpush2.bf16.msra.mxu0 0
        %1203 = vmatprep.subr.bf16.mxu0 0
        %1204 = vmatpush2.bf16.msra.mxu0 0
        %1205 = vmatprep.subr.bf16.mxu0 0
        %1206 = vmatpush2.bf16.msra.mxu0 0
        %1207 = vmatprep.subr.bf16.mxu0 0
        %1208 = vmatpush2.bf16.msra.mxu0 0
        %1209 = vmatprep.mubr.bf16.mxu0 0
        %1210 = vmatmul.mubr.bf16.gmra.mxu0 %v1130
        %v1211 = vpop.f32.mrf.mxu0
        %v1212 = vadd.f32 %v982, %v1211
        %v1213 = vpop.f32.mrf.mxu0
        %v1214 = vadd.f32 %v986, %v1213
        %v1215 = vpop.f32.mrf.mxu0
        %v1216 = vadd.f32 %v982, %v1215
        %v1217 = vpop.f32.mrf.mxu0
        %v1218 = vadd.f32 %v986, %v1217
        %1219 = vmatprep.mubr.bf16.mxu0 0
        %1220 = vmatmul.mubr.bf16.gmra.mxu0 %v1133
        %v1221 = vpop.f32.mrf.mxu0
        %v1222 = vadd.f32 %v982, %v1221
        %v1223 = vpop.f32.mrf.mxu0
        %v1224 = vadd.f32 %v986, %v1223
        %v1225 = vpop.f32.mrf.mxu0
        %v1226 = vadd.f32 %v982, %v1225
        %v1227 = vpop.f32.mrf.mxu0
        %v1228 = vadd.f32 %v986, %v1227
        %1229 = vmatprep.mubr.bf16.mxu0 0
        %1230 = vmatmul.mubr.bf16.gmra.mxu0 %v1136
        %v1231 = vpop.f32.mrf.mxu0
        %v1232 = vadd.f32 %v982, %v1231
        %v1233 = vpop.f32.mrf.mxu0
        %v1234 = vadd.f32 %v986, %v1233
        %v1235 = vpop.f32.mrf.mxu0
        %v1236 = vadd.f32 %v982, %v1235
        %v1237 = vpop.f32.mrf.mxu0
        %v1238 = vadd.f32 %v986, %v1237
        %1239 = vmatprep.mubr.bf16.mxu0 0
        %1240 = vmatmul.mubr.bf16.gmra.mxu0 %v1139
        %v1241 = vpop.f32.mrf.mxu0
        %v1242 = vadd.f32 %v982, %v1241
        %v1243 = vpop.f32.mrf.mxu0
        %v1244 = vadd.f32 %v986, %v1243
        %v1245 = vpop.f32.mrf.mxu0
        %v1246 = vadd.f32 %v982, %v1245
        %v1247 = vpop.f32.mrf.mxu0
        %v1248 = vadd.f32 %v986, %v1247
        %1249 = vmatprep.mubr.bf16.mxu0 0
        %1250 = vmatmul.mubr.bf16.gmra.mxu0 %v1142
        %v1251 = vpop.f32.mrf.mxu0
        %v1252 = vadd.f32 %v982, %v1251
        %v1253 = vpop.f32.mrf.mxu0
        %v1254 = vadd.f32 %v986, %v1253
        %v1255 = vpop.f32.mrf.mxu0
        %v1256 = vadd.f32 %v982, %v1255
        %v1257 = vpop.f32.mrf.mxu0
        %v1258 = vadd.f32 %v986, %v1257
        %1259 = vmatprep.mubr.bf16.mxu0 0
        %1260 = vmatmul.mubr.bf16.gmra.mxu0 %v1145
        %v1261 = vpop.f32.mrf.mxu0
        %v1262 = vadd.f32 %v982, %v1261
        %v1263 = vpop.f32.mrf.mxu0
        %v1264 = vadd.f32 %v986, %v1263
        %v1265 = vpop.f32.mrf.mxu0
        %v1266 = vadd.f32 %v982, %v1265
        %v1267 = vpop.f32.mrf.mxu0
        %v1268 = vadd.f32 %v986, %v1267
        %1269 = vmatprep.mubr.bf16.mxu0 0
        %1270 = vmatmul.mubr.bf16.gmra.mxu0 %v1148
        %v1271 = vpop.f32.mrf.mxu0
        %v1272 = vadd.f32 %v982, %v1271
        %v1273 = vpop.f32.mrf.mxu0
        %v1274 = vadd.f32 %v986, %v1273
        %v1275 = vpop.f32.mrf.mxu0
        %v1276 = vadd.f32 %v982, %v1275
        %v1277 = vpop.f32.mrf.mxu0
        %v1278 = vadd.f32 %v986, %v1277
        %1279 = vmatprep.mubr.bf16.mxu0 0
        %1280 = vmatmul.mubr.bf16.gmra.mxu0 %v1151
        %v1281 = vpop.f32.mrf.mxu0
        %v1282 = vadd.f32 %v982, %v1281
        %v1283 = vpop.f32.mrf.mxu0
        %v1284 = vadd.f32 %v986, %v1283
        %v1285 = vpop.f32.mrf.mxu0
        %v1286 = vadd.f32 %v982, %v1285
        %v1287 = vpop.f32.mrf.mxu0
        %v1288 = vadd.f32 %v986, %v1287
        %1289 = vmatprep.mubr.bf16.mxu0 0
        %1290 = vmatmul.mubr.bf16.gmra.mxu0 %v1154
        %v1291 = vpop.f32.mrf.mxu0
        %v1292 = vadd.f32 %v982, %v1291
        %v1293 = vpop.f32.mrf.mxu0
        %v1294 = vadd.f32 %v986, %v1293
        %v1295 = vpop.f32.mrf.mxu0
        %v1296 = vadd.f32 %v982, %v1295
        %v1297 = vpop.f32.mrf.mxu0
        %v1298 = vadd.f32 %v986, %v1297
        %1299 = vmatprep.mubr.bf16.mxu0 0
        %1300 = vmatmul.mubr.bf16.gmra.mxu0 %v1157
        %v1301 = vpop.f32.mrf.mxu0
        %v1302 = vadd.f32 %v982, %v1301
        %v1303 = vpop.f32.mrf.mxu0
        %v1304 = vadd.f32 %v986, %v1303
        %v1305 = vpop.f32.mrf.mxu0
        %v1306 = vadd.f32 %v982, %v1305
        %v1307 = vpop.f32.mrf.mxu0
        %v1308 = vadd.f32 %v986, %v1307
        %1309 = vmatprep.mubr.bf16.mxu0 0
        %1310 = vmatmul.mubr.bf16.gmra.mxu0 %v1160
        %v1311 = vpop.f32.mrf.mxu0
        %v1312 = vadd.f32 %v982, %v1311
        %v1313 = vpop.f32.mrf.mxu0
        %v1314 = vadd.f32 %v986, %v1313
        %v1315 = vpop.f32.mrf.mxu0
        %v1316 = vadd.f32 %v982, %v1315
        %v1317 = vpop.f32.mrf.mxu0
        %v1318 = vadd.f32 %v986, %v1317
        %1319 = vmatprep.mubr.bf16.mxu0 0
        %1320 = vmatmul.mubr.bf16.gmra.mxu0 %v1163
        %v1321 = vpop.f32.mrf.mxu0
        %v1322 = vadd.f32 %v982, %v1321
        %v1323 = vpop.f32.mrf.mxu0
        %v1324 = vadd.f32 %v986, %v1323
        %v1325 = vpop.f32.mrf.mxu0
        %v1326 = vadd.f32 %v982, %v1325
        %v1327 = vpop.f32.mrf.mxu0
        %v1328 = vadd.f32 %v986, %v1327
        %1329 = vmatprep.mubr.bf16.mxu0 0
        %1330 = vmatmul.mubr.bf16.gmra.mxu0 %v1166
        %v1331 = vpop.f32.mrf.mxu0
        %v1332 = vadd.f32 %v982, %v1331
        %v1333 = vpop.f32.mrf.mxu0
        %v1334 = vadd.f32 %v986, %v1333
        %v1335 = vpop.f32.mrf.mxu0
        %v1336 = vadd.f32 %v982, %v1335
        %v1337 = vpop.f32.mrf.mxu0
        %v1338 = vadd.f32 %v986, %v1337
        %1339 = vmatprep.mubr.bf16.mxu0 0
        %1340 = vmatmul.mubr.bf16.gmra.mxu0 %v1169
        %v1341 = vpop.f32.mrf.mxu0
        %v1342 = vadd.f32 %v982, %v1341
        %v1343 = vpop.f32.mrf.mxu0
        %v1344 = vadd.f32 %v986, %v1343
        %v1345 = vpop.f32.mrf.mxu0
        %v1346 = vadd.f32 %v982, %v1345
        %v1347 = vpop.f32.mrf.mxu0
        %v1348 = vadd.f32 %v986, %v1347
        %1349 = vmatprep.mubr.bf16.mxu0 0
        %1350 = vmatmul.mubr.bf16.gmra.mxu0 %v1172
        %v1351 = vpop.f32.mrf.mxu0
        %v1352 = vadd.f32 %v982, %v1351
        %v1353 = vpop.f32.mrf.mxu0
        %v1354 = vadd.f32 %v986, %v1353
        %v1355 = vpop.f32.mrf.mxu0
        %v1356 = vadd.f32 %v982, %v1355
        %v1357 = vpop.f32.mrf.mxu0
        %v1358 = vadd.f32 %v986, %v1357
        %1359 = vmatprep.mubr.bf16.mxu0 0
        %1360 = vmatmul.mubr.bf16.gmra.mxu0 %v1175
        %v1361 = vpop.f32.mrf.mxu0
        %v1362 = vadd.f32 %v982, %v1361
        %v1363 = vpop.f32.mrf.mxu0
        %v1364 = vadd.f32 %v986, %v1363
        %v1365 = vpop.f32.mrf.mxu0
        %v1366 = vadd.f32 %v982, %v1365
        %v1367 = vpop.f32.mrf.mxu0
        %v1368 = vadd.f32 %v986, %v1367
        %1369 = vdwg.mxu0
        %1370 = vmatprep.subr.bf16.mxu0 0
        %1371 = vmatpush1.bf16.msra.mxu0 0
        %1372 = vmatprep.subr.bf16.mxu0 0
        %1373 = vmatpush1.bf16.msra.mxu0 0
        %1374 = vmatprep.subr.bf16.mxu0 0
        %1375 = vmatpush1.bf16.msra.mxu0 0
        %1376 = vmatprep.subr.bf16.mxu0 0
        %1377 = vmatpush1.bf16.msra.mxu0 0
        %1378 = vmatprep.subr.bf16.mxu0 0
        %1379 = vmatpush1.bf16.msra.mxu0 0
        %1380 = vmatprep.subr.bf16.mxu0 0
        %1381 = vmatpush1.bf16.msra.mxu0 0
        %1382 = vmatprep.subr.bf16.mxu0 %v1102
        %1383 = vmatpush1.bf16.msra.mxu0 %v1101
        %1384 = vmatprep.subr.bf16.mxu0 %v1092
        %1385 = vmatpush1.bf16.msra.mxu0 %v1091
        %1386 = vmatprep.subr.bf16.mxu0 0
        %1387 = vmatpush2.bf16.msra.mxu0 0
        %1388 = vmatprep.subr.bf16.mxu0 0
        %1389 = vmatpush2.bf16.msra.mxu0 0
        %1390 = vmatprep.subr.bf16.mxu0 0
        %1391 = vmatpush2.bf16.msra.mxu0 0
        %1392 = vmatprep.subr.bf16.mxu0 0
        %1393 = vmatpush2.bf16.msra.mxu0 0
        %1394 = vmatprep.subr.bf16.mxu0 0
        %1395 = vmatpush2.bf16.msra.mxu0 0
        %1396 = vmatprep.subr.bf16.mxu0 0
        %1397 = vmatpush2.bf16.msra.mxu0 0
        %1398 = vmatprep.subr.bf16.mxu0 0
        %1399 = vmatpush2.bf16.msra.mxu0 0
        %1400 = vmatprep.subr.bf16.mxu0 0
        %1401 = vmatpush2.bf16.msra.mxu0 0
        %1402 = vmatprep.mubr.bf16.mxu0 0
        %1403 = vmatmul.mubr.bf16.gmra.mxu0 %v1130
        %v1404 = vpop.f32.mrf.mxu0
        %v1405 = vadd.f32 %v990, %v1404
        %v1406 = vpop.f32.mrf.mxu0
        %v1407 = vadd.f32 %v994, %v1406
        %v1408 = vpop.f32.mrf.mxu0
        %v1409 = vadd.f32 %v990, %v1408
        %v1410 = vpop.f32.mrf.mxu0
        %v1411 = vadd.f32 %v994, %v1410
        %1412 = vmatprep.mubr.bf16.mxu0 0
        %1413 = vmatmul.mubr.bf16.gmra.mxu0 %v1133
        %v1414 = vpop.f32.mrf.mxu0
        %v1415 = vadd.f32 %v990, %v1414
        %v1416 = vpop.f32.mrf.mxu0
        %v1417 = vadd.f32 %v994, %v1416
        %v1418 = vpop.f32.mrf.mxu0
        %v1419 = vadd.f32 %v990, %v1418
        %v1420 = vpop.f32.mrf.mxu0
        %v1421 = vadd.f32 %v994, %v1420
        %1422 = vmatprep.mubr.bf16.mxu0 0
        %1423 = vmatmul.mubr.bf16.gmra.mxu0 %v1136
        %v1424 = vpop.f32.mrf.mxu0
        %v1425 = vadd.f32 %v990, %v1424
        %v1426 = vpop.f32.mrf.mxu0
        %v1427 = vadd.f32 %v994, %v1426
        %v1428 = vpop.f32.mrf.mxu0
        %v1429 = vadd.f32 %v990, %v1428
        %v1430 = vpop.f32.mrf.mxu0
        %v1431 = vadd.f32 %v994, %v1430
        %1432 = vmatprep.mubr.bf16.mxu0 0
        %1433 = vmatmul.mubr.bf16.gmra.mxu0 %v1139
        %v1434 = vpop.f32.mrf.mxu0
        %v1435 = vadd.f32 %v990, %v1434
        %v1436 = vpop.f32.mrf.mxu0
        %v1437 = vadd.f32 %v994, %v1436
        %v1438 = vpop.f32.mrf.mxu0
        %v1439 = vadd.f32 %v990, %v1438
        %v1440 = vpop.f32.mrf.mxu0
        %v1441 = vadd.f32 %v994, %v1440
        %1442 = vmatprep.mubr.bf16.mxu0 0
        %1443 = vmatmul.mubr.bf16.gmra.mxu0 %v1142
        %v1444 = vpop.f32.mrf.mxu0
        %v1445 = vadd.f32 %v990, %v1444
        %v1446 = vpop.f32.mrf.mxu0
        %v1447 = vadd.f32 %v994, %v1446
        %v1448 = vpop.f32.mrf.mxu0
        %v1449 = vadd.f32 %v990, %v1448
        %v1450 = vpop.f32.mrf.mxu0
        %v1451 = vadd.f32 %v994, %v1450
        %1452 = vmatprep.mubr.bf16.mxu0 0
        %1453 = vmatmul.mubr.bf16.gmra.mxu0 %v1145
        %v1454 = vpop.f32.mrf.mxu0
        %v1455 = vadd.f32 %v990, %v1454
        %v1456 = vpop.f32.mrf.mxu0
        %v1457 = vadd.f32 %v994, %v1456
        %v1458 = vpop.f32.mrf.mxu0
        %v1459 = vadd.f32 %v990, %v1458
        %v1460 = vpop.f32.mrf.mxu0
        %v1461 = vadd.f32 %v994, %v1460
        %1462 = vmatprep.mubr.bf16.mxu0 0
        %1463 = vmatmul.mubr.bf16.gmra.mxu0 %v1148
        %v1464 = vpop.f32.mrf.mxu0
        %v1465 = vadd.f32 %v990, %v1464
        %v1466 = vpop.f32.mrf.mxu0
        %v1467 = vadd.f32 %v994, %v1466
        %v1468 = vpop.f32.mrf.mxu0
        %v1469 = vadd.f32 %v990, %v1468
        %v1470 = vpop.f32.mrf.mxu0
        %v1471 = vadd.f32 %v994, %v1470
        %1472 = vmatprep.mubr.bf16.mxu0 0
        %1473 = vmatmul.mubr.bf16.gmra.mxu0 %v1151
        %v1474 = vpop.f32.mrf.mxu0
        %v1475 = vadd.f32 %v990, %v1474
        %v1476 = vpop.f32.mrf.mxu0
        %v1477 = vadd.f32 %v994, %v1476
        %v1478 = vpop.f32.mrf.mxu0
        %v1479 = vadd.f32 %v990, %v1478
        %v1480 = vpop.f32.mrf.mxu0
        %v1481 = vadd.f32 %v994, %v1480
        %1482 = vmatprep.mubr.bf16.mxu0 0
        %1483 = vmatmul.mubr.bf16.gmra.mxu0 %v1154
        %v1484 = vpop.f32.mrf.mxu0
        %v1485 = vadd.f32 %v990, %v1484
        %v1486 = vpop.f32.mrf.mxu0
        %v1487 = vadd.f32 %v994, %v1486
        %v1488 = vpop.f32.mrf.mxu0
        %v1489 = vadd.f32 %v990, %v1488
        %v1490 = vpop.f32.mrf.mxu0
        %v1491 = vadd.f32 %v994, %v1490
        %1492 = vmatprep.mubr.bf16.mxu0 0
        %1493 = vmatmul.mubr.bf16.gmra.mxu0 %v1157
        %v1494 = vpop.f32.mrf.mxu0
        %v1495 = vadd.f32 %v990, %v1494
        %v1496 = vpop.f32.mrf.mxu0
        %v1497 = vadd.f32 %v994, %v1496
        %v1498 = vpop.f32.mrf.mxu0
        %v1499 = vadd.f32 %v990, %v1498
        %v1500 = vpop.f32.mrf.mxu0
        %v1501 = vadd.f32 %v994, %v1500
        %1502 = vmatprep.mubr.bf16.mxu0 0
        %1503 = vmatmul.mubr.bf16.gmra.mxu0 %v1160
        %v1504 = vpop.f32.mrf.mxu0
        %v1505 = vadd.f32 %v990, %v1504
        %v1506 = vpop.f32.mrf.mxu0
        %v1507 = vadd.f32 %v994, %v1506
        %v1508 = vpop.f32.mrf.mxu0
        %v1509 = vadd.f32 %v990, %v1508
        %v1510 = vpop.f32.mrf.mxu0
        %v1511 = vadd.f32 %v994, %v1510
        %1512 = vmatprep.mubr.bf16.mxu0 0
        %1513 = vmatmul.mubr.bf16.gmra.mxu0 %v1163
        %v1514 = vpop.f32.mrf.mxu0
        %v1515 = vadd.f32 %v990, %v1514
        %v1516 = vpop.f32.mrf.mxu0
        %v1517 = vadd.f32 %v994, %v1516
        %v1518 = vpop.f32.mrf.mxu0
        %v1519 = vadd.f32 %v990, %v1518
        %v1520 = vpop.f32.mrf.mxu0
        %v1521 = vadd.f32 %v994, %v1520
        %1522 = vmatprep.mubr.bf16.mxu0 0
        %1523 = vmatmul.mubr.bf16.gmra.mxu0 %v1166
        %v1524 = vpop.f32.mrf.mxu0
        %v1525 = vadd.f32 %v990, %v1524
        %v1526 = vpop.f32.mrf.mxu0
        %v1527 = vadd.f32 %v994, %v1526
        %v1528 = vpop.f32.mrf.mxu0
        %v1529 = vadd.f32 %v990, %v1528
        %v1530 = vpop.f32.mrf.mxu0
        %v1531 = vadd.f32 %v994, %v1530
        %1532 = vmatprep.mubr.bf16.mxu0 0
        %1533 = vmatmul.mubr.bf16.gmra.mxu0 %v1169
        %v1534 = vpop.f32.mrf.mxu0
        %v1535 = vadd.f32 %v990, %v1534
        %v1536 = vpop.f32.mrf.mxu0
        %v1537 = vadd.f32 %v994, %v1536
        %v1538 = vpop.f32.mrf.mxu0
        %v1539 = vadd.f32 %v990, %v1538
        %v1540 = vpop.f32.mrf.mxu0
        %v1541 = vadd.f32 %v994, %v1540
        %1542 = vmatprep.mubr.bf16.mxu0 0
        %1543 = vmatmul.mubr.bf16.gmra.mxu0 %v1172
        %v1544 = vpop.f32.mrf.mxu0
        %v1545 = vadd.f32 %v990, %v1544
        %v1546 = vpop.f32.mrf.mxu0
        %v1547 = vadd.f32 %v994, %v1546
        %v1548 = vpop.f32.mrf.mxu0
        %v1549 = vadd.f32 %v990, %v1548
        %v1550 = vpop.f32.mrf.mxu0
        %v1551 = vadd.f32 %v994, %v1550
        %1552 = vmatprep.mubr.bf16.mxu0 0
        %1553 = vmatmul.mubr.bf16.gmra.mxu0 %v1175
        %v1554 = vpop.f32.mrf.mxu0
        %v1555 = vadd.f32 %v990, %v1554
        %v1556 = vpop.f32.mrf.mxu0
        %v1557 = vadd.f32 %v994, %v1556
        %v1558 = vpop.f32.mrf.mxu0
        %v1559 = vadd.f32 %v990, %v1558
        %v1560 = vpop.f32.mrf.mxu0
        %v1561 = vadd.f32 %v994, %v1560
        %1562 = vdwg.mxu0
        %1563 = vmatprep.subr.bf16.mxu0 0
        %1564 = vmatpush1.bf16.msra.mxu0 0
        %1565 = vmatprep.subr.bf16.mxu0 0
        %1566 = vmatpush1.bf16.msra.mxu0 0
        %1567 = vmatprep.subr.bf16.mxu0 0
        %1568 = vmatpush1.bf16.msra.mxu0 0
        %1569 = vmatprep.subr.bf16.mxu0 0
        %1570 = vmatpush1.bf16.msra.mxu0 0
        %1571 = vmatprep.subr.bf16.mxu0 0
        %1572 = vmatpush1.bf16.msra.mxu0 0
        %1573 = vmatprep.subr.bf16.mxu0 0
        %1574 = vmatpush1.bf16.msra.mxu0 0
        %1575 = vmatprep.subr.bf16.mxu0 %v1104
        %1576 = vmatpush1.bf16.msra.mxu0 %v1103
        %1577 = vmatprep.subr.bf16.mxu0 %v1094
        %1578 = vmatpush1.bf16.msra.mxu0 %v1093
        %1579 = vmatprep.subr.bf16.mxu0 0
        %1580 = vmatpush2.bf16.msra.mxu0 0
        %1581 = vmatprep.subr.bf16.mxu0 0
        %1582 = vmatpush2.bf16.msra.mxu0 0
        %1583 = vmatprep.subr.bf16.mxu0 0
        %1584 = vmatpush2.bf16.msra.mxu0 0
        %1585 = vmatprep.subr.bf16.mxu0 0
        %1586 = vmatpush2.bf16.msra.mxu0 0
        %1587 = vmatprep.subr.bf16.mxu0 0
        %1588 = vmatpush2.bf16.msra.mxu0 0
        %1589 = vmatprep.subr.bf16.mxu0 0
        %1590 = vmatpush2.bf16.msra.mxu0 0
        %1591 = vmatprep.subr.bf16.mxu0 0
        %1592 = vmatpush2.bf16.msra.mxu0 0
        %1593 = vmatprep.subr.bf16.mxu0 0
        %1594 = vmatpush2.bf16.msra.mxu0 0
        %1595 = vmatprep.mubr.bf16.mxu0 0
        %1596 = vmatmul.mubr.bf16.gmra.mxu0 %v1130
        %v1597 = vpop.f32.mrf.mxu0
        %v1598 = vadd.f32 %v998, %v1597
        %v1599 = vpop.f32.mrf.mxu0
        %v1600 = vadd.f32 %v1002, %v1599
        %v1601 = vpop.f32.mrf.mxu0
        %v1602 = vadd.f32 %v998, %v1601
        %v1603 = vpop.f32.mrf.mxu0
        %v1604 = vadd.f32 %v1002, %v1603
        %1605 = vmatprep.mubr.bf16.mxu0 0
        %1606 = vmatmul.mubr.bf16.gmra.mxu0 %v1133
        %v1607 = vpop.f32.mrf.mxu0
        %v1608 = vadd.f32 %v998, %v1607
        %v1609 = vpop.f32.mrf.mxu0
        %v1610 = vadd.f32 %v1002, %v1609
        %v1611 = vpop.f32.mrf.mxu0
        %v1612 = vadd.f32 %v998, %v1611
        %v1613 = vpop.f32.mrf.mxu0
        %v1614 = vadd.f32 %v1002, %v1613
        %1615 = vmatprep.mubr.bf16.mxu0 0
        %1616 = vmatmul.mubr.bf16.gmra.mxu0 %v1136
        %v1617 = vpop.f32.mrf.mxu0
        %v1618 = vadd.f32 %v998, %v1617
        %v1619 = vpop.f32.mrf.mxu0
        %v1620 = vadd.f32 %v1002, %v1619
        %v1621 = vpop.f32.mrf.mxu0
        %v1622 = vadd.f32 %v998, %v1621
        %v1623 = vpop.f32.mrf.mxu0
        %v1624 = vadd.f32 %v1002, %v1623
        %1625 = vmatprep.mubr.bf16.mxu0 0
        %1626 = vmatmul.mubr.bf16.gmra.mxu0 %v1139
        %v1627 = vpop.f32.mrf.mxu0
        %v1628 = vadd.f32 %v998, %v1627
        %v1629 = vpop.f32.mrf.mxu0
        %v1630 = vadd.f32 %v1002, %v1629
        %v1631 = vpop.f32.mrf.mxu0
        %v1632 = vadd.f32 %v998, %v1631
        %v1633 = vpop.f32.mrf.mxu0
        %v1634 = vadd.f32 %v1002, %v1633
        %1635 = vmatprep.mubr.bf16.mxu0 0
        %1636 = vmatmul.mubr.bf16.gmra.mxu0 %v1142
        %v1637 = vpop.f32.mrf.mxu0
        %v1638 = vadd.f32 %v998, %v1637
        %v1639 = vpop.f32.mrf.mxu0
        %v1640 = vadd.f32 %v1002, %v1639
        %v1641 = vpop.f32.mrf.mxu0
        %v1642 = vadd.f32 %v998, %v1641
        %v1643 = vpop.f32.mrf.mxu0
        %v1644 = vadd.f32 %v1002, %v1643
        %1645 = vmatprep.mubr.bf16.mxu0 0
        %1646 = vmatmul.mubr.bf16.gmra.mxu0 %v1145
        %v1647 = vpop.f32.mrf.mxu0
        %v1648 = vadd.f32 %v998, %v1647
        %v1649 = vpop.f32.mrf.mxu0
        %v1650 = vadd.f32 %v1002, %v1649
        %v1651 = vpop.f32.mrf.mxu0
        %v1652 = vadd.f32 %v998, %v1651
        %v1653 = vpop.f32.mrf.mxu0
        %v1654 = vadd.f32 %v1002, %v1653
        %1655 = vmatprep.mubr.bf16.mxu0 0
        %1656 = vmatmul.mubr.bf16.gmra.mxu0 %v1148
        %v1657 = vpop.f32.mrf.mxu0
        %v1658 = vadd.f32 %v998, %v1657
        %v1659 = vpop.f32.mrf.mxu0
        %v1660 = vadd.f32 %v1002, %v1659
        %v1661 = vpop.f32.mrf.mxu0
        %v1662 = vadd.f32 %v998, %v1661
        %v1663 = vpop.f32.mrf.mxu0
        %v1664 = vadd.f32 %v1002, %v1663
        %1665 = vmatprep.mubr.bf16.mxu0 0
        %1666 = vmatmul.mubr.bf16.gmra.mxu0 %v1151
        %v1667 = vpop.f32.mrf.mxu0
        %v1668 = vadd.f32 %v998, %v1667
        %v1669 = vpop.f32.mrf.mxu0
        %v1670 = vadd.f32 %v1002, %v1669
        %v1671 = vpop.f32.mrf.mxu0
        %v1672 = vadd.f32 %v998, %v1671
        %v1673 = vpop.f32.mrf.mxu0
        %v1674 = vadd.f32 %v1002, %v1673
        %1675 = vmatprep.mubr.bf16.mxu0 0
        %1676 = vmatmul.mubr.bf16.gmra.mxu0 %v1154
        %v1677 = vpop.f32.mrf.mxu0
        %v1678 = vadd.f32 %v998, %v1677
        %v1679 = vpop.f32.mrf.mxu0
        %v1680 = vadd.f32 %v1002, %v1679
        %v1681 = vpop.f32.mrf.mxu0
        %v1682 = vadd.f32 %v998, %v1681
        %v1683 = vpop.f32.mrf.mxu0
        %v1684 = vadd.f32 %v1002, %v1683
        %1685 = vmatprep.mubr.bf16.mxu0 0
        %1686 = vmatmul.mubr.bf16.gmra.mxu0 %v1157
        %v1687 = vpop.f32.mrf.mxu0
        %v1688 = vadd.f32 %v998, %v1687
        %v1689 = vpop.f32.mrf.mxu0
        %v1690 = vadd.f32 %v1002, %v1689
        %v1691 = vpop.f32.mrf.mxu0
        %v1692 = vadd.f32 %v998, %v1691
        %v1693 = vpop.f32.mrf.mxu0
        %v1694 = vadd.f32 %v1002, %v1693
        %1695 = vmatprep.mubr.bf16.mxu0 0
        %1696 = vmatmul.mubr.bf16.gmra.mxu0 %v1160
        %v1697 = vpop.f32.mrf.mxu0
        %v1698 = vadd.f32 %v998, %v1697
        %v1699 = vpop.f32.mrf.mxu0
        %v1700 = vadd.f32 %v1002, %v1699
        %v1701 = vpop.f32.mrf.mxu0
        %v1702 = vadd.f32 %v998, %v1701
        %v1703 = vpop.f32.mrf.mxu0
        %v1704 = vadd.f32 %v1002, %v1703
        %1705 = vmatprep.mubr.bf16.mxu0 0
        %1706 = vmatmul.mubr.bf16.gmra.mxu0 %v1163
        %v1707 = vpop.f32.mrf.mxu0
        %v1708 = vadd.f32 %v998, %v1707
        %v1709 = vpop.f32.mrf.mxu0
        %v1710 = vadd.f32 %v1002, %v1709
        %v1711 = vpop.f32.mrf.mxu0
        %v1712 = vadd.f32 %v998, %v1711
        %v1713 = vpop.f32.mrf.mxu0
        %v1714 = vadd.f32 %v1002, %v1713
        %1715 = vmatprep.mubr.bf16.mxu0 0
        %1716 = vmatmul.mubr.bf16.gmra.mxu0 %v1166
        %v1717 = vpop.f32.mrf.mxu0
        %v1718 = vadd.f32 %v998, %v1717
        %v1719 = vpop.f32.mrf.mxu0
        %v1720 = vadd.f32 %v1002, %v1719
        %v1721 = vpop.f32.mrf.mxu0
        %v1722 = vadd.f32 %v998, %v1721
        %v1723 = vpop.f32.mrf.mxu0
        %v1724 = vadd.f32 %v1002, %v1723
        %1725 = vmatprep.mubr.bf16.mxu0 0
        %1726 = vmatmul.mubr.bf16.gmra.mxu0 %v1169
        %v1727 = vpop.f32.mrf.mxu0
        %v1728 = vadd.f32 %v998, %v1727
        %v1729 = vpop.f32.mrf.mxu0
        %v1730 = vadd.f32 %v1002, %v1729
        %v1731 = vpop.f32.mrf.mxu0
        %v1732 = vadd.f32 %v998, %v1731
        %v1733 = vpop.f32.mrf.mxu0
        %v1734 = vadd.f32 %v1002, %v1733
        %1735 = vmatprep.mubr.bf16.mxu0 0
        %1736 = vmatmul.mubr.bf16.gmra.mxu0 %v1172
        %v1737 = vpop.f32.mrf.mxu0
        %v1738 = vadd.f32 %v998, %v1737
        %v1739 = vpop.f32.mrf.mxu0
        %v1740 = vadd.f32 %v1002, %v1739
        %v1741 = vpop.f32.mrf.mxu0
        %v1742 = vadd.f32 %v998, %v1741
        %v1743 = vpop.f32.mrf.mxu0
        %v1744 = vadd.f32 %v1002, %v1743
        %1745 = vmatprep.mubr.bf16.mxu0 0
        %1746 = vmatmul.mubr.bf16.gmra.mxu0 %v1175
        %v1747 = vpop.f32.mrf.mxu0
        %v1748 = vadd.f32 %v998, %v1747
        %v1749 = vpop.f32.mrf.mxu0
        %v1750 = vadd.f32 %v1002, %v1749
        %v1751 = vpop.f32.mrf.mxu0
        %v1752 = vadd.f32 %v998, %v1751
        %v1753 = vpop.f32.mrf.mxu0
        %v1754 = vadd.f32 %v1002, %v1753
        %1755 = vdwg.mxu0
        %1756 = vmatprep.subr.bf16.mxu0 0
        %1757 = vmatpush1.bf16.msra.mxu0 0
        %1758 = vmatprep.subr.bf16.mxu0 0
        %1759 = vmatpush1.bf16.msra.mxu0 0
        %1760 = vmatprep.subr.bf16.mxu0 0
        %1761 = vmatpush1.bf16.msra.mxu0 0
        %1762 = vmatprep.subr.bf16.mxu0 0
        %1763 = vmatpush1.bf16.msra.mxu0 0
        %1764 = vmatprep.subr.bf16.mxu0 0
        %1765 = vmatpush1.bf16.msra.mxu0 0
        %1766 = vmatprep.subr.bf16.mxu0 0
        %1767 = vmatpush1.bf16.msra.mxu0 0
        %1768 = vmatprep.subr.bf16.mxu0 %v1106
        %1769 = vmatpush1.bf16.msra.mxu0 %v1105
        %1770 = vmatprep.subr.bf16.mxu0 %v1096
        %1771 = vmatpush1.bf16.msra.mxu0 %v1095
        %1772 = vmatprep.subr.bf16.mxu0 0
        %1773 = vmatpush2.bf16.msra.mxu0 0
        %1774 = vmatprep.subr.bf16.mxu0 0
        %1775 = vmatpush2.bf16.msra.mxu0 0
        %1776 = vmatprep.subr.bf16.mxu0 0
        %1777 = vmatpush2.bf16.msra.mxu0 0
        %1778 = vmatprep.subr.bf16.mxu0 0
        %1779 = vmatpush2.bf16.msra.mxu0 0
        %1780 = vmatprep.subr.bf16.mxu0 0
        %1781 = vmatpush2.bf16.msra.mxu0 0
        %1782 = vmatprep.subr.bf16.mxu0 0
        %1783 = vmatpush2.bf16.msra.mxu0 0
        %1784 = vmatprep.subr.bf16.mxu0 0
        %1785 = vmatpush2.bf16.msra.mxu0 0
        %1786 = vmatprep.subr.bf16.mxu0 0
        %1787 = vmatpush2.bf16.msra.mxu0 0
        %1788 = vmatprep.mubr.bf16.mxu0 0
        %1789 = vmatmul.mubr.bf16.gmra.mxu0 %v1130
        %v1790 = vpop.f32.mrf.mxu0
        %v1791 = vadd.f32 %v1006, %v1790
        %v1792 = vpop.f32.mrf.mxu0
        %v1793 = vadd.f32 %v1010, %v1792
        %v1794 = vpop.f32.mrf.mxu0
        %v1795 = vadd.f32 %v1006, %v1794
        %v1796 = vpop.f32.mrf.mxu0
        %v1797 = vadd.f32 %v1010, %v1796
        %1798 = vmatprep.mubr.bf16.mxu0 0
        %1799 = vmatmul.mubr.bf16.gmra.mxu0 %v1133
        %v1800 = vpop.f32.mrf.mxu0
        %v1801 = vadd.f32 %v1006, %v1800
        %v1802 = vpop.f32.mrf.mxu0
        %v1803 = vadd.f32 %v1010, %v1802
        %v1804 = vpop.f32.mrf.mxu0
        %v1805 = vadd.f32 %v1006, %v1804
        %v1806 = vpop.f32.mrf.mxu0
        %v1807 = vadd.f32 %v1010, %v1806
        %1808 = vmatprep.mubr.bf16.mxu0 0
        %1809 = vmatmul.mubr.bf16.gmra.mxu0 %v1136
        %v1810 = vpop.f32.mrf.mxu0
        %v1811 = vadd.f32 %v1006, %v1810
        %v1812 = vpop.f32.mrf.mxu0
        %v1813 = vadd.f32 %v1010, %v1812
        %v1814 = vpop.f32.mrf.mxu0
        %v1815 = vadd.f32 %v1006, %v1814
        %v1816 = vpop.f32.mrf.mxu0
        %v1817 = vadd.f32 %v1010, %v1816
        %1818 = vmatprep.mubr.bf16.mxu0 0
        %1819 = vmatmul.mubr.bf16.gmra.mxu0 %v1139
        %v1820 = vpop.f32.mrf.mxu0
        %v1821 = vadd.f32 %v1006, %v1820
        %v1822 = vpop.f32.mrf.mxu0
        %v1823 = vadd.f32 %v1010, %v1822
        %v1824 = vpop.f32.mrf.mxu0
        %v1825 = vadd.f32 %v1006, %v1824
        %v1826 = vpop.f32.mrf.mxu0
        %v1827 = vadd.f32 %v1010, %v1826
        %1828 = vmatprep.mubr.bf16.mxu0 0
        %1829 = vmatmul.mubr.bf16.gmra.mxu0 %v1142
        %v1830 = vpop.f32.mrf.mxu0
        %v1831 = vadd.f32 %v1006, %v1830
        %v1832 = vpop.f32.mrf.mxu0
        %v1833 = vadd.f32 %v1010, %v1832
        %v1834 = vpop.f32.mrf.mxu0
        %v1835 = vadd.f32 %v1006, %v1834
        %v1836 = vpop.f32.mrf.mxu0
        %v1837 = vadd.f32 %v1010, %v1836
        %1838 = vmatprep.mubr.bf16.mxu0 0
        %1839 = vmatmul.mubr.bf16.gmra.mxu0 %v1145
        %v1840 = vpop.f32.mrf.mxu0
        %v1841 = vadd.f32 %v1006, %v1840
        %v1842 = vpop.f32.mrf.mxu0
        %v1843 = vadd.f32 %v1010, %v1842
        %v1844 = vpop.f32.mrf.mxu0
        %v1845 = vadd.f32 %v1006, %v1844
        %v1846 = vpop.f32.mrf.mxu0
        %v1847 = vadd.f32 %v1010, %v1846
        %1848 = vmatprep.mubr.bf16.mxu0 0
        %1849 = vmatmul.mubr.bf16.gmra.mxu0 %v1148
        %v1850 = vpop.f32.mrf.mxu0
        %v1851 = vadd.f32 %v1006, %v1850
        %v1852 = vpop.f32.mrf.mxu0
        %v1853 = vadd.f32 %v1010, %v1852
        %v1854 = vpop.f32.mrf.mxu0
        %v1855 = vadd.f32 %v1006, %v1854
        %v1856 = vpop.f32.mrf.mxu0
        %v1857 = vadd.f32 %v1010, %v1856
        %1858 = vmatprep.mubr.bf16.mxu0 0
        %1859 = vmatmul.mubr.bf16.gmra.mxu0 %v1151
        %v1860 = vpop.f32.mrf.mxu0
        %v1861 = vadd.f32 %v1006, %v1860
        %v1862 = vpop.f32.mrf.mxu0
        %v1863 = vadd.f32 %v1010, %v1862
        %v1864 = vpop.f32.mrf.mxu0
        %v1865 = vadd.f32 %v1006, %v1864
        %v1866 = vpop.f32.mrf.mxu0
        %v1867 = vadd.f32 %v1010, %v1866
        %1868 = vmatprep.mubr.bf16.mxu0 0
        %1869 = vmatmul.mubr.bf16.gmra.mxu0 %v1154
        %v1870 = vpop.f32.mrf.mxu0
        %v1871 = vadd.f32 %v1006, %v1870
        %v1872 = vpop.f32.mrf.mxu0
        %v1873 = vadd.f32 %v1010, %v1872
        %v1874 = vpop.f32.mrf.mxu0
        %v1875 = vadd.f32 %v1006, %v1874
        %v1876 = vpop.f32.mrf.mxu0
        %v1877 = vadd.f32 %v1010, %v1876
        %1878 = vmatprep.mubr.bf16.mxu0 0
        %1879 = vmatmul.mubr.bf16.gmra.mxu0 %v1157
        %v1880 = vpop.f32.mrf.mxu0
        %v1881 = vadd.f32 %v1006, %v1880
        %v1882 = vpop.f32.mrf.mxu0
        %v1883 = vadd.f32 %v1010, %v1882
        %v1884 = vpop.f32.mrf.mxu0
        %v1885 = vadd.f32 %v1006, %v1884
        %v1886 = vpop.f32.mrf.mxu0
        %v1887 = vadd.f32 %v1010, %v1886
        %1888 = vmatprep.mubr.bf16.mxu0 0
        %1889 = vmatmul.mubr.bf16.gmra.mxu0 %v1160
        %v1890 = vpop.f32.mrf.mxu0
        %v1891 = vadd.f32 %v1006, %v1890
        %v1892 = vpop.f32.mrf.mxu0
        %v1893 = vadd.f32 %v1010, %v1892
        %v1894 = vpop.f32.mrf.mxu0
        %v1895 = vadd.f32 %v1006, %v1894
        %v1896 = vpop.f32.mrf.mxu0
        %v1897 = vadd.f32 %v1010, %v1896
        %1898 = vmatprep.mubr.bf16.mxu0 0
        %1899 = vmatmul.mubr.bf16.gmra.mxu0 %v1163
        %v1900 = vpop.f32.mrf.mxu0
        %v1901 = vadd.f32 %v1006, %v1900
        %v1902 = vpop.f32.mrf.mxu0
        %v1903 = vadd.f32 %v1010, %v1902
        %v1904 = vpop.f32.mrf.mxu0
        %v1905 = vadd.f32 %v1006, %v1904
        %v1906 = vpop.f32.mrf.mxu0
        %v1907 = vadd.f32 %v1010, %v1906
        %1908 = vmatprep.mubr.bf16.mxu0 0
        %1909 = vmatmul.mubr.bf16.gmra.mxu0 %v1166
        %v1910 = vpop.f32.mrf.mxu0
        %v1911 = vadd.f32 %v1006, %v1910
        %v1912 = vpop.f32.mrf.mxu0
        %v1913 = vadd.f32 %v1010, %v1912
        %v1914 = vpop.f32.mrf.mxu0
        %v1915 = vadd.f32 %v1006, %v1914
        %v1916 = vpop.f32.mrf.mxu0
        %v1917 = vadd.f32 %v1010, %v1916
        %1918 = vmatprep.mubr.bf16.mxu0 0
        %1919 = vmatmul.mubr.bf16.gmra.mxu0 %v1169
        %v1920 = vpop.f32.mrf.mxu0
        %v1921 = vadd.f32 %v1006, %v1920
        %v1922 = vpop.f32.mrf.mxu0
        %v1923 = vadd.f32 %v1010, %v1922
        %v1924 = vpop.f32.mrf.mxu0
        %v1925 = vadd.f32 %v1006, %v1924
        %v1926 = vpop.f32.mrf.mxu0
        %v1927 = vadd.f32 %v1010, %v1926
        %1928 = vmatprep.mubr.bf16.mxu0 0
        %1929 = vmatmul.mubr.bf16.gmra.mxu0 %v1172
        %v1930 = vpop.f32.mrf.mxu0
        %v1931 = vadd.f32 %v1006, %v1930
        %v1932 = vpop.f32.mrf.mxu0
        %v1933 = vadd.f32 %v1010, %v1932
        %v1934 = vpop.f32.mrf.mxu0
        %v1935 = vadd.f32 %v1006, %v1934
        %v1936 = vpop.f32.mrf.mxu0
        %v1937 = vadd.f32 %v1010, %v1936
        %1938 = vmatprep.mubr.bf16.mxu0 0
        %1939 = vmatmul.mubr.bf16.gmra.mxu0 %v1175
        %v1940 = vpop.f32.mrf.mxu0
        %v1941 = vadd.f32 %v1006, %v1940
        %v1942 = vpop.f32.mrf.mxu0
        %v1943 = vadd.f32 %v1010, %v1942
        %v1944 = vpop.f32.mrf.mxu0
        %v1945 = vadd.f32 %v1006, %v1944
        %v1946 = vpop.f32.mrf.mxu0
        %v1947 = vadd.f32 %v1010, %v1946
        %1948 = vdwg.mxu0
        %1949 = vmatprep.subr.bf16.mxu0 0
        %1950 = vmatpush1.bf16.msra.mxu0 0
        %1951 = vmatprep.subr.bf16.mxu0 0
        %1952 = vmatpush1.bf16.msra.mxu0 0
        %1953 = vmatprep.subr.bf16.mxu0 0
        %1954 = vmatpush1.bf16.msra.mxu0 0
        %1955 = vmatprep.subr.bf16.mxu0 0
        %1956 = vmatpush1.bf16.msra.mxu0 0
        %1957 = vmatprep.subr.bf16.mxu0 0
        %1958 = vmatpush1.bf16.msra.mxu0 0
        %1959 = vmatprep.subr.bf16.mxu0 0
        %1960 = vmatpush1.bf16.msra.mxu0 0
        %1961 = vmatprep.subr.bf16.mxu0 %v1108
        %1962 = vmatpush1.bf16.msra.mxu0 %v1107
        %1963 = vmatprep.subr.bf16.mxu0 %v1098
        %1964 = vmatpush1.bf16.msra.mxu0 %v1097
        %1965 = vmatprep.subr.bf16.mxu0 0
        %1966 = vmatpush2.bf16.msra.mxu0 0
        %1967 = vmatprep.subr.bf16.mxu0 0
        %1968 = vmatpush2.bf16.msra.mxu0 0
        %1969 = vmatprep.subr.bf16.mxu0 0
        %1970 = vmatpush2.bf16.msra.mxu0 0
        %1971 = vmatprep.subr.bf16.mxu0 0
        %1972 = vmatpush2.bf16.msra.mxu0 0
        %1973 = vmatprep.subr.bf16.mxu0 0
        %1974 = vmatpush2.bf16.msra.mxu0 0
        %1975 = vmatprep.subr.bf16.mxu0 0
        %1976 = vmatpush2.bf16.msra.mxu0 0
        %1977 = vmatprep.subr.bf16.mxu0 0
        %1978 = vmatpush2.bf16.msra.mxu0 0
        %1979 = vmatprep.subr.bf16.mxu0 0
        %1980 = vmatpush2.bf16.msra.mxu0 0
        %1981 = vmatprep.mubr.bf16.mxu0 0
        %1982 = vmatmul.mubr.bf16.gmra.mxu0 %v1130
        %v1983 = vpop.f32.mrf.mxu0
        %v1984 = vadd.f32 %v1014, %v1983
        %v1985 = vpop.f32.mrf.mxu0
        %v1986 = vadd.f32 %v1018, %v1985
        %v1987 = vpop.f32.mrf.mxu0
        %v1988 = vadd.f32 %v1014, %v1987
        %v1989 = vpop.f32.mrf.mxu0
        %v1990 = vadd.f32 %v1018, %v1989
        %1991 = vmatprep.mubr.bf16.mxu0 0
        %1992 = vmatmul.mubr.bf16.gmra.mxu0 %v1133
        %v1993 = vpop.f32.mrf.mxu0
        %v1994 = vadd.f32 %v1014, %v1993
        %v1995 = vpop.f32.mrf.mxu0
        %v1996 = vadd.f32 %v1018, %v1995
        %v1997 = vpop.f32.mrf.mxu0
        %v1998 = vadd.f32 %v1014, %v1997
        %v1999 = vpop.f32.mrf.mxu0
        %v2000 = vadd.f32 %v1018, %v1999
        %2001 = vmatprep.mubr.bf16.mxu0 0
        %2002 = vmatmul.mubr.bf16.gmra.mxu0 %v1136
        %v2003 = vpop.f32.mrf.mxu0
        %v2004 = vadd.f32 %v1014, %v2003
        %v2005 = vpop.f32.mrf.mxu0
        %v2006 = vadd.f32 %v1018, %v2005
        %v2007 = vpop.f32.mrf.mxu0
        %v2008 = vadd.f32 %v1014, %v2007
        %v2009 = vpop.f32.mrf.mxu0
        %v2010 = vadd.f32 %v1018, %v2009
        %2011 = vmatprep.mubr.bf16.mxu0 0
        %2012 = vmatmul.mubr.bf16.gmra.mxu0 %v1139
        %v2013 = vpop.f32.mrf.mxu0
        %v2014 = vadd.f32 %v1014, %v2013
        %v2015 = vpop.f32.mrf.mxu0
        %v2016 = vadd.f32 %v1018, %v2015
        %v2017 = vpop.f32.mrf.mxu0
        %v2018 = vadd.f32 %v1014, %v2017
        %v2019 = vpop.f32.mrf.mxu0
        %v2020 = vadd.f32 %v1018, %v2019
        %2021 = vmatprep.mubr.bf16.mxu0 0
        %2022 = vmatmul.mubr.bf16.gmra.mxu0 %v1142
        %v2023 = vpop.f32.mrf.mxu0
        %v2024 = vadd.f32 %v1014, %v2023
        %v2025 = vpop.f32.mrf.mxu0
        %v2026 = vadd.f32 %v1018, %v2025
        %v2027 = vpop.f32.mrf.mxu0
        %v2028 = vadd.f32 %v1014, %v2027
        %v2029 = vpop.f32.mrf.mxu0
        %v2030 = vadd.f32 %v1018, %v2029
        %2031 = vmatprep.mubr.bf16.mxu0 0
        %2032 = vmatmul.mubr.bf16.gmra.mxu0 %v1145
        %v2033 = vpop.f32.mrf.mxu0
        %v2034 = vadd.f32 %v1014, %v2033
        %v2035 = vpop.f32.mrf.mxu0
        %v2036 = vadd.f32 %v1018, %v2035
        %v2037 = vpop.f32.mrf.mxu0
        %v2038 = vadd.f32 %v1014, %v2037
        %v2039 = vpop.f32.mrf.mxu0
        %v2040 = vadd.f32 %v1018, %v2039
        %2041 = vmatprep.mubr.bf16.mxu0 0
        %2042 = vmatmul.mubr.bf16.gmra.mxu0 %v1148
        %v2043 = vpop.f32.mrf.mxu0
        %v2044 = vadd.f32 %v1014, %v2043
        %v2045 = vpop.f32.mrf.mxu0
        %v2046 = vadd.f32 %v1018, %v2045
        %v2047 = vpop.f32.mrf.mxu0
        %v2048 = vadd.f32 %v1014, %v2047
        %v2049 = vpop.f32.mrf.mxu0
        %v2050 = vadd.f32 %v1018, %v2049
        %2051 = vmatprep.mubr.bf16.mxu0 0
        %2052 = vmatmul.mubr.bf16.gmra.mxu0 %v1151
        %v2053 = vpop.f32.mrf.mxu0
        %v2054 = vadd.f32 %v1014, %v2053
        %v2055 = vpop.f32.mrf.mxu0
        %v2056 = vadd.f32 %v1018, %v2055
        %v2057 = vpop.f32.mrf.mxu0
        %v2058 = vadd.f32 %v1014, %v2057
        %v2059 = vpop.f32.mrf.mxu0
        %v2060 = vadd.f32 %v1018, %v2059
        %2061 = vmatprep.mubr.bf16.mxu0 0
        %2062 = vmatmul.mubr.bf16.gmra.mxu0 %v1154
        %v2063 = vpop.f32.mrf.mxu0
        %v2064 = vadd.f32 %v1014, %v2063
        %v2065 = vpop.f32.mrf.mxu0
        %v2066 = vadd.f32 %v1018, %v2065
        %v2067 = vpop.f32.mrf.mxu0
        %v2068 = vadd.f32 %v1014, %v2067
        %v2069 = vpop.f32.mrf.mxu0
        %v2070 = vadd.f32 %v1018, %v2069
        %2071 = vmatprep.mubr.bf16.mxu0 0
        %2072 = vmatmul.mubr.bf16.gmra.mxu0 %v1157
        %v2073 = vpop.f32.mrf.mxu0
        %v2074 = vadd.f32 %v1014, %v2073
        %v2075 = vpop.f32.mrf.mxu0
        %v2076 = vadd.f32 %v1018, %v2075
        %v2077 = vpop.f32.mrf.mxu0
        %v2078 = vadd.f32 %v1014, %v2077
        %v2079 = vpop.f32.mrf.mxu0
        %v2080 = vadd.f32 %v1018, %v2079
        %2081 = vmatprep.mubr.bf16.mxu0 0
        %2082 = vmatmul.mubr.bf16.gmra.mxu0 %v1160
        %v2083 = vpop.f32.mrf.mxu0
        %v2084 = vadd.f32 %v1014, %v2083
        %v2085 = vpop.f32.mrf.mxu0
        %v2086 = vadd.f32 %v1018, %v2085
        %v2087 = vpop.f32.mrf.mxu0
        %v2088 = vadd.f32 %v1014, %v2087
        %v2089 = vpop.f32.mrf.mxu0
        %v2090 = vadd.f32 %v1018, %v2089
        %2091 = vmatprep.mubr.bf16.mxu0 0
        %2092 = vmatmul.mubr.bf16.gmra.mxu0 %v1163
        %v2093 = vpop.f32.mrf.mxu0
        %v2094 = vadd.f32 %v1014, %v2093
        %v2095 = vpop.f32.mrf.mxu0
        %v2096 = vadd.f32 %v1018, %v2095
        %v2097 = vpop.f32.mrf.mxu0
        %v2098 = vadd.f32 %v1014, %v2097
        %v2099 = vpop.f32.mrf.mxu0
        %v2100 = vadd.f32 %v1018, %v2099
        %2101 = vmatprep.mubr.bf16.mxu0 0
        %2102 = vmatmul.mubr.bf16.gmra.mxu0 %v1166
        %v2103 = vpop.f32.mrf.mxu0
        %v2104 = vadd.f32 %v1014, %v2103
        %v2105 = vpop.f32.mrf.mxu0
        %v2106 = vadd.f32 %v1018, %v2105
        %v2107 = vpop.f32.mrf.mxu0
        %v2108 = vadd.f32 %v1014, %v2107
        %v2109 = vpop.f32.mrf.mxu0
        %v2110 = vadd.f32 %v1018, %v2109
        %2111 = vmatprep.mubr.bf16.mxu0 0
        %2112 = vmatmul.mubr.bf16.gmra.mxu0 %v1169
        %v2113 = vpop.f32.mrf.mxu0
        %v2114 = vadd.f32 %v1014, %v2113
        %v2115 = vpop.f32.mrf.mxu0
        %v2116 = vadd.f32 %v1018, %v2115
        %v2117 = vpop.f32.mrf.mxu0
        %v2118 = vadd.f32 %v1014, %v2117
        %v2119 = vpop.f32.mrf.mxu0
        %v2120 = vadd.f32 %v1018, %v2119
        %2121 = vmatprep.mubr.bf16.mxu0 0
        %2122 = vmatmul.mubr.bf16.gmra.mxu0 %v1172
        %v2123 = vpop.f32.mrf.mxu0
        %v2124 = vadd.f32 %v1014, %v2123
        %v2125 = vpop.f32.mrf.mxu0
        %v2126 = vadd.f32 %v1018, %v2125
        %v2127 = vpop.f32.mrf.mxu0
        %v2128 = vadd.f32 %v1014, %v2127
        %v2129 = vpop.f32.mrf.mxu0
        %v2130 = vadd.f32 %v1018, %v2129
        %2131 = vmatprep.mubr.bf16.mxu0 0
        %2132 = vmatmul.mubr.bf16.gmra.mxu0 %v1175
        %v2133 = vpop.f32.mrf.mxu0
        %v2134 = vadd.f32 %v1014, %v2133
        %v2135 = vpop.f32.mrf.mxu0
        %v2136 = vadd.f32 %v1018, %v2135
        %v2137 = vpop.f32.mrf.mxu0
        %v2138 = vadd.f32 %v1014, %v2137
        %v2139 = vpop.f32.mrf.mxu0
        %v2140 = vadd.f32 %v1018, %v2139
        %2141 = vdwg.mxu0
        %v2142 = vpack.c.bf16 %v1216, %v1212
        %v2143 = vpack.c.bf16 %v1218, %v1214
        %v2144 = vpack.c.bf16 %v1409, %v1405
        %v2145 = vpack.c.bf16 %v1411, %v1407
        %v2146 = vpack.c.bf16 %v1602, %v1598
        %v2147 = vpack.c.bf16 %v1604, %v1600
        %v2148 = vpack.c.bf16 %v1795, %v1791
        %v2149 = vpack.c.bf16 %v1797, %v1793
        %v2150 = vpack.c.bf16 %v1988, %v1984
        %v2151 = vpack.c.bf16 %v1990, %v1986
        %v2152 = vpack.c.bf16 %v1226, %v1222
        %v2153 = vpack.c.bf16 %v1228, %v1224
        %v2154 = vpack.c.bf16 %v1419, %v1415
        %v2155 = vpack.c.bf16 %v1421, %v1417
        %v2156 = vpack.c.bf16 %v1612, %v1608
        %v2157 = vpack.c.bf16 %v1614, %v1610
        %v2158 = vpack.c.bf16 %v1805, %v1801
        %v2159 = vpack.c.bf16 %v1807, %v1803
        %v2160 = vpack.c.bf16 %v1998, %v1994
        %v2161 = vpack.c.bf16 %v2000, %v1996
        %v2162 = vpack.c.bf16 %v1236, %v1232
        %v2163 = vpack.c.bf16 %v1238, %v1234
        %v2164 = vpack.c.bf16 %v1429, %v1425
        %v2165 = vpack.c.bf16 %v1431, %v1427
        %v2166 = vpack.c.bf16 %v1622, %v1618
        %v2167 = vpack.c.bf16 %v1624, %v1620
        %v2168 = vpack.c.bf16 %v1815, %v1811
        %v2169 = vpack.c.bf16 %v1817, %v1813
        %v2170 = vpack.c.bf16 %v2008, %v2004
        %v2171 = vpack.c.bf16 %v2010, %v2006
        %v2172 = vpack.c.bf16 %v1246, %v1242
        %v2173 = vpack.c.bf16 %v1248, %v1244
        %v2174 = vpack.c.bf16 %v1439, %v1435
        %v2175 = vpack.c.bf16 %v1441, %v1437
        %v2176 = vpack.c.bf16 %v1632, %v1628
        %v2177 = vpack.c.bf16 %v1634, %v1630
        %v2178 = vpack.c.bf16 %v1825, %v1821
        %v2179 = vpack.c.bf16 %v1827, %v1823
        %v2180 = vpack.c.bf16 %v2018, %v2014
        %v2181 = vpack.c.bf16 %v2020, %v2016
        %v2182 = vpack.c.bf16 %v1256, %v1252
        %v2183 = vpack.c.bf16 %v1258, %v1254
        %v2184 = vpack.c.bf16 %v1449, %v1445
        %v2185 = vpack.c.bf16 %v1451, %v1447
        %v2186 = vpack.c.bf16 %v1642, %v1638
        %v2187 = vpack.c.bf16 %v1644, %v1640
        %v2188 = vpack.c.bf16 %v1835, %v1831
        %v2189 = vpack.c.bf16 %v1837, %v1833
        %v2190 = vpack.c.bf16 %v2028, %v2024
        %v2191 = vpack.c.bf16 %v2030, %v2026
        %v2192 = vpack.c.bf16 %v1266, %v1262
        %v2193 = vpack.c.bf16 %v1268, %v1264
        %v2194 = vpack.c.bf16 %v1459, %v1455
        %v2195 = vpack.c.bf16 %v1461, %v1457
        %v2196 = vpack.c.bf16 %v1652, %v1648
        %v2197 = vpack.c.bf16 %v1654, %v1650
        %v2198 = vpack.c.bf16 %v1845, %v1841
        %v2199 = vpack.c.bf16 %v1847, %v1843
        %v2200 = vpack.c.bf16 %v2038, %v2034
        %v2201 = vpack.c.bf16 %v2040, %v2036
        %v2202 = vpack.c.bf16 %v1276, %v1272
        %v2203 = vpack.c.bf16 %v1278, %v1274
        %v2204 = vpack.c.bf16 %v1469, %v1465
        %v2205 = vpack.c.bf16 %v1471, %v1467
        %v2206 = vpack.c.bf16 %v1662, %v1658
        %v2207 = vpack.c.bf16 %v1664, %v1660
        %v2208 = vpack.c.bf16 %v1855, %v1851
        %v2209 = vpack.c.bf16 %v1857, %v1853
        %v2210 = vpack.c.bf16 %v2048, %v2044
        %v2211 = vpack.c.bf16 %v2050, %v2046
        %v2212 = vpack.c.bf16 %v1286, %v1282
        %v2213 = vpack.c.bf16 %v1288, %v1284
        %v2214 = vpack.c.bf16 %v1479, %v1475
        %v2215 = vpack.c.bf16 %v1481, %v1477
        %v2216 = vpack.c.bf16 %v1672, %v1668
        %v2217 = vpack.c.bf16 %v1674, %v1670
        %v2218 = vpack.c.bf16 %v1865, %v1861
        %v2219 = vpack.c.bf16 %v1867, %v1863
        %v2220 = vpack.c.bf16 %v2058, %v2054
        %v2221 = vpack.c.bf16 %v2060, %v2056
        %v2222 = vpack.c.bf16 %v1296, %v1292
        %v2223 = vpack.c.bf16 %v1298, %v1294
        %v2224 = vpack.c.bf16 %v1489, %v1485
        %v2225 = vpack.c.bf16 %v1491, %v1487
        %v2226 = vpack.c.bf16 %v1682, %v1678
        %v2227 = vpack.c.bf16 %v1684, %v1680
        %v2228 = vpack.c.bf16 %v1875, %v1871
        %v2229 = vpack.c.bf16 %v1877, %v1873
        %v2230 = vpack.c.bf16 %v2068, %v2064
        %v2231 = vpack.c.bf16 %v2070, %v2066
        %v2232 = vpack.c.bf16 %v1306, %v1302
        %v2233 = vpack.c.bf16 %v1308, %v1304
        %v2234 = vpack.c.bf16 %v1499, %v1495
        %v2235 = vpack.c.bf16 %v1501, %v1497
        %v2236 = vpack.c.bf16 %v1692, %v1688
        %v2237 = vpack.c.bf16 %v1694, %v1690
        %v2238 = vpack.c.bf16 %v1885, %v1881
        %v2239 = vpack.c.bf16 %v1887, %v1883
        %v2240 = vpack.c.bf16 %v2078, %v2074
        %v2241 = vpack.c.bf16 %v2080, %v2076
        %v2242 = vpack.c.bf16 %v1316, %v1312
        %v2243 = vpack.c.bf16 %v1318, %v1314
        %v2244 = vpack.c.bf16 %v1509, %v1505
        %v2245 = vpack.c.bf16 %v1511, %v1507
        %v2246 = vpack.c.bf16 %v1702, %v1698
        %v2247 = vpack.c.bf16 %v1704, %v1700
        %v2248 = vpack.c.bf16 %v1895, %v1891
        %v2249 = vpack.c.bf16 %v1897, %v1893
        %v2250 = vpack.c.bf16 %v2088, %v2084
        %v2251 = vpack.c.bf16 %v2090, %v2086
        %v2252 = vpack.c.bf16 %v1326, %v1322
        %v2253 = vpack.c.bf16 %v1328, %v1324
        %v2254 = vpack.c.bf16 %v1519, %v1515
        %v2255 = vpack.c.bf16 %v1521, %v1517
        %v2256 = vpack.c.bf16 %v1712, %v1708
        %v2257 = vpack.c.bf16 %v1714, %v1710
        %v2258 = vpack.c.bf16 %v1905, %v1901
        %v2259 = vpack.c.bf16 %v1907, %v1903
        %v2260 = vpack.c.bf16 %v2098, %v2094
        %v2261 = vpack.c.bf16 %v2100, %v2096
        %v2262 = vpack.c.bf16 %v1336, %v1332
        %v2263 = vpack.c.bf16 %v1338, %v1334
        %v2264 = vpack.c.bf16 %v1529, %v1525
        %v2265 = vpack.c.bf16 %v1531, %v1527
        %v2266 = vpack.c.bf16 %v1722, %v1718
        %v2267 = vpack.c.bf16 %v1724, %v1720
        %v2268 = vpack.c.bf16 %v1915, %v1911
        %v2269 = vpack.c.bf16 %v1917, %v1913
        %v2270 = vpack.c.bf16 %v2108, %v2104
        %v2271 = vpack.c.bf16 %v2110, %v2106
        %v2272 = vpack.c.bf16 %v1346, %v1342
        %v2273 = vpack.c.bf16 %v1348, %v1344
        %v2274 = vpack.c.bf16 %v1539, %v1535
        %v2275 = vpack.c.bf16 %v1541, %v1537
        %v2276 = vpack.c.bf16 %v1732, %v1728
        %v2277 = vpack.c.bf16 %v1734, %v1730
        %v2278 = vpack.c.bf16 %v1925, %v1921
        %v2279 = vpack.c.bf16 %v1927, %v1923
        %v2280 = vpack.c.bf16 %v2118, %v2114
        %v2281 = vpack.c.bf16 %v2120, %v2116
        %v2282 = vpack.c.bf16 %v1356, %v1352
        %v2283 = vpack.c.bf16 %v1358, %v1354
        %v2284 = vpack.c.bf16 %v1549, %v1545
        %v2285 = vpack.c.bf16 %v1551, %v1547
        %v2286 = vpack.c.bf16 %v1742, %v1738
        %v2287 = vpack.c.bf16 %v1744, %v1740
        %v2288 = vpack.c.bf16 %v1935, %v1931
        %v2289 = vpack.c.bf16 %v1937, %v1933
        %v2290 = vpack.c.bf16 %v2128, %v2124
        %v2291 = vpack.c.bf16 %v2130, %v2126
        %v2292 = vpack.c.bf16 %v1366, %v1362
        %v2293 = vpack.c.bf16 %v1368, %v1364
        %v2294 = vpack.c.bf16 %v1559, %v1555
        %v2295 = vpack.c.bf16 %v1561, %v1557
        %v2296 = vpack.c.bf16 %v1752, %v1748
        %v2297 = vpack.c.bf16 %v1754, %v1750
        %v2298 = vpack.c.bf16 %v1945, %v1941
        %v2299 = vpack.c.bf16 %v1947, %v1943
        %v2300 = vpack.c.bf16 %v2138, %v2134
        %v2301 = vpack.c.bf16 %v2140, %v2136
        %v2302 = vxor.u32 %v2142, 2147516416
        %v2303 = vxor.u32 %v2143, 2147516416
        %v2304 = vxor.u32 %v2144, 2147516416
        %v2305 = vxor.u32 %v2145, 2147516416
        %v2306 = vxor.u32 %v2146, 2147516416
        %v2307 = vxor.u32 %v2147, 2147516416
        %v2308 = vxor.u32 %v2148, 2147516416
        %v2309 = vxor.u32 %v2149, 2147516416
        %v2310 = vxor.u32 %v2150, 2147516416
        %v2311 = vxor.u32 %v2151, 2147516416
        %v2312 = vxor.u32 %v2152, 2147516416
        %v2313 = vxor.u32 %v2153, 2147516416
        %v2314 = vxor.u32 %v2154, 2147516416
        %v2315 = vxor.u32 %v2155, 2147516416
        %v2316 = vxor.u32 %v2156, 2147516416
        %v2317 = vxor.u32 %v2157, 2147516416
        %v2318 = vxor.u32 %v2158, 2147516416
        %v2319 = vxor.u32 %v2159, 2147516416
        %v2320 = vxor.u32 %v2160, 2147516416
        %v2321 = vxor.u32 %v2161, 2147516416
        %v2322 = vxor.u32 %v2162, 2147516416
        %v2323 = vxor.u32 %v2163, 2147516416
        %v2324 = vxor.u32 %v2164, 2147516416
        %v2325 = vxor.u32 %v2165, 2147516416
        %v2326 = vxor.u32 %v2166, 2147516416
        %v2327 = vxor.u32 %v2167, 2147516416
        %v2328 = vxor.u32 %v2168, 2147516416
        %v2329 = vxor.u32 %v2169, 2147516416
        %v2330 = vxor.u32 %v2170, 2147516416
        %v2331 = vxor.u32 %v2171, 2147516416
        %v2332 = vxor.u32 %v2172, 2147516416
        %v2333 = vxor.u32 %v2173, 2147516416
        %v2334 = vxor.u32 %v2174, 2147516416
        %v2335 = vxor.u32 %v2175, 2147516416
        %v2336 = vxor.u32 %v2176, 2147516416
        %v2337 = vxor.u32 %v2177, 2147516416
        %v2338 = vxor.u32 %v2178, 2147516416
        %v2339 = vxor.u32 %v2179, 2147516416
        %v2340 = vxor.u32 %v2180, 2147516416
        %v2341 = vxor.u32 %v2181, 2147516416
        %v2342 = vxor.u32 %v2182, 2147516416
        %v2343 = vxor.u32 %v2183, 2147516416
        %v2344 = vxor.u32 %v2184, 2147516416
        %v2345 = vxor.u32 %v2185, 2147516416
        %v2346 = vxor.u32 %v2186, 2147516416
        %v2347 = vxor.u32 %v2187, 2147516416
        %v2348 = vxor.u32 %v2188, 2147516416
        %v2349 = vxor.u32 %v2189, 2147516416
        %v2350 = vxor.u32 %v2190, 2147516416
        %v2351 = vxor.u32 %v2191, 2147516416
        %v2352 = vxor.u32 %v2192, 2147516416
        %v2353 = vxor.u32 %v2193, 2147516416
        %v2354 = vxor.u32 %v2194, 2147516416
        %v2355 = vxor.u32 %v2195, 2147516416
        %v2356 = vxor.u32 %v2196, 2147516416
        %v2357 = vxor.u32 %v2197, 2147516416
        %v2358 = vxor.u32 %v2198, 2147516416
        %v2359 = vxor.u32 %v2199, 2147516416
        %v2360 = vxor.u32 %v2200, 2147516416
        %v2361 = vxor.u32 %v2201, 2147516416
        %v2362 = vxor.u32 %v2202, 2147516416
        %v2363 = vxor.u32 %v2203, 2147516416
        %v2364 = vxor.u32 %v2204, 2147516416
        %v2365 = vxor.u32 %v2205, 2147516416
        %v2366 = vxor.u32 %v2206, 2147516416
        %v2367 = vxor.u32 %v2207, 2147516416
        %v2368 = vxor.u32 %v2208, 2147516416
        %v2369 = vxor.u32 %v2209, 2147516416
        %v2370 = vxor.u32 %v2210, 2147516416
        %v2371 = vxor.u32 %v2211, 2147516416
        %v2372 = vxor.u32 %v2212, 2147516416
        %v2373 = vxor.u32 %v2213, 2147516416
        %v2374 = vxor.u32 %v2214, 2147516416
        %v2375 = vxor.u32 %v2215, 2147516416
        %v2376 = vxor.u32 %v2216, 2147516416
        %v2377 = vxor.u32 %v2217, 2147516416
        %v2378 = vxor.u32 %v2218, 2147516416
        %v2379 = vxor.u32 %v2219, 2147516416
        %v2380 = vxor.u32 %v2220, 2147516416
        %v2381 = vxor.u32 %v2221, 2147516416
        %v2382 = vxor.u32 %v2222, 2147516416
        %v2383 = vxor.u32 %v2223, 2147516416
        %v2384 = vxor.u32 %v2224, 2147516416
        %v2385 = vxor.u32 %v2225, 2147516416
        %v2386 = vxor.u32 %v2226, 2147516416
        %v2387 = vxor.u32 %v2227, 2147516416
        %v2388 = vxor.u32 %v2228, 2147516416
        %v2389 = vxor.u32 %v2229, 2147516416
        %v2390 = vxor.u32 %v2230, 2147516416
        %v2391 = vxor.u32 %v2231, 2147516416
        %v2392 = vxor.u32 %v2232, 2147516416
        %v2393 = vxor.u32 %v2233, 2147516416
        %v2394 = vxor.u32 %v2234, 2147516416
        %v2395 = vxor.u32 %v2235, 2147516416
        %v2396 = vxor.u32 %v2236, 2147516416
        %v2397 = vxor.u32 %v2237, 2147516416
        %v2398 = vxor.u32 %v2238, 2147516416
        %v2399 = vxor.u32 %v2239, 2147516416
        %v2400 = vxor.u32 %v2240, 2147516416
        %v2401 = vxor.u32 %v2241, 2147516416
        %v2402 = vxor.u32 %v2242, 2147516416
        %v2403 = vxor.u32 %v2243, 2147516416
        %v2404 = vxor.u32 %v2244, 2147516416
        %v2405 = vxor.u32 %v2245, 2147516416
        %v2406 = vxor.u32 %v2246, 2147516416
        %v2407 = vxor.u32 %v2247, 2147516416
        %v2408 = vxor.u32 %v2248, 2147516416
        %v2409 = vxor.u32 %v2249, 2147516416
        %v2410 = vxor.u32 %v2250, 2147516416
        %v2411 = vxor.u32 %v2251, 2147516416
        %v2412 = vxor.u32 %v2252, 2147516416
        %v2413 = vxor.u32 %v2253, 2147516416
        %v2414 = vxor.u32 %v2254, 2147516416
        %v2415 = vxor.u32 %v2255, 2147516416
        %v2416 = vxor.u32 %v2256, 2147516416
        %v2417 = vxor.u32 %v2257, 2147516416
        %v2418 = vxor.u32 %v2258, 2147516416
        %v2419 = vxor.u32 %v2259, 2147516416
        %v2420 = vxor.u32 %v2260, 2147516416
        %v2421 = vxor.u32 %v2261, 2147516416
        %v2422 = vxor.u32 %v2262, 2147516416
        %v2423 = vxor.u32 %v2263, 2147516416
        %v2424 = vxor.u32 %v2264, 2147516416
        %v2425 = vxor.u32 %v2265, 2147516416
        %v2426 = vxor.u32 %v2266, 2147516416
        %v2427 = vxor.u32 %v2267, 2147516416
        %v2428 = vxor.u32 %v2268, 2147516416
        %v2429 = vxor.u32 %v2269, 2147516416
        %v2430 = vxor.u32 %v2270, 2147516416
        %v2431 = vxor.u32 %v2271, 2147516416
        %v2432 = vxor.u32 %v2272, 2147516416
        %v2433 = vxor.u32 %v2273, 2147516416
        %v2434 = vxor.u32 %v2274, 2147516416
        %v2435 = vxor.u32 %v2275, 2147516416
        %v2436 = vxor.u32 %v2276, 2147516416
        %v2437 = vxor.u32 %v2277, 2147516416
        %v2438 = vxor.u32 %v2278, 2147516416
        %v2439 = vxor.u32 %v2279, 2147516416
        %v2440 = vxor.u32 %v2280, 2147516416
        %v2441 = vxor.u32 %v2281, 2147516416
        %v2442 = vxor.u32 %v2282, 2147516416
        %v2443 = vxor.u32 %v2283, 2147516416
        %v2444 = vxor.u32 %v2284, 2147516416
        %v2445 = vxor.u32 %v2285, 2147516416
        %v2446 = vxor.u32 %v2286, 2147516416
        %v2447 = vxor.u32 %v2287, 2147516416
        %v2448 = vxor.u32 %v2288, 2147516416
        %v2449 = vxor.u32 %v2289, 2147516416
        %v2450 = vxor.u32 %v2290, 2147516416
        %v2451 = vxor.u32 %v2291, 2147516416
        %v2452 = vxor.u32 %v2292, 2147516416
        %v2453 = vxor.u32 %v2293, 2147516416
        %v2454 = vxor.u32 %v2294, 2147516416
        %v2455 = vxor.u32 %v2295, 2147516416
        %v2456 = vxor.u32 %v2296, 2147516416
        %v2457 = vxor.u32 %v2297, 2147516416
        %v2458 = vxor.u32 %v2298, 2147516416
        %v2459 = vxor.u32 %v2299, 2147516416
        %v2460 = vxor.u32 %v2300, 2147516416
        %v2461 = vxor.u32 %v2301, 2147516416
        %v2463 = vmul.bf16 %v2302, 1069105081
        %v2464 = vpow.bf16.pop %v2463
        %v2466 = vmul.bf16 %v2303, 1069105081
        %v2467 = vpow.bf16.pop %v2466
        %v2469 = vmul.bf16 %v2304, 1069105081
        %v2470 = vpow.bf16.pop %v2469
        %v2472 = vmul.bf16 %v2305, 1069105081
        %v2473 = vpow.bf16.pop %v2472
        %v2475 = vmul.bf16 %v2306, 1069105081
        %v2476 = vpow.bf16.pop %v2475
        %v2478 = vmul.bf16 %v2307, 1069105081
        %v2479 = vpow.bf16.pop %v2478
        %v2481 = vmul.bf16 %v2308, 1069105081
        %v2482 = vpow.bf16.pop %v2481
        %v2484 = vmul.bf16 %v2309, 1069105081
        %v2485 = vpow.bf16.pop %v2484
        %v2487 = vmul.bf16 %v2310, 1069105081
        %v2488 = vpow.bf16.pop %v2487
        %v2490 = vmul.bf16 %v2311, 1069105081
        %v2491 = vpow.bf16.pop %v2490
        %v2493 = vmul.bf16 %v2312, 1069105081
        %v2494 = vpow.bf16.pop %v2493
        %v2496 = vmul.bf16 %v2313, 1069105081
        %v2497 = vpow.bf16.pop %v2496
        %v2499 = vmul.bf16 %v2314, 1069105081
        %v2500 = vpow.bf16.pop %v2499
        %v2502 = vmul.bf16 %v2315, 1069105081
        %v2503 = vpow.bf16.pop %v2502
        %v2505 = vmul.bf16 %v2316, 1069105081
        %v2506 = vpow.bf16.pop %v2505
        %v2508 = vmul.bf16 %v2317, 1069105081
        %v2509 = vpow.bf16.pop %v2508
        %v2511 = vmul.bf16 %v2318, 1069105081
        %v2512 = vpow.bf16.pop %v2511
        %v2514 = vmul.bf16 %v2319, 1069105081
        %v2515 = vpow.bf16.pop %v2514
        %v2517 = vmul.bf16 %v2320, 1069105081
        %v2518 = vpow.bf16.pop %v2517
        %v2520 = vmul.bf16 %v2321, 1069105081
        %v2521 = vpow.bf16.pop %v2520
        %v2523 = vmul.bf16 %v2322, 1069105081
        %v2524 = vpow.bf16.pop %v2523
        %v2526 = vmul.bf16 %v2323, 1069105081
        %v2527 = vpow.bf16.pop %v2526
        %v2529 = vmul.bf16 %v2324, 1069105081
        %v2530 = vpow.bf16.pop %v2529
        %v2532 = vmul.bf16 %v2325, 1069105081
        %v2533 = vpow.bf16.pop %v2532
        %v2535 = vmul.bf16 %v2326, 1069105081
        %v2536 = vpow.bf16.pop %v2535
        %v2538 = vmul.bf16 %v2327, 1069105081
        %v2539 = vpow.bf16.pop %v2538
        %v2541 = vmul.bf16 %v2328, 1069105081
        %v2542 = vpow.bf16.pop %v2541
        %v2544 = vmul.bf16 %v2329, 1069105081
        %v2545 = vpow.bf16.pop %v2544
        %v2547 = vmul.bf16 %v2330, 1069105081
        %v2548 = vpow.bf16.pop %v2547
        %v2550 = vmul.bf16 %v2331, 1069105081
        %v2551 = vpow.bf16.pop %v2550
        %v2553 = vmul.bf16 %v2332, 1069105081
        %v2554 = vpow.bf16.pop %v2553
        %v2556 = vmul.bf16 %v2333, 1069105081
        %v2557 = vpow.bf16.pop %v2556
        %v2559 = vmul.bf16 %v2334, 1069105081
        %v2560 = vpow.bf16.pop %v2559
        %v2562 = vmul.bf16 %v2335, 1069105081
        %v2563 = vpow.bf16.pop %v2562
        %v2565 = vmul.bf16 %v2336, 1069105081
        %v2566 = vpow.bf16.pop %v2565
        %v2568 = vmul.bf16 %v2337, 1069105081
        %v2569 = vpow.bf16.pop %v2568
        %v2571 = vmul.bf16 %v2338, 1069105081
        %v2572 = vpow.bf16.pop %v2571
        %v2574 = vmul.bf16 %v2339, 1069105081
        %v2575 = vpow.bf16.pop %v2574
        %v2577 = vmul.bf16 %v2340, 1069105081
        %v2578 = vpow.bf16.pop %v2577
        %v2580 = vmul.bf16 %v2341, 1069105081
        %v2581 = vpow.bf16.pop %v2580
        %v2583 = vmul.bf16 %v2342, 1069105081
        %v2584 = vpow.bf16.pop %v2583
        %v2586 = vmul.bf16 %v2343, 1069105081
        %v2587 = vpow.bf16.pop %v2586
        %v2589 = vmul.bf16 %v2344, 1069105081
        %v2590 = vpow.bf16.pop %v2589
        %v2592 = vmul.bf16 %v2345, 1069105081
        %v2593 = vpow.bf16.pop %v2592
        %v2595 = vmul.bf16 %v2346, 1069105081
        %v2596 = vpow.bf16.pop %v2595
        %v2598 = vmul.bf16 %v2347, 1069105081
        %v2599 = vpow.bf16.pop %v2598
        %v2601 = vmul.bf16 %v2348, 1069105081
        %v2602 = vpow.bf16.pop %v2601
        %v2604 = vmul.bf16 %v2349, 1069105081
        %v2605 = vpow.bf16.pop %v2604
        %v2607 = vmul.bf16 %v2350, 1069105081
        %v2608 = vpow.bf16.pop %v2607
        %v2610 = vmul.bf16 %v2351, 1069105081
        %v2611 = vpow.bf16.pop %v2610
        %v2613 = vmul.bf16 %v2352, 1069105081
        %v2614 = vpow.bf16.pop %v2613
        %v2616 = vmul.bf16 %v2353, 1069105081
        %v2617 = vpow.bf16.pop %v2616
        %v2619 = vmul.bf16 %v2354, 1069105081
        %v2620 = vpow.bf16.pop %v2619
        %v2622 = vmul.bf16 %v2355, 1069105081
        %v2623 = vpow.bf16.pop %v2622
        %v2625 = vmul.bf16 %v2356, 1069105081
        %v2626 = vpow.bf16.pop %v2625
        %v2628 = vmul.bf16 %v2357, 1069105081
        %v2629 = vpow.bf16.pop %v2628
        %v2631 = vmul.bf16 %v2358, 1069105081
        %v2632 = vpow.bf16.pop %v2631
        %v2634 = vmul.bf16 %v2359, 1069105081
        %v2635 = vpow.bf16.pop %v2634
        %v2637 = vmul.bf16 %v2360, 1069105081
        %v2638 = vpow.bf16.pop %v2637
        %v2640 = vmul.bf16 %v2361, 1069105081
        %v2641 = vpow.bf16.pop %v2640
        %v2643 = vmul.bf16 %v2362, 1069105081
        %v2644 = vpow.bf16.pop %v2643
        %v2646 = vmul.bf16 %v2363, 1069105081
        %v2647 = vpow.bf16.pop %v2646
        %v2649 = vmul.bf16 %v2364, 1069105081
        %v2650 = vpow.bf16.pop %v2649
        %v2652 = vmul.bf16 %v2365, 1069105081
        %v2653 = vpow.bf16.pop %v2652
        %v2655 = vmul.bf16 %v2366, 1069105081
        %v2656 = vpow.bf16.pop %v2655
        %v2658 = vmul.bf16 %v2367, 1069105081
        %v2659 = vpow.bf16.pop %v2658
        %v2661 = vmul.bf16 %v2368, 1069105081
        %v2662 = vpow.bf16.pop %v2661
        %v2664 = vmul.bf16 %v2369, 1069105081
        %v2665 = vpow.bf16.pop %v2664
        %v2667 = vmul.bf16 %v2370, 1069105081
        %v2668 = vpow.bf16.pop %v2667
        %v2670 = vmul.bf16 %v2371, 1069105081
        %v2671 = vpow.bf16.pop %v2670
        %v2673 = vmul.bf16 %v2372, 1069105081
        %v2674 = vpow.bf16.pop %v2673
        %v2676 = vmul.bf16 %v2373, 1069105081
        %v2677 = vpow.bf16.pop %v2676
        %v2679 = vmul.bf16 %v2374, 1069105081
        %v2680 = vpow.bf16.pop %v2679
        %v2682 = vmul.bf16 %v2375, 1069105081
        %v2683 = vpow.bf16.pop %v2682
        %v2685 = vmul.bf16 %v2376, 1069105081
        %v2686 = vpow.bf16.pop %v2685
        %v2688 = vmul.bf16 %v2377, 1069105081
        %v2689 = vpow.bf16.pop %v2688
        %v2691 = vmul.bf16 %v2378, 1069105081
        %v2692 = vpow.bf16.pop %v2691
        %v2694 = vmul.bf16 %v2379, 1069105081
        %v2695 = vpow.bf16.pop %v2694
        %v2697 = vmul.bf16 %v2380, 1069105081
        %v2698 = vpow.bf16.pop %v2697
        %v2700 = vmul.bf16 %v2381, 1069105081
        %v2701 = vpow.bf16.pop %v2700
        %v2703 = vmul.bf16 %v2382, 1069105081
        %v2704 = vpow.bf16.pop %v2703
        %v2706 = vmul.bf16 %v2383, 1069105081
        %v2707 = vpow.bf16.pop %v2706
        %v2709 = vmul.bf16 %v2384, 1069105081
        %v2710 = vpow.bf16.pop %v2709
        %v2712 = vmul.bf16 %v2385, 1069105081
        %v2713 = vpow.bf16.pop %v2712
        %v2715 = vmul.bf16 %v2386, 1069105081
        %v2716 = vpow.bf16.pop %v2715
        %v2718 = vmul.bf16 %v2387, 1069105081
        %v2719 = vpow.bf16.pop %v2718
        %v2721 = vmul.bf16 %v2388, 1069105081
        %v2722 = vpow.bf16.pop %v2721
        %v2724 = vmul.bf16 %v2389, 1069105081
        %v2725 = vpow.bf16.pop %v2724
        %v2727 = vmul.bf16 %v2390, 1069105081
        %v2728 = vpow.bf16.pop %v2727
        %v2730 = vmul.bf16 %v2391, 1069105081
        %v2731 = vpow.bf16.pop %v2730
        %v2733 = vmul.bf16 %v2392, 1069105081
        %v2734 = vpow.bf16.pop %v2733
        %v2736 = vmul.bf16 %v2393, 1069105081
        %v2737 = vpow.bf16.pop %v2736
        %v2739 = vmul.bf16 %v2394, 1069105081
        %v2740 = vpow.bf16.pop %v2739
        %v2742 = vmul.bf16 %v2395, 1069105081
        %v2743 = vpow.bf16.pop %v2742
        %v2745 = vmul.bf16 %v2396, 1069105081
        %v2746 = vpow.bf16.pop %v2745
        %v2748 = vmul.bf16 %v2397, 1069105081
        %v2749 = vpow.bf16.pop %v2748
        %v2751 = vmul.bf16 %v2398, 1069105081
        %v2752 = vpow.bf16.pop %v2751
        %v2754 = vmul.bf16 %v2399, 1069105081
        %v2755 = vpow.bf16.pop %v2754
        %v2757 = vmul.bf16 %v2400, 1069105081
        %v2758 = vpow.bf16.pop %v2757
        %v2760 = vmul.bf16 %v2401, 1069105081
        %v2761 = vpow.bf16.pop %v2760
        %v2763 = vmul.bf16 %v2402, 1069105081
        %v2764 = vpow.bf16.pop %v2763
        %v2766 = vmul.bf16 %v2403, 1069105081
        %v2767 = vpow.bf16.pop %v2766
        %v2769 = vmul.bf16 %v2404, 1069105081
        %v2770 = vpow.bf16.pop %v2769
        %v2772 = vmul.bf16 %v2405, 1069105081
        %v2773 = vpow.bf16.pop %v2772
        %v2775 = vmul.bf16 %v2406, 1069105081
        %v2776 = vpow.bf16.pop %v2775
        %v2778 = vmul.bf16 %v2407, 1069105081
        %v2779 = vpow.bf16.pop %v2778
        %v2781 = vmul.bf16 %v2408, 1069105081
        %v2782 = vpow.bf16.pop %v2781
        %v2784 = vmul.bf16 %v2409, 1069105081
        %v2785 = vpow.bf16.pop %v2784
        %v2787 = vmul.bf16 %v2410, 1069105081
        %v2788 = vpow.bf16.pop %v2787
        %v2790 = vmul.bf16 %v2411, 1069105081
        %v2791 = vpow.bf16.pop %v2790
        %v2793 = vmul.bf16 %v2412, 1069105081
        %v2794 = vpow.bf16.pop %v2793
        %v2796 = vmul.bf16 %v2413, 1069105081
        %v2797 = vpow.bf16.pop %v2796
        %v2799 = vmul.bf16 %v2414, 1069105081
        %v2800 = vpow.bf16.pop %v2799
        %v2802 = vmul.bf16 %v2415, 1069105081
        %v2803 = vpow.bf16.pop %v2802
        %v2805 = vmul.bf16 %v2416, 1069105081
        %v2806 = vpow.bf16.pop %v2805
        %v2808 = vmul.bf16 %v2417, 1069105081
        %v2809 = vpow.bf16.pop %v2808
        %v2811 = vmul.bf16 %v2418, 1069105081
        %v2812 = vpow.bf16.pop %v2811
        %v2814 = vmul.bf16 %v2419, 1069105081
        %v2815 = vpow.bf16.pop %v2814
        %v2817 = vmul.bf16 %v2420, 1069105081
        %v2818 = vpow.bf16.pop %v2817
        %v2820 = vmul.bf16 %v2421, 1069105081
        %v2821 = vpow.bf16.pop %v2820
        %v2823 = vmul.bf16 %v2422, 1069105081
        %v2824 = vpow.bf16.pop %v2823
        %v2826 = vmul.bf16 %v2423, 1069105081
        %v2827 = vpow.bf16.pop %v2826
        %v2829 = vmul.bf16 %v2424, 1069105081
        %v2830 = vpow.bf16.pop %v2829
        %v2832 = vmul.bf16 %v2425, 1069105081
        %v2833 = vpow.bf16.pop %v2832
        %v2835 = vmul.bf16 %v2426, 1069105081
        %v2836 = vpow.bf16.pop %v2835
        %v2838 = vmul.bf16 %v2427, 1069105081
        %v2839 = vpow.bf16.pop %v2838
        %v2841 = vmul.bf16 %v2428, 1069105081
        %v2842 = vpow.bf16.pop %v2841
        %v2844 = vmul.bf16 %v2429, 1069105081
        %v2845 = vpow.bf16.pop %v2844
        %v2847 = vmul.bf16 %v2430, 1069105081
        %v2848 = vpow.bf16.pop %v2847
        %v2850 = vmul.bf16 %v2431, 1069105081
        %v2851 = vpow.bf16.pop %v2850
        %v2853 = vmul.bf16 %v2432, 1069105081
        %v2854 = vpow.bf16.pop %v2853
        %v2856 = vmul.bf16 %v2433, 1069105081
        %v2857 = vpow.bf16.pop %v2856
        %v2859 = vmul.bf16 %v2434, 1069105081
        %v2860 = vpow.bf16.pop %v2859
        %v2862 = vmul.bf16 %v2435, 1069105081
        %v2863 = vpow.bf16.pop %v2862
        %v2865 = vmul.bf16 %v2436, 1069105081
        %v2866 = vpow.bf16.pop %v2865
        %v2868 = vmul.bf16 %v2437, 1069105081
        %v2869 = vpow.bf16.pop %v2868
        %v2871 = vmul.bf16 %v2438, 1069105081
        %v2872 = vpow.bf16.pop %v2871
        %v2874 = vmul.bf16 %v2439, 1069105081
        %v2875 = vpow.bf16.pop %v2874
        %v2877 = vmul.bf16 %v2440, 1069105081
        %v2878 = vpow.bf16.pop %v2877
        %v2880 = vmul.bf16 %v2441, 1069105081
        %v2881 = vpow.bf16.pop %v2880
        %v2883 = vmul.bf16 %v2442, 1069105081
        %v2884 = vpow.bf16.pop %v2883
        %v2886 = vmul.bf16 %v2443, 1069105081
        %v2887 = vpow.bf16.pop %v2886
        %v2889 = vmul.bf16 %v2444, 1069105081
        %v2890 = vpow.bf16.pop %v2889
        %v2892 = vmul.bf16 %v2445, 1069105081
        %v2893 = vpow.bf16.pop %v2892
        %v2895 = vmul.bf16 %v2446, 1069105081
        %v2896 = vpow.bf16.pop %v2895
        %v2898 = vmul.bf16 %v2447, 1069105081
        %v2899 = vpow.bf16.pop %v2898
        %v2901 = vmul.bf16 %v2448, 1069105081
        %v2902 = vpow.bf16.pop %v2901
        %v2904 = vmul.bf16 %v2449, 1069105081
        %v2905 = vpow.bf16.pop %v2904
        %v2907 = vmul.bf16 %v2450, 1069105081
        %v2908 = vpow.bf16.pop %v2907
        %v2910 = vmul.bf16 %v2451, 1069105081
        %v2911 = vpow.bf16.pop %v2910
        %v2913 = vmul.bf16 %v2452, 1069105081
        %v2914 = vpow.bf16.pop %v2913
        %v2916 = vmul.bf16 %v2453, 1069105081
        %v2917 = vpow.bf16.pop %v2916
        %v2919 = vmul.bf16 %v2454, 1069105081
        %v2920 = vpow.bf16.pop %v2919
        %v2922 = vmul.bf16 %v2455, 1069105081
        %v2923 = vpow.bf16.pop %v2922
        %v2925 = vmul.bf16 %v2456, 1069105081
        %v2926 = vpow.bf16.pop %v2925
        %v2928 = vmul.bf16 %v2457, 1069105081
        %v2929 = vpow.bf16.pop %v2928
        %v2931 = vmul.bf16 %v2458, 1069105081
        %v2932 = vpow.bf16.pop %v2931
        %v2934 = vmul.bf16 %v2459, 1069105081
        %v2935 = vpow.bf16.pop %v2934
        %v2937 = vmul.bf16 %v2460, 1069105081
        %v2938 = vpow.bf16.pop %v2937
        %v2940 = vmul.bf16 %v2461, 1069105081
        %v2941 = vpow.bf16.pop %v2940
        %v2942 = vadd.bf16 %v2464, 1065369472
        %v2943 = vadd.bf16 %v2467, 1065369472
        %v2944 = vadd.bf16 %v2470, 1065369472
        %v2945 = vadd.bf16 %v2473, 1065369472
        %v2946 = vadd.bf16 %v2476, 1065369472
        %v2947 = vadd.bf16 %v2479, 1065369472
        %v2948 = vadd.bf16 %v2482, 1065369472
        %v2949 = vadd.bf16 %v2485, 1065369472
        %v2950 = vadd.bf16 %v2488, 1065369472
        %v2951 = vadd.bf16 %v2491, 1065369472
        %v2952 = vadd.bf16 %v2494, 1065369472
        %v2953 = vadd.bf16 %v2497, 1065369472
        %v2954 = vadd.bf16 %v2500, 1065369472
        %v2955 = vadd.bf16 %v2503, 1065369472
        %v2956 = vadd.bf16 %v2506, 1065369472
        %v2957 = vadd.bf16 %v2509, 1065369472
        %v2958 = vadd.bf16 %v2512, 1065369472
        %v2959 = vadd.bf16 %v2515, 1065369472
        %v2960 = vadd.bf16 %v2518, 1065369472
        %v2961 = vadd.bf16 %v2521, 1065369472
        %v2962 = vadd.bf16 %v2524, 1065369472
        %v2963 = vadd.bf16 %v2527, 1065369472
        %v2964 = vadd.bf16 %v2530, 1065369472
        %v2965 = vadd.bf16 %v2533, 1065369472
        %v2966 = vadd.bf16 %v2536, 1065369472
        %v2967 = vadd.bf16 %v2539, 1065369472
        %v2968 = vadd.bf16 %v2542, 1065369472
        %v2969 = vadd.bf16 %v2545, 1065369472
        %v2970 = vadd.bf16 %v2548, 1065369472
        %v2971 = vadd.bf16 %v2551, 1065369472
        %v2972 = vadd.bf16 %v2554, 1065369472
        %v2973 = vadd.bf16 %v2557, 1065369472
        %v2974 = vadd.bf16 %v2560, 1065369472
        %v2975 = vadd.bf16 %v2563, 1065369472
        %v2976 = vadd.bf16 %v2566, 1065369472
        %v2977 = vadd.bf16 %v2569, 1065369472
        %v2978 = vadd.bf16 %v2572, 1065369472
        %v2979 = vadd.bf16 %v2575, 1065369472
        %v2980 = vadd.bf16 %v2578, 1065369472
        %v2981 = vadd.bf16 %v2581, 1065369472
        %v2982 = vadd.bf16 %v2584, 1065369472
        %v2983 = vadd.bf16 %v2587, 1065369472
        %v2984 = vadd.bf16 %v2590, 1065369472
        %v2985 = vadd.bf16 %v2593, 1065369472
        %v2986 = vadd.bf16 %v2596, 1065369472
        %v2987 = vadd.bf16 %v2599, 1065369472
        %v2988 = vadd.bf16 %v2602, 1065369472
        %v2989 = vadd.bf16 %v2605, 1065369472
        %v2990 = vadd.bf16 %v2608, 1065369472
        %v2991 = vadd.bf16 %v2611, 1065369472
        %v2992 = vadd.bf16 %v2614, 1065369472
        %v2993 = vadd.bf16 %v2617, 1065369472
        %v2994 = vadd.bf16 %v2620, 1065369472
        %v2995 = vadd.bf16 %v2623, 1065369472
        %v2996 = vadd.bf16 %v2626, 1065369472
        %v2997 = vadd.bf16 %v2629, 1065369472
        %v2998 = vadd.bf16 %v2632, 1065369472
        %v2999 = vadd.bf16 %v2635, 1065369472
        %v3000 = vadd.bf16 %v2638, 1065369472
        %v3001 = vadd.bf16 %v2641, 1065369472
        %v3002 = vadd.bf16 %v2644, 1065369472
        %v3003 = vadd.bf16 %v2647, 1065369472
        %v3004 = vadd.bf16 %v2650, 1065369472
        %v3005 = vadd.bf16 %v2653, 1065369472
        %v3006 = vadd.bf16 %v2656, 1065369472
        %v3007 = vadd.bf16 %v2659, 1065369472
        %v3008 = vadd.bf16 %v2662, 1065369472
        %v3009 = vadd.bf16 %v2665, 1065369472
        %v3010 = vadd.bf16 %v2668, 1065369472
        %v3011 = vadd.bf16 %v2671, 1065369472
        %v3012 = vadd.bf16 %v2674, 1065369472
        %v3013 = vadd.bf16 %v2677, 1065369472
        %v3014 = vadd.bf16 %v2680, 1065369472
        %v3015 = vadd.bf16 %v2683, 1065369472
        %v3016 = vadd.bf16 %v2686, 1065369472
        %v3017 = vadd.bf16 %v2689, 1065369472
        %v3018 = vadd.bf16 %v2692, 1065369472
        %v3019 = vadd.bf16 %v2695, 1065369472
        %v3020 = vadd.bf16 %v2698, 1065369472
        %v3021 = vadd.bf16 %v2701, 1065369472
        %v3022 = vadd.bf16 %v2704, 1065369472
        %v3023 = vadd.bf16 %v2707, 1065369472
        %v3024 = vadd.bf16 %v2710, 1065369472
        %v3025 = vadd.bf16 %v2713, 1065369472
        %v3026 = vadd.bf16 %v2716, 1065369472
        %v3027 = vadd.bf16 %v2719, 1065369472
        %v3028 = vadd.bf16 %v2722, 1065369472
        %v3029 = vadd.bf16 %v2725, 1065369472
        %v3030 = vadd.bf16 %v2728, 1065369472
        %v3031 = vadd.bf16 %v2731, 1065369472
        %v3032 = vadd.bf16 %v2734, 1065369472
        %v3033 = vadd.bf16 %v2737, 1065369472
        %v3034 = vadd.bf16 %v2740, 1065369472
        %v3035 = vadd.bf16 %v2743, 1065369472
        %v3036 = vadd.bf16 %v2746, 1065369472
        %v3037 = vadd.bf16 %v2749, 1065369472
        %v3038 = vadd.bf16 %v2752, 1065369472
        %v3039 = vadd.bf16 %v2755, 1065369472
        %v3040 = vadd.bf16 %v2758, 1065369472
        %v3041 = vadd.bf16 %v2761, 1065369472
        %v3042 = vadd.bf16 %v2764, 1065369472
        %v3043 = vadd.bf16 %v2767, 1065369472
        %v3044 = vadd.bf16 %v2770, 1065369472
        %v3045 = vadd.bf16 %v2773, 1065369472
        %v3046 = vadd.bf16 %v2776, 1065369472
        %v3047 = vadd.bf16 %v2779, 1065369472
        %v3048 = vadd.bf16 %v2782, 1065369472
        %v3049 = vadd.bf16 %v2785, 1065369472
        %v3050 = vadd.bf16 %v2788, 1065369472
        %v3051 = vadd.bf16 %v2791, 1065369472
        %v3052 = vadd.bf16 %v2794, 1065369472
        %v3053 = vadd.bf16 %v2797, 1065369472
        %v3054 = vadd.bf16 %v2800, 1065369472
        %v3055 = vadd.bf16 %v2803, 1065369472
        %v3056 = vadd.bf16 %v2806, 1065369472
        %v3057 = vadd.bf16 %v2809, 1065369472
        %v3058 = vadd.bf16 %v2812, 1065369472
        %v3059 = vadd.bf16 %v2815, 1065369472
        %v3060 = vadd.bf16 %v2818, 1065369472
        %v3061 = vadd.bf16 %v2821, 1065369472
        %v3062 = vadd.bf16 %v2824, 1065369472
        %v3063 = vadd.bf16 %v2827, 1065369472
        %v3064 = vadd.bf16 %v2830, 1065369472
        %v3065 = vadd.bf16 %v2833, 1065369472
        %v3066 = vadd.bf16 %v2836, 1065369472
        %v3067 = vadd.bf16 %v2839, 1065369472
        %v3068 = vadd.bf16 %v2842, 1065369472
        %v3069 = vadd.bf16 %v2845, 1065369472
        %v3070 = vadd.bf16 %v2848, 1065369472
        %v3071 = vadd.bf16 %v2851, 1065369472
        %v3072 = vadd.bf16 %v2854, 1065369472
        %v3073 = vadd.bf16 %v2857, 1065369472
        %v3074 = vadd.bf16 %v2860, 1065369472
        %v3075 = vadd.bf16 %v2863, 1065369472
        %v3076 = vadd.bf16 %v2866, 1065369472
        %v3077 = vadd.bf16 %v2869, 1065369472
        %v3078 = vadd.bf16 %v2872, 1065369472
        %v3079 = vadd.bf16 %v2875, 1065369472
        %v3080 = vadd.bf16 %v2878, 1065369472
        %v3081 = vadd.bf16 %v2881, 1065369472
        %v3082 = vadd.bf16 %v2884, 1065369472
        %v3083 = vadd.bf16 %v2887, 1065369472
        %v3084 = vadd.bf16 %v2890, 1065369472
        %v3085 = vadd.bf16 %v2893, 1065369472
        %v3086 = vadd.bf16 %v2896, 1065369472
        %v3087 = vadd.bf16 %v2899, 1065369472
        %v3088 = vadd.bf16 %v2902, 1065369472
        %v3089 = vadd.bf16 %v2905, 1065369472
        %v3090 = vadd.bf16 %v2908, 1065369472
        %v3091 = vadd.bf16 %v2911, 1065369472
        %v3092 = vadd.bf16 %v2914, 1065369472
        %v3093 = vadd.bf16 %v2917, 1065369472
        %v3094 = vadd.bf16 %v2920, 1065369472
        %v3095 = vadd.bf16 %v2923, 1065369472
        %v3096 = vadd.bf16 %v2926, 1065369472
        %v3097 = vadd.bf16 %v2929, 1065369472
        %v3098 = vadd.bf16 %v2932, 1065369472
        %v3099 = vadd.bf16 %v2935, 1065369472
        %v3100 = vadd.bf16 %v2938, 1065369472
        %v3101 = vadd.bf16 %v2941, 1065369472
        %v3102 = vrcp.bf16.pop %v2942
        %v3103 = vmul.bf16 1065369472, %v3102
        %v3104 = vrcp.bf16.pop %v2943
        %v3105 = vmul.bf16 1065369472, %v3104
        %v3106 = vrcp.bf16.pop %v2944
        %v3107 = vmul.bf16 1065369472, %v3106
        %v3108 = vrcp.bf16.pop %v2945
        %v3109 = vmul.bf16 1065369472, %v3108
        %v3110 = vrcp.bf16.pop %v2946
        %v3111 = vmul.bf16 1065369472, %v3110
        %v3112 = vrcp.bf16.pop %v2947
        %v3113 = vmul.bf16 1065369472, %v3112
        %v3114 = vrcp.bf16.pop %v2948
        %v3115 = vmul.bf16 1065369472, %v3114
        %v3116 = vrcp.bf16.pop %v2949
        %v3117 = vmul.bf16 1065369472, %v3116
        %v3118 = vrcp.bf16.pop %v2950
        %v3119 = vmul.bf16 1065369472, %v3118
        %v3120 = vrcp.bf16.pop %v2951
        %v3121 = vmul.bf16 1065369472, %v3120
        %v3122 = vrcp.bf16.pop %v2952
        %v3123 = vmul.bf16 1065369472, %v3122
        %v3124 = vrcp.bf16.pop %v2953
        %v3125 = vmul.bf16 1065369472, %v3124
        %v3126 = vrcp.bf16.pop %v2954
        %v3127 = vmul.bf16 1065369472, %v3126
        %v3128 = vrcp.bf16.pop %v2955
        %v3129 = vmul.bf16 1065369472, %v3128
        %v3130 = vrcp.bf16.pop %v2956
        %v3131 = vmul.bf16 1065369472, %v3130
        %v3132 = vrcp.bf16.pop %v2957
        %v3133 = vmul.bf16 1065369472, %v3132
        %v3134 = vrcp.bf16.pop %v2958
        %v3135 = vmul.bf16 1065369472, %v3134
        %v3136 = vrcp.bf16.pop %v2959
        %v3137 = vmul.bf16 1065369472, %v3136
        %v3138 = vrcp.bf16.pop %v2960
        %v3139 = vmul.bf16 1065369472, %v3138
        %v3140 = vrcp.bf16.pop %v2961
        %v3141 = vmul.bf16 1065369472, %v3140
        %v3142 = vrcp.bf16.pop %v2962
        %v3143 = vmul.bf16 1065369472, %v3142
        %v3144 = vrcp.bf16.pop %v2963
        %v3145 = vmul.bf16 1065369472, %v3144
        %v3146 = vrcp.bf16.pop %v2964
        %v3147 = vmul.bf16 1065369472, %v3146
        %v3148 = vrcp.bf16.pop %v2965
        %v3149 = vmul.bf16 1065369472, %v3148
        %v3150 = vrcp.bf16.pop %v2966
        %v3151 = vmul.bf16 1065369472, %v3150
        %v3152 = vrcp.bf16.pop %v2967
        %v3153 = vmul.bf16 1065369472, %v3152
        %v3154 = vrcp.bf16.pop %v2968
        %v3155 = vmul.bf16 1065369472, %v3154
        %v3156 = vrcp.bf16.pop %v2969
        %v3157 = vmul.bf16 1065369472, %v3156
        %v3158 = vrcp.bf16.pop %v2970
        %v3159 = vmul.bf16 1065369472, %v3158
        %v3160 = vrcp.bf16.pop %v2971
        %v3161 = vmul.bf16 1065369472, %v3160
        %v3162 = vrcp.bf16.pop %v2972
        %v3163 = vmul.bf16 1065369472, %v3162
        %v3164 = vrcp.bf16.pop %v2973
        %v3165 = vmul.bf16 1065369472, %v3164
        %v3166 = vrcp.bf16.pop %v2974
        %v3167 = vmul.bf16 1065369472, %v3166
        %v3168 = vrcp.bf16.pop %v2975
        %v3169 = vmul.bf16 1065369472, %v3168
        %v3170 = vrcp.bf16.pop %v2976
        %v3171 = vmul.bf16 1065369472, %v3170
        %v3172 = vrcp.bf16.pop %v2977
        %v3173 = vmul.bf16 1065369472, %v3172
        %v3174 = vrcp.bf16.pop %v2978
        %v3175 = vmul.bf16 1065369472, %v3174
        %v3176 = vrcp.bf16.pop %v2979
        %v3177 = vmul.bf16 1065369472, %v3176
        %v3178 = vrcp.bf16.pop %v2980
        %v3179 = vmul.bf16 1065369472, %v3178
        %v3180 = vrcp.bf16.pop %v2981
        %v3181 = vmul.bf16 1065369472, %v3180
        %v3182 = vrcp.bf16.pop %v2982
        %v3183 = vmul.bf16 1065369472, %v3182
        %v3184 = vrcp.bf16.pop %v2983
        %v3185 = vmul.bf16 1065369472, %v3184
        %v3186 = vrcp.bf16.pop %v2984
        %v3187 = vmul.bf16 1065369472, %v3186
        %v3188 = vrcp.bf16.pop %v2985
        %v3189 = vmul.bf16 1065369472, %v3188
        %v3190 = vrcp.bf16.pop %v2986
        %v3191 = vmul.bf16 1065369472, %v3190
        %v3192 = vrcp.bf16.pop %v2987
        %v3193 = vmul.bf16 1065369472, %v3192
        %v3194 = vrcp.bf16.pop %v2988
        %v3195 = vmul.bf16 1065369472, %v3194
        %v3196 = vrcp.bf16.pop %v2989
        %v3197 = vmul.bf16 1065369472, %v3196
        %v3198 = vrcp.bf16.pop %v2990
        %v3199 = vmul.bf16 1065369472, %v3198
        %v3200 = vrcp.bf16.pop %v2991
        %v3201 = vmul.bf16 1065369472, %v3200
        %v3202 = vrcp.bf16.pop %v2992
        %v3203 = vmul.bf16 1065369472, %v3202
        %v3204 = vrcp.bf16.pop %v2993
        %v3205 = vmul.bf16 1065369472, %v3204
        %v3206 = vrcp.bf16.pop %v2994
        %v3207 = vmul.bf16 1065369472, %v3206
        %v3208 = vrcp.bf16.pop %v2995
        %v3209 = vmul.bf16 1065369472, %v3208
        %v3210 = vrcp.bf16.pop %v2996
        %v3211 = vmul.bf16 1065369472, %v3210
        %v3212 = vrcp.bf16.pop %v2997
        %v3213 = vmul.bf16 1065369472, %v3212
        %v3214 = vrcp.bf16.pop %v2998
        %v3215 = vmul.bf16 1065369472, %v3214
        %v3216 = vrcp.bf16.pop %v2999
        %v3217 = vmul.bf16 1065369472, %v3216
        %v3218 = vrcp.bf16.pop %v3000
        %v3219 = vmul.bf16 1065369472, %v3218
        %v3220 = vrcp.bf16.pop %v3001
        %v3221 = vmul.bf16 1065369472, %v3220
        %v3222 = vrcp.bf16.pop %v3002
        %v3223 = vmul.bf16 1065369472, %v3222
        %v3224 = vrcp.bf16.pop %v3003
        %v3225 = vmul.bf16 1065369472, %v3224
        %v3226 = vrcp.bf16.pop %v3004
        %v3227 = vmul.bf16 1065369472, %v3226
        %v3228 = vrcp.bf16.pop %v3005
        %v3229 = vmul.bf16 1065369472, %v3228
        %v3230 = vrcp.bf16.pop %v3006
        %v3231 = vmul.bf16 1065369472, %v3230
        %v3232 = vrcp.bf16.pop %v3007
        %v3233 = vmul.bf16 1065369472, %v3232
        %v3234 = vrcp.bf16.pop %v3008
        %v3235 = vmul.bf16 1065369472, %v3234
        %v3236 = vrcp.bf16.pop %v3009
        %v3237 = vmul.bf16 1065369472, %v3236
        %v3238 = vrcp.bf16.pop %v3010
        %v3239 = vmul.bf16 1065369472, %v3238
        %v3240 = vrcp.bf16.pop %v3011
        %v3241 = vmul.bf16 1065369472, %v3240
        %v3242 = vrcp.bf16.pop %v3012
        %v3243 = vmul.bf16 1065369472, %v3242
        %v3244 = vrcp.bf16.pop %v3013
        %v3245 = vmul.bf16 1065369472, %v3244
        %v3246 = vrcp.bf16.pop %v3014
        %v3247 = vmul.bf16 1065369472, %v3246
        %v3248 = vrcp.bf16.pop %v3015
        %v3249 = vmul.bf16 1065369472, %v3248
        %v3250 = vrcp.bf16.pop %v3016
        %v3251 = vmul.bf16 1065369472, %v3250
        %v3252 = vrcp.bf16.pop %v3017
        %v3253 = vmul.bf16 1065369472, %v3252
        %v3254 = vrcp.bf16.pop %v3018
        %v3255 = vmul.bf16 1065369472, %v3254
        %v3256 = vrcp.bf16.pop %v3019
        %v3257 = vmul.bf16 1065369472, %v3256
        %v3258 = vrcp.bf16.pop %v3020
        %v3259 = vmul.bf16 1065369472, %v3258
        %v3260 = vrcp.bf16.pop %v3021
        %v3261 = vmul.bf16 1065369472, %v3260
        %v3262 = vrcp.bf16.pop %v3022
        %v3263 = vmul.bf16 1065369472, %v3262
        %v3264 = vrcp.bf16.pop %v3023
        %v3265 = vmul.bf16 1065369472, %v3264
        %v3266 = vrcp.bf16.pop %v3024
        %v3267 = vmul.bf16 1065369472, %v3266
        %v3268 = vrcp.bf16.pop %v3025
        %v3269 = vmul.bf16 1065369472, %v3268
        %v3270 = vrcp.bf16.pop %v3026
        %v3271 = vmul.bf16 1065369472, %v3270
        %v3272 = vrcp.bf16.pop %v3027
        %v3273 = vmul.bf16 1065369472, %v3272
        %v3274 = vrcp.bf16.pop %v3028
        %v3275 = vmul.bf16 1065369472, %v3274
        %v3276 = vrcp.bf16.pop %v3029
        %v3277 = vmul.bf16 1065369472, %v3276
        %v3278 = vrcp.bf16.pop %v3030
        %v3279 = vmul.bf16 1065369472, %v3278
        %v3280 = vrcp.bf16.pop %v3031
        %v3281 = vmul.bf16 1065369472, %v3280
        %v3282 = vrcp.bf16.pop %v3032
        %v3283 = vmul.bf16 1065369472, %v3282
        %v3284 = vrcp.bf16.pop %v3033
        %v3285 = vmul.bf16 1065369472, %v3284
        %v3286 = vrcp.bf16.pop %v3034
        %v3287 = vmul.bf16 1065369472, %v3286
        %v3288 = vrcp.bf16.pop %v3035
        %v3289 = vmul.bf16 1065369472, %v3288
        %v3290 = vrcp.bf16.pop %v3036
        %v3291 = vmul.bf16 1065369472, %v3290
        %v3292 = vrcp.bf16.pop %v3037
        %v3293 = vmul.bf16 1065369472, %v3292
        %v3294 = vrcp.bf16.pop %v3038
        %v3295 = vmul.bf16 1065369472, %v3294
        %v3296 = vrcp.bf16.pop %v3039
        %v3297 = vmul.bf16 1065369472, %v3296
        %v3298 = vrcp.bf16.pop %v3040
        %v3299 = vmul.bf16 1065369472, %v3298
        %v3300 = vrcp.bf16.pop %v3041
        %v3301 = vmul.bf16 1065369472, %v3300
        %v3302 = vrcp.bf16.pop %v3042
        %v3303 = vmul.bf16 1065369472, %v3302
        %v3304 = vrcp.bf16.pop %v3043
        %v3305 = vmul.bf16 1065369472, %v3304
        %v3306 = vrcp.bf16.pop %v3044
        %v3307 = vmul.bf16 1065369472, %v3306
        %v3308 = vrcp.bf16.pop %v3045
        %v3309 = vmul.bf16 1065369472, %v3308
        %v3310 = vrcp.bf16.pop %v3046
        %v3311 = vmul.bf16 1065369472, %v3310
        %v3312 = vrcp.bf16.pop %v3047
        %v3313 = vmul.bf16 1065369472, %v3312
        %v3314 = vrcp.bf16.pop %v3048
        %v3315 = vmul.bf16 1065369472, %v3314
        %v3316 = vrcp.bf16.pop %v3049
        %v3317 = vmul.bf16 1065369472, %v3316
        %v3318 = vrcp.bf16.pop %v3050
        %v3319 = vmul.bf16 1065369472, %v3318
        %v3320 = vrcp.bf16.pop %v3051
        %v3321 = vmul.bf16 1065369472, %v3320
        %v3322 = vrcp.bf16.pop %v3052
        %v3323 = vmul.bf16 1065369472, %v3322
        %v3324 = vrcp.bf16.pop %v3053
        %v3325 = vmul.bf16 1065369472, %v3324
        %v3326 = vrcp.bf16.pop %v3054
        %v3327 = vmul.bf16 1065369472, %v3326
        %v3328 = vrcp.bf16.pop %v3055
        %v3329 = vmul.bf16 1065369472, %v3328
        %v3330 = vrcp.bf16.pop %v3056
        %v3331 = vmul.bf16 1065369472, %v3330
        %v3332 = vrcp.bf16.pop %v3057
        %v3333 = vmul.bf16 1065369472, %v3332
        %v3334 = vrcp.bf16.pop %v3058
        %v3335 = vmul.bf16 1065369472, %v3334
        %v3336 = vrcp.bf16.pop %v3059
        %v3337 = vmul.bf16 1065369472, %v3336
        %v3338 = vrcp.bf16.pop %v3060
        %v3339 = vmul.bf16 1065369472, %v3338
        %v3340 = vrcp.bf16.pop %v3061
        %v3341 = vmul.bf16 1065369472, %v3340
        %v3342 = vrcp.bf16.pop %v3062
        %v3343 = vmul.bf16 1065369472, %v3342
        %v3344 = vrcp.bf16.pop %v3063
        %v3345 = vmul.bf16 1065369472, %v3344
        %v3346 = vrcp.bf16.pop %v3064
        %v3347 = vmul.bf16 1065369472, %v3346
        %v3348 = vrcp.bf16.pop %v3065
        %v3349 = vmul.bf16 1065369472, %v3348
        %v3350 = vrcp.bf16.pop %v3066
        %v3351 = vmul.bf16 1065369472, %v3350
        %v3352 = vrcp.bf16.pop %v3067
        %v3353 = vmul.bf16 1065369472, %v3352
        %v3354 = vrcp.bf16.pop %v3068
        %v3355 = vmul.bf16 1065369472, %v3354
        %v3356 = vrcp.bf16.pop %v3069
        %v3357 = vmul.bf16 1065369472, %v3356
        %v3358 = vrcp.bf16.pop %v3070
        %v3359 = vmul.bf16 1065369472, %v3358
        %v3360 = vrcp.bf16.pop %v3071
        %v3361 = vmul.bf16 1065369472, %v3360
        %v3362 = vrcp.bf16.pop %v3072
        %v3363 = vmul.bf16 1065369472, %v3362
        %v3364 = vrcp.bf16.pop %v3073
        %v3365 = vmul.bf16 1065369472, %v3364
        %v3366 = vrcp.bf16.pop %v3074
        %v3367 = vmul.bf16 1065369472, %v3366
        %v3368 = vrcp.bf16.pop %v3075
        %v3369 = vmul.bf16 1065369472, %v3368
        %v3370 = vrcp.bf16.pop %v3076
        %v3371 = vmul.bf16 1065369472, %v3370
        %v3372 = vrcp.bf16.pop %v3077
        %v3373 = vmul.bf16 1065369472, %v3372
        %v3374 = vrcp.bf16.pop %v3078
        %v3375 = vmul.bf16 1065369472, %v3374
        %v3376 = vrcp.bf16.pop %v3079
        %v3377 = vmul.bf16 1065369472, %v3376
        %v3378 = vrcp.bf16.pop %v3080
        %v3379 = vmul.bf16 1065369472, %v3378
        %v3380 = vrcp.bf16.pop %v3081
        %v3381 = vmul.bf16 1065369472, %v3380
        %v3382 = vrcp.bf16.pop %v3082
        %v3383 = vmul.bf16 1065369472, %v3382
        %v3384 = vrcp.bf16.pop %v3083
        %v3385 = vmul.bf16 1065369472, %v3384
        %v3386 = vrcp.bf16.pop %v3084
        %v3387 = vmul.bf16 1065369472, %v3386
        %v3388 = vrcp.bf16.pop %v3085
        %v3389 = vmul.bf16 1065369472, %v3388
        %v3390 = vrcp.bf16.pop %v3086
        %v3391 = vmul.bf16 1065369472, %v3390
        %v3392 = vrcp.bf16.pop %v3087
        %v3393 = vmul.bf16 1065369472, %v3392
        %v3394 = vrcp.bf16.pop %v3088
        %v3395 = vmul.bf16 1065369472, %v3394
        %v3396 = vrcp.bf16.pop %v3089
        %v3397 = vmul.bf16 1065369472, %v3396
        %v3398 = vrcp.bf16.pop %v3090
        %v3399 = vmul.bf16 1065369472, %v3398
        %v3400 = vrcp.bf16.pop %v3091
        %v3401 = vmul.bf16 1065369472, %v3400
        %v3402 = vrcp.bf16.pop %v3092
        %v3403 = vmul.bf16 1065369472, %v3402
        %v3404 = vrcp.bf16.pop %v3093
        %v3405 = vmul.bf16 1065369472, %v3404
        %v3406 = vrcp.bf16.pop %v3094
        %v3407 = vmul.bf16 1065369472, %v3406
        %v3408 = vrcp.bf16.pop %v3095
        %v3409 = vmul.bf16 1065369472, %v3408
        %v3410 = vrcp.bf16.pop %v3096
        %v3411 = vmul.bf16 1065369472, %v3410
        %v3412 = vrcp.bf16.pop %v3097
        %v3413 = vmul.bf16 1065369472, %v3412
        %v3414 = vrcp.bf16.pop %v3098
        %v3415 = vmul.bf16 1065369472, %v3414
        %v3416 = vrcp.bf16.pop %v3099
        %v3417 = vmul.bf16 1065369472, %v3416
        %v3418 = vrcp.bf16.pop %v3100
        %v3419 = vmul.bf16 1065369472, %v3418
        %v3420 = vrcp.bf16.pop %v3101
        %v3421 = vmul.bf16 1065369472, %v3420
        %v3422 = vmul.bf16 %v2142, %v3103
        %v3423 = vmul.bf16 %v2143, %v3105
        %v3424 = vmul.bf16 %v2144, %v3107
        %v3425 = vmul.bf16 %v2145, %v3109
        %v3426 = vmul.bf16 %v2146, %v3111
        %v3427 = vmul.bf16 %v2147, %v3113
        %v3428 = vmul.bf16 %v2148, %v3115
        %v3429 = vmul.bf16 %v2149, %v3117
        %v3430 = vmul.bf16 %v2150, %v3119
        %v3431 = vmul.bf16 %v2151, %v3121
        %v3432 = vmul.bf16 %v2152, %v3123
        %v3433 = vmul.bf16 %v2153, %v3125
        %v3434 = vmul.bf16 %v2154, %v3127
        %v3435 = vmul.bf16 %v2155, %v3129
        %v3436 = vmul.bf16 %v2156, %v3131
        %v3437 = vmul.bf16 %v2157, %v3133
        %v3438 = vmul.bf16 %v2158, %v3135
        %v3439 = vmul.bf16 %v2159, %v3137
        %v3440 = vmul.bf16 %v2160, %v3139
        %v3441 = vmul.bf16 %v2161, %v3141
        %v3442 = vmul.bf16 %v2162, %v3143
        %v3443 = vmul.bf16 %v2163, %v3145
        %v3444 = vmul.bf16 %v2164, %v3147
        %v3445 = vmul.bf16 %v2165, %v3149
        %v3446 = vmul.bf16 %v2166, %v3151
        %v3447 = vmul.bf16 %v2167, %v3153
        %v3448 = vmul.bf16 %v2168, %v3155
        %v3449 = vmul.bf16 %v2169, %v3157
        %v3450 = vmul.bf16 %v2170, %v3159
        %v3451 = vmul.bf16 %v2171, %v3161
        %v3452 = vmul.bf16 %v2172, %v3163
        %v3453 = vmul.bf16 %v2173, %v3165
        %v3454 = vmul.bf16 %v2174, %v3167
        %v3455 = vmul.bf16 %v2175, %v3169
        %v3456 = vmul.bf16 %v2176, %v3171
        %v3457 = vmul.bf16 %v2177, %v3173
        %v3458 = vmul.bf16 %v2178, %v3175
        %v3459 = vmul.bf16 %v2179, %v3177
        %v3460 = vmul.bf16 %v2180, %v3179
        %v3461 = vmul.bf16 %v2181, %v3181
        %v3462 = vmul.bf16 %v2182, %v3183
        %v3463 = vmul.bf16 %v2183, %v3185
        %v3464 = vmul.bf16 %v2184, %v3187
        %v3465 = vmul.bf16 %v2185, %v3189
        %v3466 = vmul.bf16 %v2186, %v3191
        %v3467 = vmul.bf16 %v2187, %v3193
        %v3468 = vmul.bf16 %v2188, %v3195
        %v3469 = vmul.bf16 %v2189, %v3197
        %v3470 = vmul.bf16 %v2190, %v3199
        %v3471 = vmul.bf16 %v2191, %v3201
        %v3472 = vmul.bf16 %v2192, %v3203
        %v3473 = vmul.bf16 %v2193, %v3205
        %v3474 = vmul.bf16 %v2194, %v3207
        %v3475 = vmul.bf16 %v2195, %v3209
        %v3476 = vmul.bf16 %v2196, %v3211
        %v3477 = vmul.bf16 %v2197, %v3213
        %v3478 = vmul.bf16 %v2198, %v3215
        %v3479 = vmul.bf16 %v2199, %v3217
        %v3480 = vmul.bf16 %v2200, %v3219
        %v3481 = vmul.bf16 %v2201, %v3221
        %v3482 = vmul.bf16 %v2202, %v3223
        %v3483 = vmul.bf16 %v2203, %v3225
        %v3484 = vmul.bf16 %v2204, %v3227
        %v3485 = vmul.bf16 %v2205, %v3229
        %v3486 = vmul.bf16 %v2206, %v3231
        %v3487 = vmul.bf16 %v2207, %v3233
        %v3488 = vmul.bf16 %v2208, %v3235
        %v3489 = vmul.bf16 %v2209, %v3237
        %v3490 = vmul.bf16 %v2210, %v3239
        %v3491 = vmul.bf16 %v2211, %v3241
        %v3492 = vmul.bf16 %v2212, %v3243
        %v3493 = vmul.bf16 %v2213, %v3245
        %v3494 = vmul.bf16 %v2214, %v3247
        %v3495 = vmul.bf16 %v2215, %v3249
        %v3496 = vmul.bf16 %v2216, %v3251
        %v3497 = vmul.bf16 %v2217, %v3253
        %v3498 = vmul.bf16 %v2218, %v3255
        %v3499 = vmul.bf16 %v2219, %v3257
        %v3500 = vmul.bf16 %v2220, %v3259
        %v3501 = vmul.bf16 %v2221, %v3261
        %v3502 = vmul.bf16 %v2222, %v3263
        %v3503 = vmul.bf16 %v2223, %v3265
        %v3504 = vmul.bf16 %v2224, %v3267
        %v3505 = vmul.bf16 %v2225, %v3269
        %v3506 = vmul.bf16 %v2226, %v3271
        %v3507 = vmul.bf16 %v2227, %v3273
        %v3508 = vmul.bf16 %v2228, %v3275
        %v3509 = vmul.bf16 %v2229, %v3277
        %v3510 = vmul.bf16 %v2230, %v3279
        %v3511 = vmul.bf16 %v2231, %v3281
        %v3512 = vmul.bf16 %v2232, %v3283
        %v3513 = vmul.bf16 %v2233, %v3285
        %v3514 = vmul.bf16 %v2234, %v3287
        %v3515 = vmul.bf16 %v2235, %v3289
        %v3516 = vmul.bf16 %v2236, %v3291
        %v3517 = vmul.bf16 %v2237, %v3293
        %v3518 = vmul.bf16 %v2238, %v3295
        %v3519 = vmul.bf16 %v2239, %v3297
        %v3520 = vmul.bf16 %v2240, %v3299
        %v3521 = vmul.bf16 %v2241, %v3301
        %v3522 = vmul.bf16 %v2242, %v3303
        %v3523 = vmul.bf16 %v2243, %v3305
        %v3524 = vmul.bf16 %v2244, %v3307
        %v3525 = vmul.bf16 %v2245, %v3309
        %v3526 = vmul.bf16 %v2246, %v3311
        %v3527 = vmul.bf16 %v2247, %v3313
        %v3528 = vmul.bf16 %v2248, %v3315
        %v3529 = vmul.bf16 %v2249, %v3317
        %v3530 = vmul.bf16 %v2250, %v3319
        %v3531 = vmul.bf16 %v2251, %v3321
        %v3532 = vmul.bf16 %v2252, %v3323
        %v3533 = vmul.bf16 %v2253, %v3325
        %v3534 = vmul.bf16 %v2254, %v3327
        %v3535 = vmul.bf16 %v2255, %v3329
        %v3536 = vmul.bf16 %v2256, %v3331
        %v3537 = vmul.bf16 %v2257, %v3333
        %v3538 = vmul.bf16 %v2258, %v3335
        %v3539 = vmul.bf16 %v2259, %v3337
        %v3540 = vmul.bf16 %v2260, %v3339
        %v3541 = vmul.bf16 %v2261, %v3341
        %v3542 = vmul.bf16 %v2262, %v3343
        %v3543 = vmul.bf16 %v2263, %v3345
        %v3544 = vmul.bf16 %v2264, %v3347
        %v3545 = vmul.bf16 %v2265, %v3349
        %v3546 = vmul.bf16 %v2266, %v3351
        %v3547 = vmul.bf16 %v2267, %v3353
        %v3548 = vmul.bf16 %v2268, %v3355
        %v3549 = vmul.bf16 %v2269, %v3357
        %v3550 = vmul.bf16 %v2270, %v3359
        %v3551 = vmul.bf16 %v2271, %v3361
        %v3552 = vmul.bf16 %v2272, %v3363
        %v3553 = vmul.bf16 %v2273, %v3365
        %v3554 = vmul.bf16 %v2274, %v3367
        %v3555 = vmul.bf16 %v2275, %v3369
        %v3556 = vmul.bf16 %v2276, %v3371
        %v3557 = vmul.bf16 %v2277, %v3373
        %v3558 = vmul.bf16 %v2278, %v3375
        %v3559 = vmul.bf16 %v2279, %v3377
        %v3560 = vmul.bf16 %v2280, %v3379
        %v3561 = vmul.bf16 %v2281, %v3381
        %v3562 = vmul.bf16 %v2282, %v3383
        %v3563 = vmul.bf16 %v2283, %v3385
        %v3564 = vmul.bf16 %v2284, %v3387
        %v3565 = vmul.bf16 %v2285, %v3389
        %v3566 = vmul.bf16 %v2286, %v3391
        %v3567 = vmul.bf16 %v2287, %v3393
        %v3568 = vmul.bf16 %v2288, %v3395
        %v3569 = vmul.bf16 %v2289, %v3397
        %v3570 = vmul.bf16 %v2290, %v3399
        %v3571 = vmul.bf16 %v2291, %v3401
        %v3572 = vmul.bf16 %v2292, %v3403
        %v3573 = vmul.bf16 %v2293, %v3405
        %v3574 = vmul.bf16 %v2294, %v3407
        %v3575 = vmul.bf16 %v2295, %v3409
        %v3576 = vmul.bf16 %v2296, %v3411
        %v3577 = vmul.bf16 %v2297, %v3413
        %v3578 = vmul.bf16 %v2298, %v3415
        %v3579 = vmul.bf16 %v2299, %v3417
        %v3580 = vmul.bf16 %v2300, %v3419
        %v3581 = vmul.bf16 %v2301, %v3421
        %v3582 = vld [vmem:[#allocation2] sm:$0xff]
        %v3583 = vld [vmem:[#allocation2 + $0x8] sm:$0x3]
        %3584 = vmatprep.subr.bf16.mxu0 %v3493
        %3585 = vmatpush1.bf16.msra.mxu0 %v3492
        %3586 = vmatprep.subr.bf16.mxu0 %v3483
        %3587 = vmatpush1.bf16.msra.mxu0 %v3482
        %3588 = vmatprep.subr.bf16.mxu0 %v3473
        %3589 = vmatpush1.bf16.msra.mxu0 %v3472
        %3590 = vmatprep.subr.bf16.mxu0 %v3463
        %3591 = vmatpush1.bf16.msra.mxu0 %v3462
        %3592 = vmatprep.subr.bf16.mxu0 %v3453
        %3593 = vmatpush1.bf16.msra.mxu0 %v3452
        %3594 = vmatprep.subr.bf16.mxu0 %v3443
        %3595 = vmatpush1.bf16.msra.mxu0 %v3442
        %3596 = vmatprep.subr.bf16.mxu0 %v3433
        %3597 = vmatpush1.bf16.msra.mxu0 %v3432
        %3598 = vmatprep.subr.bf16.mxu0 %v3423
        %3599 = vmatpush1.bf16.msra.mxu0 %v3422
        %3600 = vmatprep.subr.bf16.mxu0 %v3573
        %3601 = vmatpush2.bf16.msra.mxu0 %v3572
        %3602 = vmatprep.subr.bf16.mxu0 %v3563
        %3603 = vmatpush2.bf16.msra.mxu0 %v3562
        %3604 = vmatprep.subr.bf16.mxu0 %v3553
        %3605 = vmatpush2.bf16.msra.mxu0 %v3552
        %3606 = vmatprep.subr.bf16.mxu0 %v3543
        %3607 = vmatpush2.bf16.msra.mxu0 %v3542
        %3608 = vmatprep.subr.bf16.mxu0 %v3533
        %3609 = vmatpush2.bf16.msra.mxu0 %v3532
        %3610 = vmatprep.subr.bf16.mxu0 %v3523
        %3611 = vmatpush2.bf16.msra.mxu0 %v3522
        %3612 = vmatprep.subr.bf16.mxu0 %v3513
        %3613 = vmatpush2.bf16.msra.mxu0 %v3512
        %3614 = vmatprep.subr.bf16.mxu0 %v3503
        %3615 = vmatpush2.bf16.msra.mxu0 %v3502
        %3616 = vmatprep.mubr.bf16.mxu0 1065369472
        %3617 = vmatmul.mubr.bf16.gmra.mxu0 1065369472
        %v3618 = vpop.f32.mrf.mxu0
        %v3619 = vadd.f32 0.0, %v3618
        %v3620 = vpop.f32.mrf.mxu0
        %v3621 = vadd.f32 0.0, %v3620
        %v3622 = vpop.f32.mrf.mxu0
        %v3623 = vpop.f32.mrf.mxu0
        %3624 = vdwg.mxu0
        %3625 = vmatprep.subr.bf16.mxu0 %v3495
        %3626 = vmatpush1.bf16.msra.mxu0 %v3494
        %3627 = vmatprep.subr.bf16.mxu0 %v3485
        %3628 = vmatpush1.bf16.msra.mxu0 %v3484
        %3629 = vmatprep.subr.bf16.mxu0 %v3475
        %3630 = vmatpush1.bf16.msra.mxu0 %v3474
        %3631 = vmatprep.subr.bf16.mxu0 %v3465
        %3632 = vmatpush1.bf16.msra.mxu0 %v3464
        %3633 = vmatprep.subr.bf16.mxu0 %v3455
        %3634 = vmatpush1.bf16.msra.mxu0 %v3454
        %3635 = vmatprep.subr.bf16.mxu0 %v3445
        %3636 = vmatpush1.bf16.msra.mxu0 %v3444
        %3637 = vmatprep.subr.bf16.mxu0 %v3435
        %3638 = vmatpush1.bf16.msra.mxu0 %v3434
        %3639 = vmatprep.subr.bf16.mxu0 %v3425
        %3640 = vmatpush1.bf16.msra.mxu0 %v3424
        %3641 = vmatprep.subr.bf16.mxu0 %v3575
        %3642 = vmatpush2.bf16.msra.mxu0 %v3574
        %3643 = vmatprep.subr.bf16.mxu0 %v3565
        %3644 = vmatpush2.bf16.msra.mxu0 %v3564
        %3645 = vmatprep.subr.bf16.mxu0 %v3555
        %3646 = vmatpush2.bf16.msra.mxu0 %v3554
        %3647 = vmatprep.subr.bf16.mxu0 %v3545
        %3648 = vmatpush2.bf16.msra.mxu0 %v3544
        %3649 = vmatprep.subr.bf16.mxu0 %v3535
        %3650 = vmatpush2.bf16.msra.mxu0 %v3534
        %3651 = vmatprep.subr.bf16.mxu0 %v3525
        %3652 = vmatpush2.bf16.msra.mxu0 %v3524
        %3653 = vmatprep.subr.bf16.mxu0 %v3515
        %3654 = vmatpush2.bf16.msra.mxu0 %v3514
        %3655 = vmatprep.subr.bf16.mxu0 %v3505
        %3656 = vmatpush2.bf16.msra.mxu0 %v3504
        %3657 = vmatprep.mubr.bf16.mxu0 1065369472
        %3658 = vmatmul.mubr.bf16.gmra.mxu0 1065369472
        %v3659 = vpop.f32.mrf.mxu0
        %v3660 = vadd.f32 0.0, %v3659
        %v3661 = vpop.f32.mrf.mxu0
        %v3662 = vadd.f32 0.0, %v3661
        %v3663 = vpop.f32.mrf.mxu0
        %v3664 = vpop.f32.mrf.mxu0
        %3665 = vdwg.mxu0
        %3666 = vmatprep.subr.bf16.mxu0 %v3497
        %3667 = vmatpush1.bf16.msra.mxu0 %v3496
        %3668 = vmatprep.subr.bf16.mxu0 %v3487
        %3669 = vmatpush1.bf16.msra.mxu0 %v3486
        %3670 = vmatprep.subr.bf16.mxu0 %v3477
        %3671 = vmatpush1.bf16.msra.mxu0 %v3476
        %3672 = vmatprep.subr.bf16.mxu0 %v3467
        %3673 = vmatpush1.bf16.msra.mxu0 %v3466
        %3674 = vmatprep.subr.bf16.mxu0 %v3457
        %3675 = vmatpush1.bf16.msra.mxu0 %v3456
        %3676 = vmatprep.subr.bf16.mxu0 %v3447
        %3677 = vmatpush1.bf16.msra.mxu0 %v3446
        %3678 = vmatprep.subr.bf16.mxu0 %v3437
        %3679 = vmatpush1.bf16.msra.mxu0 %v3436
        %3680 = vmatprep.subr.bf16.mxu0 %v3427
        %3681 = vmatpush1.bf16.msra.mxu0 %v3426
        %3682 = vmatprep.subr.bf16.mxu0 %v3577
        %3683 = vmatpush2.bf16.msra.mxu0 %v3576
        %3684 = vmatprep.subr.bf16.mxu0 %v3567
        %3685 = vmatpush2.bf16.msra.mxu0 %v3566
        %3686 = vmatprep.subr.bf16.mxu0 %v3557
        %3687 = vmatpush2.bf16.msra.mxu0 %v3556
        %3688 = vmatprep.subr.bf16.mxu0 %v3547
        %3689 = vmatpush2.bf16.msra.mxu0 %v3546
        %3690 = vmatprep.subr.bf16.mxu0 %v3537
        %3691 = vmatpush2.bf16.msra.mxu0 %v3536
        %3692 = vmatprep.subr.bf16.mxu0 %v3527
        %3693 = vmatpush2.bf16.msra.mxu0 %v3526
        %3694 = vmatprep.subr.bf16.mxu0 %v3517
        %3695 = vmatpush2.bf16.msra.mxu0 %v3516
        %3696 = vmatprep.subr.bf16.mxu0 %v3507
        %3697 = vmatpush2.bf16.msra.mxu0 %v3506
        %3698 = vmatprep.mubr.bf16.mxu0 1065369472
        %3699 = vmatmul.mubr.bf16.gmra.mxu0 1065369472
        %v3700 = vpop.f32.mrf.mxu0
        %v3701 = vadd.f32 0.0, %v3700
        %v3702 = vpop.f32.mrf.mxu0
        %v3703 = vadd.f32 0.0, %v3702
        %v3704 = vpop.f32.mrf.mxu0
        %v3705 = vpop.f32.mrf.mxu0
        %3706 = vdwg.mxu0
        %3707 = vmatprep.subr.bf16.mxu0 %v3499
        %3708 = vmatpush1.bf16.msra.mxu0 %v3498
        %3709 = vmatprep.subr.bf16.mxu0 %v3489
        %3710 = vmatpush1.bf16.msra.mxu0 %v3488
        %3711 = vmatprep.subr.bf16.mxu0 %v3479
        %3712 = vmatpush1.bf16.msra.mxu0 %v3478
        %3713 = vmatprep.subr.bf16.mxu0 %v3469
        %3714 = vmatpush1.bf16.msra.mxu0 %v3468
        %3715 = vmatprep.subr.bf16.mxu0 %v3459
        %3716 = vmatpush1.bf16.msra.mxu0 %v3458
        %3717 = vmatprep.subr.bf16.mxu0 %v3449
        %3718 = vmatpush1.bf16.msra.mxu0 %v3448
        %3719 = vmatprep.subr.bf16.mxu0 %v3439
        %3720 = vmatpush1.bf16.msra.mxu0 %v3438
        %3721 = vmatprep.subr.bf16.mxu0 %v3429
        %3722 = vmatpush1.bf16.msra.mxu0 %v3428
        %3723 = vmatprep.subr.bf16.mxu0 %v3579
        %3724 = vmatpush2.bf16.msra.mxu0 %v3578
        %3725 = vmatprep.subr.bf16.mxu0 %v3569
        %3726 = vmatpush2.bf16.msra.mxu0 %v3568
        %3727 = vmatprep.subr.bf16.mxu0 %v3559
        %3728 = vmatpush2.bf16.msra.mxu0 %v3558
        %3729 = vmatprep.subr.bf16.mxu0 %v3549
        %3730 = vmatpush2.bf16.msra.mxu0 %v3548
        %3731 = vmatprep.subr.bf16.mxu0 %v3539
        %3732 = vmatpush2.bf16.msra.mxu0 %v3538
        %3733 = vmatprep.subr.bf16.mxu0 %v3529
        %3734 = vmatpush2.bf16.msra.mxu0 %v3528
        %3735 = vmatprep.subr.bf16.mxu0 %v3519
        %3736 = vmatpush2.bf16.msra.mxu0 %v3518
        %3737 = vmatprep.subr.bf16.mxu0 %v3509
        %3738 = vmatpush2.bf16.msra.mxu0 %v3508
        %3739 = vmatprep.mubr.bf16.mxu0 1065369472
        %3740 = vmatmul.mubr.bf16.gmra.mxu0 1065369472
        %v3741 = vpop.f32.mrf.mxu0
        %v3742 = vadd.f32 0.0, %v3741
        %v3743 = vpop.f32.mrf.mxu0
        %v3744 = vadd.f32 0.0, %v3743
        %v3745 = vpop.f32.mrf.mxu0
        %v3746 = vpop.f32.mrf.mxu0
        %3747 = vdwg.mxu0
        %3748 = vmatprep.subr.bf16.mxu0 %v3501
        %3749 = vmatpush1.bf16.msra.mxu0 %v3500
        %3750 = vmatprep.subr.bf16.mxu0 %v3491
        %3751 = vmatpush1.bf16.msra.mxu0 %v3490
        %3752 = vmatprep.subr.bf16.mxu0 %v3481
        %3753 = vmatpush1.bf16.msra.mxu0 %v3480
        %3754 = vmatprep.subr.bf16.mxu0 %v3471
        %3755 = vmatpush1.bf16.msra.mxu0 %v3470
        %3756 = vmatprep.subr.bf16.mxu0 %v3461
        %3757 = vmatpush1.bf16.msra.mxu0 %v3460
        %3758 = vmatprep.subr.bf16.mxu0 %v3451
        %3759 = vmatpush1.bf16.msra.mxu0 %v3450
        %3760 = vmatprep.subr.bf16.mxu0 %v3441
        %3761 = vmatpush1.bf16.msra.mxu0 %v3440
        %3762 = vmatprep.subr.bf16.mxu0 %v3431
        %3763 = vmatpush1.bf16.msra.mxu0 %v3430
        %3764 = vmatprep.subr.bf16.mxu0 %v3581
        %3765 = vmatpush2.bf16.msra.mxu0 %v3580
        %3766 = vmatprep.subr.bf16.mxu0 %v3571
        %3767 = vmatpush2.bf16.msra.mxu0 %v3570
        %3768 = vmatprep.subr.bf16.mxu0 %v3561
        %3769 = vmatpush2.bf16.msra.mxu0 %v3560
        %3770 = vmatprep.subr.bf16.mxu0 %v3551
        %3771 = vmatpush2.bf16.msra.mxu0 %v3550
        %3772 = vmatprep.subr.bf16.mxu0 %v3541
        %3773 = vmatpush2.bf16.msra.mxu0 %v3540
        %3774 = vmatprep.subr.bf16.mxu0 %v3531
        %3775 = vmatpush2.bf16.msra.mxu0 %v3530
        %3776 = vmatprep.subr.bf16.mxu0 %v3521
        %3777 = vmatpush2.bf16.msra.mxu0 %v3520
        %3778 = vmatprep.subr.bf16.mxu0 %v3511
        %3779 = vmatpush2.bf16.msra.mxu0 %v3510
        %3780 = vmatprep.mubr.bf16.mxu0 1065369472
        %3781 = vmatmul.mubr.bf16.gmra.mxu0 1065369472
        %v3782 = vpop.f32.mrf.mxu0
        %v3783 = vadd.f32 0.0, %v3782
        %v3784 = vpop.f32.mrf.mxu0
        %v3785 = vadd.f32 0.0, %v3784
        %v3786 = vpop.f32.mrf.mxu0
        %v3787 = vpop.f32.mrf.mxu0
        %3788 = vdwg.mxu0
        %v3799 = vcombine.low %v3619, %v3621
        %v3800 = vcombine.low %v3660, %v3662
        %v3801 = vcombine.low %v3701, %v3703
        %v3802 = vcombine.low %v3742, %v3744
        %v3804 = vunpack.c.l.s4 1966171168
        %v3805 = vunpack.c.0.s8 %v3804
        %v3806 = vlaneseq
        %v3807 = vshrl.u32 %v3806, 7
        %v3808 = vsub.s32 %v3805, %v3807
        %v3809 = vrot.slane %v3799, %v3808
        %v3811 = vunpack.c.l.s4 1966171168
        %v3812 = vunpack.c.0.s8 %v3811
        %v3813 = vlaneseq
        %v3814 = vshrl.u32 %v3813, 7
        %v3815 = vsub.s32 %v3812, %v3814
        %v3816 = vrot.slane %v3800, %v3815
        %v3818 = vunpack.c.l.s4 1966171168
        %v3819 = vunpack.c.0.s8 %v3818
        %v3820 = vlaneseq
        %v3821 = vshrl.u32 %v3820, 7
        %v3822 = vsub.s32 %v3819, %v3821
        %v3823 = vrot.slane %v3801, %v3822
        %v3825 = vunpack.c.l.s4 1966171168
        %v3826 = vunpack.c.0.s8 %v3825
        %v3827 = vlaneseq
        %v3828 = vshrl.u32 %v3827, 7
        %v3829 = vsub.s32 %v3826, %v3828
        %v3830 = vrot.slane %v3802, %v3829
        %v3831 = vcombine.low %v3809, %v3816
        %v3832 = vcombine.low %v3823, %v3830
        %v3834 = vunpack.c.l.s4 1966171168
        %v3835 = vunpack.c.0.s8 %v3834
        %v3836 = vlaneseq
        %v3837 = vshrl.u32 %v3836, 7
        %v3838 = vsub.s32 %v3835, %v3837
        %v3839 = vrot.slane %v3831, %v3838
        %v3841 = vunpack.c.l.s4 1966171168
        %v3842 = vunpack.c.0.s8 %v3841
        %v3843 = vlaneseq
        %v3844 = vshrl.u32 %v3843, 7
        %v3845 = vsub.s32 %v3842, %v3844
        %v3846 = vrot.slane %v3832, %v3845
        %v3847 = vcombine.low %v3839, %v3846
        %v3848 = vcombine.low %v3783, %v3785
        %v3850 = vunpack.c.l.s4 1966171168
        %v3851 = vunpack.c.0.s8 %v3850
        %v3852 = vlaneseq
        %v3853 = vshrl.u32 %v3852, 7
        %v3854 = vsub.s32 %v3851, %v3853
        %v3855 = vrot.slane %v3848, %v3854
        %v3857 = vunpack.c.l.s4 1966171168
        %v3858 = vunpack.c.0.s8 %v3857
        %v3859 = vlaneseq
        %v3860 = vshrl.u32 %v3859, 7
        %v3861 = vsub.s32 %v3858, %v3860
        %v3862 = vrot.slane %v3855, %v3861
        %v3865 = vadd.f32 %v3582, %v3847
        %v3866 = vadd.f32 %v3583, %v3862
        %3867 = vst [vmem:[#allocation2] sm:$0xff] %v3865
        %v3868 = vlaneseq
        %vm3869 = vcmp.ge.s32.totalorder %v3868, 0
        %vm3870 = vcmp.lt.s32.totalorder %v3868, 256
        %vm3871 = vmand %vm3869, %vm3870
        %3872 = vst.msk [vmem:[#allocation2 + $0x8] sm:$0x3] %vm3871, %v3866
        // Predicated region
        $region61: #{modified_efficient_b0_forward.1} parent=55 // pred_check
          %p3873 = pneg %p360
        $region62: #{modified_efficient_b0_forward.1} parent=55 // pred_check_branch
          %3875 = sbr.rel (%p3873) target = $region64
        $region63: #{modified_efficient_b0_forward.1} parent=55 // pred_region
          %v3876 = vld [vmem:[#allocation2] sm:$0xff]
          %v3877 = vld [vmem:[#allocation2 + $0x8] sm:$0x3]
          %v3878 = vmul.f32 %v3876, 0.00390625
          %v3879 = vmul.f32 %v3877, 0.00390625
          %v3882 = vlaneseq
          %v3883 = vshrl.u32 %v3882, 7
          %v3884 = vsub.s32 0, %v3883
          %v3885 = vrot.slane %v3878, %v3884
          %v3886 = vlaneseq
          %v3887 = vshrl.u32 %v3886, 7
          %v3888 = vsub.s32 1, %v3887
          %v3889 = vrot.slane %v3878, %v3888
          %v3890 = vlaneseq
          %v3891 = vshrl.u32 %v3890, 7
          %v3892 = vsub.s32 2, %v3891
          %v3893 = vrot.slane %v3878, %v3892
          %v3894 = vlaneseq
          %v3895 = vshrl.u32 %v3894, 7
          %v3896 = vsub.s32 3, %v3895
          %v3897 = vrot.slane %v3878, %v3896
          %v3898 = vlaneseq
          %v3899 = vshrl.u32 %v3898, 7
          %v3900 = vsub.s32 4, %v3899
          %v3901 = vrot.slane %v3878, %v3900
          %v3902 = vlaneseq
          %v3903 = vshrl.u32 %v3902, 7
          %v3904 = vsub.s32 5, %v3903
          %v3905 = vrot.slane %v3878, %v3904
          %v3906 = vlaneseq
          %v3907 = vshrl.u32 %v3906, 7
          %v3908 = vsub.s32 6, %v3907
          %v3909 = vrot.slane %v3878, %v3908
          %v3910 = vlaneseq
          %v3911 = vshrl.u32 %v3910, 7
          %v3912 = vsub.s32 7, %v3911
          %v3913 = vrot.slane %v3878, %v3912
          %v3914 = vlaneseq
          %v3915 = vshrl.u32 %v3914, 7
          %v3916 = vsub.s32 0, %v3915
          %v3917 = vrot.slane %v3879, %v3916
          %v3918 = vlaneseq
          %v3919 = vshrl.u32 %v3918, 7
          %v3920 = vsub.s32 1, %v3919
          %v3921 = vrot.slane %v3879, %v3920
          %v3932 = vpack.c.bf16 %v3885, %v3885
          %v3933 = vpack.c.bf16 %v3889, %v3889
          %v3934 = vpack.c.bf16 %v3893, %v3893
          %v3935 = vpack.c.bf16 %v3897, %v3897
          %v3936 = vpack.c.bf16 %v3901, %v3901
          %v3937 = vpack.c.bf16 %v3905, %v3905
          %v3938 = vpack.c.bf16 %v3909, %v3909
          %v3939 = vpack.c.bf16 %v3913, %v3913
          %v3940 = vpack.c.bf16 %v3917, %v3917
          %v3941 = vpack.c.bf16 %v3921, %v3921
          %v3942 = vld [vmem:[%s5] sm:$0xff]
          %v3943 = vld [vmem:[%s5 + $0x8] sm:$0xff]
          %v3944 = vld [vmem:[%s5 + $0x10] sm:$0xff]
          %v3945 = vld [vmem:[%s5 + $0x18] sm:$0xff]
          %v3946 = vld [vmem:[%s5 + $0x20] sm:$0xff]
          %v3947 = vld [vmem:[%s5 + $0x28] sm:$0xff]
          %v3948 = vld [vmem:[%s5 + $0x30] sm:$0xff]
          %v3949 = vld [vmem:[%s5 + $0x38] sm:$0xff]
          %v3950 = vld [vmem:[%s5 + $0x40] sm:$0xff]
          %v3951 = vld [vmem:[%s5 + $0x48] sm:$0xff]
          %v3952 = vld [vmem:[%s5 + $0x50] sm:$0xff]
          %v3953 = vld [vmem:[%s5 + $0x58] sm:$0xff]
          %v3954 = vld [vmem:[%s5 + $0x60] sm:$0xff]
          %v3955 = vld [vmem:[%s5 + $0x68] sm:$0xff]
          %v3956 = vld [vmem:[%s5 + $0x70] sm:$0xff]
          %v3957 = vld [vmem:[%s5 + $0x78] sm:$0xff]
          %v3958 = vld [vmem:[%s5 + $0x80] sm:$0xff]
          %v3959 = vld [vmem:[%s5 + $0x88] sm:$0xff]
          %v3960 = vld [vmem:[%s5 + $0x90] sm:$0xff]
          %v3961 = vld [vmem:[%s5 + $0x98] sm:$0xff]
          %v3962 = vld [vmem:[%s5 + $0xa0] sm:$0xff]
          %v3963 = vld [vmem:[%s5 + $0xa8] sm:$0xff]
          %v3964 = vld [vmem:[%s5 + $0xb0] sm:$0xff]
          %v3965 = vld [vmem:[%s5 + $0xb8] sm:$0xff]
          %v3966 = vld [vmem:[%s5 + $0xc0] sm:$0xff]
          %v3967 = vld [vmem:[%s5 + $0xc8] sm:$0xff]
          %v3968 = vld [vmem:[%s5 + $0xd0] sm:$0xff]
          %v3969 = vld [vmem:[%s5 + $0xd8] sm:$0xff]
          %v3970 = vld [vmem:[%s5 + $0xe0] sm:$0xff]
          %v3971 = vld [vmem:[%s5 + $0xe8] sm:$0xff]
          %v3972 = vld [vmem:[%s5 + $0xf0] sm:$0xff]
          %v3973 = vld [vmem:[%s5 + $0xf8] sm:$0xff]
          %v3974 = vld [vmem:[%s5 + $0x100] sm:$0xff]
          %v3975 = vld [vmem:[%s5 + $0x108] sm:$0xff]
          %v3976 = vld [vmem:[%s5 + $0x110] sm:$0xff]
          %v3977 = vld [vmem:[%s5 + $0x118] sm:$0xff]
          %v3978 = vld [vmem:[%s5 + $0x120] sm:$0xff]
          %v3979 = vld [vmem:[%s5 + $0x128] sm:$0xff]
          %v3980 = vld [vmem:[%s5 + $0x130] sm:$0xff]
          %v3981 = vld [vmem:[%s5 + $0x138] sm:$0xff]
          %v3982 = vld [vmem:[%s5 + $0x140] sm:$0xff]
          %v3983 = vld [vmem:[%s5 + $0x148] sm:$0xff]
          %v3984 = vld [vmem:[%s5 + $0x150] sm:$0xff]
          %v3985 = vld [vmem:[%s5 + $0x158] sm:$0xff]
          %v3986 = vld [vmem:[%s5 + $0x160] sm:$0xff]
          %v3987 = vld [vmem:[%s5 + $0x168] sm:$0xff]
          %v3988 = vld [vmem:[%s5 + $0x170] sm:$0xff]
          %v3989 = vld [vmem:[%s5 + $0x178] sm:$0xff]
          %v3990 = vld [vmem:[%s5 + $0x180] sm:$0xff]
          %v3991 = vld [vmem:[%s5 + $0x188] sm:$0xff]
          %v3992 = vld [vmem:[%s5 + $0x190] sm:$0xff]
          %v3993 = vld [vmem:[%s5 + $0x198] sm:$0xff]
          %v3994 = vld [vmem:[%s5 + $0x1a0] sm:$0xff]
          %v3995 = vld [vmem:[%s5 + $0x1a8] sm:$0xff]
          %v3996 = vld [vmem:[%s5 + $0x1b0] sm:$0xff]
          %v3997 = vld [vmem:[%s5 + $0x1b8] sm:$0xff]
          %v3998 = vld [vmem:[%s5 + $0x1c0] sm:$0xff]
          %v3999 = vld [vmem:[%s5 + $0x1c8] sm:$0xff]
          %v4000 = vld [vmem:[%s5 + $0x1d0] sm:$0xff]
          %v4001 = vld [vmem:[%s5 + $0x1d8] sm:$0xff]
          %v4002 = vld [vmem:[%s5 + $0x1e0] sm:$0xff]
          %v4003 = vld [vmem:[%s5 + $0x1e8] sm:$0xff]
          %v4004 = vld [vmem:[%s5 + $0x1f0] sm:$0xff]
          %v4005 = vld [vmem:[%s5 + $0x1f8] sm:$0xff]
          %v4006 = vld [vmem:[%s5 + $0x200] sm:$0xff]
          %v4007 = vld [vmem:[%s5 + $0x208] sm:$0xff]
          %v4008 = vld [vmem:[%s5 + $0x210] sm:$0xff]
          %v4009 = vld [vmem:[%s5 + $0x218] sm:$0xff]
          %v4010 = vld [vmem:[%s5 + $0x220] sm:$0xff]
          %v4011 = vld [vmem:[%s5 + $0x228] sm:$0xff]
          %v4012 = vld [vmem:[%s5 + $0x230] sm:$0xff]
          %v4013 = vld [vmem:[%s5 + $0x238] sm:$0xff]
          %v4014 = vld [vmem:[%s5 + $0x240] sm:$0xff]
          %v4015 = vld [vmem:[%s5 + $0x248] sm:$0xff]
          %v4016 = vld [vmem:[%s5 + $0x250] sm:$0xff]
          %v4017 = vld [vmem:[%s5 + $0x258] sm:$0xff]
          %v4018 = vld [vmem:[%s5 + $0x260] sm:$0xff]
          %v4019 = vld [vmem:[%s5 + $0x268] sm:$0xff]
          %v4020 = vld [vmem:[%s5 + $0x270] sm:$0xff]
          %v4021 = vld [vmem:[%s5 + $0x278] sm:$0xff]
          %v4022 = vld [vmem:[%s5 + $0x280] sm:$0xff]
          %v4023 = vld [vmem:[%s5 + $0x288] sm:$0xff]
          %v4024 = vld [vmem:[%s5 + $0x290] sm:$0xff]
          %v4025 = vld [vmem:[%s5 + $0x298] sm:$0xff]
          %v4026 = vld [vmem:[%s5 + $0x2a0] sm:$0xff]
          %v4027 = vld [vmem:[%s5 + $0x2a8] sm:$0xff]
          %v4028 = vld [vmem:[%s5 + $0x2b0] sm:$0xff]
          %v4029 = vld [vmem:[%s5 + $0x2b8] sm:$0xff]
          %v4030 = vld [vmem:[%s5 + $0x2c0] sm:$0xff]
          %v4031 = vld [vmem:[%s5 + $0x2c8] sm:$0xff]
          %v4032 = vld [vmem:[%s5 + $0x2d0] sm:$0xff]
          %v4033 = vld [vmem:[%s5 + $0x2d8] sm:$0xff]
          %v4034 = vld [vmem:[%s5 + $0x2e0] sm:$0xff]
          %v4035 = vld [vmem:[%s5 + $0x2e8] sm:$0xff]
          %v4036 = vld [vmem:[%s5 + $0x2f0] sm:$0xff]
          %v4037 = vld [vmem:[%s5 + $0x2f8] sm:$0xff]
          %v4038 = vld [vmem:[%s5 + $0x300] sm:$0xff]
          %v4039 = vld [vmem:[%s5 + $0x308] sm:$0xff]
          %v4040 = vld [vmem:[%s5 + $0x310] sm:$0xff]
          %v4041 = vld [vmem:[%s5 + $0x318] sm:$0xff]
          %v4042 = vld [vmem:[%s5 + $0x320] sm:$0xff]
          %v4043 = vld [vmem:[%s5 + $0x328] sm:$0xff]
          %v4044 = vld [vmem:[%s5 + $0x330] sm:$0xff]
          %v4045 = vld [vmem:[%s5 + $0x338] sm:$0xff]
          %v4046 = vld [vmem:[%s5 + $0x340] sm:$0xff]
          %v4047 = vld [vmem:[%s5 + $0x348] sm:$0xff]
          %v4048 = vld [vmem:[%s5 + $0x350] sm:$0xff]
          %v4049 = vld [vmem:[%s5 + $0x358] sm:$0xff]
          %v4050 = vld [vmem:[%s5 + $0x360] sm:$0xff]
          %v4051 = vld [vmem:[%s5 + $0x368] sm:$0xff]
          %v4052 = vld [vmem:[%s5 + $0x370] sm:$0xff]
          %v4053 = vld [vmem:[%s5 + $0x378] sm:$0xff]
          %v4054 = vld [vmem:[%s5 + $0x380] sm:$0xff]
          %v4055 = vld [vmem:[%s5 + $0x388] sm:$0xff]
          %v4056 = vld [vmem:[%s5 + $0x390] sm:$0xff]
          %v4057 = vld [vmem:[%s5 + $0x398] sm:$0xff]
          %v4058 = vld [vmem:[%s5 + $0x3a0] sm:$0xff]
          %v4059 = vld [vmem:[%s5 + $0x3a8] sm:$0xff]
          %v4060 = vld [vmem:[%s5 + $0x3b0] sm:$0xff]
          %v4061 = vld [vmem:[%s5 + $0x3b8] sm:$0xff]
          %v4062 = vld [vmem:[%s5 + $0x3c0] sm:$0xff]
          %v4063 = vld [vmem:[%s5 + $0x3c8] sm:$0xff]
          %v4064 = vld [vmem:[%s5 + $0x3d0] sm:$0xff]
          %v4065 = vld [vmem:[%s5 + $0x3d8] sm:$0xff]
          %v4066 = vld [vmem:[%s5 + $0x3e0] sm:$0xff]
          %v4067 = vld [vmem:[%s5 + $0x3e8] sm:$0xff]
          %v4068 = vld [vmem:[%s5 + $0x3f0] sm:$0xff]
          %v4069 = vld [vmem:[%s5 + $0x3f8] sm:$0xff]
          %v4070 = vld [vmem:[%s5 + $0x400] sm:$0xff]
          %v4071 = vld [vmem:[%s5 + $0x408] sm:$0xff]
          %v4072 = vld [vmem:[%s5 + $0x410] sm:$0xff]
          %v4073 = vld [vmem:[%s5 + $0x418] sm:$0xff]
          %v4074 = vld [vmem:[%s5 + $0x420] sm:$0xff]
          %v4075 = vld [vmem:[%s5 + $0x428] sm:$0xff]
          %v4076 = vld [vmem:[%s5 + $0x430] sm:$0xff]
          %v4077 = vld [vmem:[%s5 + $0x438] sm:$0xff]
          %v4078 = vld [vmem:[%s5 + $0x440] sm:$0xff]
          %v4079 = vld [vmem:[%s5 + $0x448] sm:$0xff]
          %v4080 = vld [vmem:[%s5 + $0x450] sm:$0xff]
          %v4081 = vld [vmem:[%s5 + $0x458] sm:$0xff]
          %v4082 = vld [vmem:[%s5 + $0x460] sm:$0xff]
          %v4083 = vld [vmem:[%s5 + $0x468] sm:$0xff]
          %v4084 = vld [vmem:[%s5 + $0x470] sm:$0xff]
          %v4085 = vld [vmem:[%s5 + $0x478] sm:$0xff]
          %v4086 = vld [vmem:[%s5 + $0x480] sm:$0xff]
          %v4087 = vld [vmem:[%s5 + $0x488] sm:$0xff]
          %v4088 = vld [vmem:[%s5 + $0x490] sm:$0xff]
          %v4089 = vld [vmem:[%s5 + $0x498] sm:$0xff]
          %v4090 = vld [vmem:[%s5 + $0x4a0] sm:$0xff]
          %v4091 = vld [vmem:[%s5 + $0x4a8] sm:$0xff]
          %v4092 = vld [vmem:[%s5 + $0x4b0] sm:$0xff]
          %v4093 = vld [vmem:[%s5 + $0x4b8] sm:$0xff]
          %v4094 = vld [vmem:[%s5 + $0x4c0] sm:$0xff]
          %v4095 = vld [vmem:[%s5 + $0x4c8] sm:$0xff]
          %v4096 = vld [vmem:[%s5 + $0x4d0] sm:$0xff]
          %v4097 = vld [vmem:[%s5 + $0x4d8] sm:$0xff]
          %v4098 = vld [vmem:[%s5 + $0x4e0] sm:$0xff]
          %v4099 = vld [vmem:[%s5 + $0x4e8] sm:$0xff]
          %v4100 = vld [vmem:[%s5 + $0x4f0] sm:$0xff]
          %v4101 = vld [vmem:[%s5 + $0x4f8] sm:$0xff]
          %v4102 = vld [vmem:[%s5 + $0x500] sm:$0xff]
          %v4103 = vld [vmem:[%s5 + $0x508] sm:$0xff]
          %v4104 = vld [vmem:[%s5 + $0x510] sm:$0xff]
          %v4105 = vld [vmem:[%s5 + $0x518] sm:$0xff]
          %v4106 = vld [vmem:[%s5 + $0x520] sm:$0xff]
          %v4107 = vld [vmem:[%s5 + $0x528] sm:$0xff]
          %v4108 = vld [vmem:[%s5 + $0x530] sm:$0xff]
          %v4109 = vld [vmem:[%s5 + $0x538] sm:$0xff]
          %v4110 = vld [vmem:[%s5 + $0x540] sm:$0xff]
          %v4111 = vld [vmem:[%s5 + $0x548] sm:$0xff]
          %v4112 = vld [vmem:[%s5 + $0x550] sm:$0xff]
          %v4113 = vld [vmem:[%s5 + $0x558] sm:$0xff]
          %v4114 = vld [vmem:[%s5 + $0x560] sm:$0xff]
          %v4115 = vld [vmem:[%s5 + $0x568] sm:$0xff]
          %v4116 = vld [vmem:[%s5 + $0x570] sm:$0xff]
          %v4117 = vld [vmem:[%s5 + $0x578] sm:$0xff]
          %v4118 = vld [vmem:[%s5 + $0x580] sm:$0xff]
          %v4119 = vld [vmem:[%s5 + $0x588] sm:$0xff]
          %v4120 = vld [vmem:[%s5 + $0x590] sm:$0xff]
          %v4121 = vld [vmem:[%s5 + $0x598] sm:$0xff]
          %v4122 = vld [vmem:[%s5 + $0x5a0] sm:$0xff]
          %v4123 = vld [vmem:[%s5 + $0x5a8] sm:$0xff]
          %v4124 = vld [vmem:[%s5 + $0x5b0] sm:$0xff]
          %v4125 = vld [vmem:[%s5 + $0x5b8] sm:$0xff]
          %v4126 = vld [vmem:[%s5 + $0x5c0] sm:$0xff]
          %v4127 = vld [vmem:[%s5 + $0x5c8] sm:$0xff]
          %v4128 = vld [vmem:[%s5 + $0x5d0] sm:$0xff]
          %v4129 = vld [vmem:[%s5 + $0x5d8] sm:$0xff]
          %v4130 = vld [vmem:[%s5 + $0x5e0] sm:$0xff]
          %v4131 = vld [vmem:[%s5 + $0x5e8] sm:$0xff]
          %v4132 = vld [vmem:[%s5 + $0x5f0] sm:$0xff]
          %v4133 = vld [vmem:[%s5 + $0x5f8] sm:$0xff]
          %v4134 = vld [vmem:[%s5 + $0x600] sm:$0xff]
          %v4135 = vld [vmem:[%s5 + $0x608] sm:$0xff]
          %v4136 = vld [vmem:[%s5 + $0x610] sm:$0xff]
          %v4137 = vld [vmem:[%s5 + $0x618] sm:$0xff]
          %v4138 = vld [vmem:[%s5 + $0x620] sm:$0xff]
          %v4139 = vld [vmem:[%s5 + $0x628] sm:$0xff]
          %v4140 = vld [vmem:[%s5 + $0x630] sm:$0xff]
          %v4141 = vld [vmem:[%s5 + $0x638] sm:$0xff]
          %v4142 = vld [vmem:[%s5 + $0x640] sm:$0xff]
          %v4143 = vld [vmem:[%s5 + $0x648] sm:$0xff]
          %v4144 = vld [vmem:[%s5 + $0x650] sm:$0xff]
          %v4145 = vld [vmem:[%s5 + $0x658] sm:$0xff]
          %v4146 = vld [vmem:[%s5 + $0x660] sm:$0xff]
          %v4147 = vld [vmem:[%s5 + $0x668] sm:$0xff]
          %v4148 = vld [vmem:[%s5 + $0x670] sm:$0xff]
          %v4149 = vld [vmem:[%s5 + $0x678] sm:$0xff]
          %v4150 = vld [vmem:[%s5 + $0x680] sm:$0xff]
          %v4151 = vld [vmem:[%s5 + $0x688] sm:$0xff]
          %v4152 = vld [vmem:[%s5 + $0x690] sm:$0xff]
          %v4153 = vld [vmem:[%s5 + $0x698] sm:$0xff]
          %v4154 = vld [vmem:[%s5 + $0x6a0] sm:$0xff]
          %v4155 = vld [vmem:[%s5 + $0x6a8] sm:$0xff]
          %v4156 = vld [vmem:[%s5 + $0x6b0] sm:$0xff]
          %v4157 = vld [vmem:[%s5 + $0x6b8] sm:$0xff]
          %v4158 = vld [vmem:[%s5 + $0x6c0] sm:$0xff]
          %v4159 = vld [vmem:[%s5 + $0x6c8] sm:$0xff]
          %v4160 = vld [vmem:[%s5 + $0x6d0] sm:$0xff]
          %v4161 = vld [vmem:[%s5 + $0x6d8] sm:$0xff]
          %v4162 = vld [vmem:[%s5 + $0x6e0] sm:$0xff]
          %v4163 = vld [vmem:[%s5 + $0x6e8] sm:$0xff]
          %v4164 = vld [vmem:[%s5 + $0x6f0] sm:$0xff]
          %v4165 = vld [vmem:[%s5 + $0x6f8] sm:$0xff]
          %v4166 = vld [vmem:[%s5 + $0x700] sm:$0xff]
          %v4167 = vld [vmem:[%s5 + $0x708] sm:$0xff]
          %v4168 = vld [vmem:[%s5 + $0x710] sm:$0xff]
          %v4169 = vld [vmem:[%s5 + $0x718] sm:$0xff]
          %v4170 = vld [vmem:[%s5 + $0x720] sm:$0xff]
          %v4171 = vld [vmem:[%s5 + $0x728] sm:$0xff]
          %v4172 = vld [vmem:[%s5 + $0x730] sm:$0xff]
          %v4173 = vld [vmem:[%s5 + $0x738] sm:$0xff]
          %v4174 = vld [vmem:[%s5 + $0x740] sm:$0xff]
          %v4175 = vld [vmem:[%s5 + $0x748] sm:$0xff]
          %v4176 = vld [vmem:[%s5 + $0x750] sm:$0xff]
          %v4177 = vld [vmem:[%s5 + $0x758] sm:$0xff]
          %v4178 = vld [vmem:[%s5 + $0x760] sm:$0xff]
          %v4179 = vld [vmem:[%s5 + $0x768] sm:$0xff]
          %v4180 = vld [vmem:[%s5 + $0x770] sm:$0xff]
          %v4181 = vld [vmem:[%s5 + $0x778] sm:$0xff]
          %v4182 = vld [vmem:[%s5 + $0x780] sm:$0xff]
          %v4183 = vld [vmem:[%s5 + $0x788] sm:$0xff]
          %v4184 = vld [vmem:[%s5 + $0x790] sm:$0xff]
          %v4185 = vld [vmem:[%s5 + $0x798] sm:$0xff]
          %v4186 = vld [vmem:[%s5 + $0x7a0] sm:$0xff]
          %v4187 = vld [vmem:[%s5 + $0x7a8] sm:$0xff]
          %v4188 = vld [vmem:[%s5 + $0x7b0] sm:$0xff]
          %v4189 = vld [vmem:[%s5 + $0x7b8] sm:$0xff]
          %v4190 = vld [vmem:[%s5 + $0x7c0] sm:$0xff]
          %v4191 = vld [vmem:[%s5 + $0x7c8] sm:$0xff]
          %v4192 = vld [vmem:[%s5 + $0x7d0] sm:$0xff]
          %v4193 = vld [vmem:[%s5 + $0x7d8] sm:$0xff]
          %v4194 = vld [vmem:[%s5 + $0x7e0] sm:$0xff]
          %v4195 = vld [vmem:[%s5 + $0x7e8] sm:$0xff]
          %v4196 = vld [vmem:[%s5 + $0x7f0] sm:$0xff]
          %v4197 = vld [vmem:[%s5 + $0x7f8] sm:$0xff]
          %v4198 = vld [vmem:[%s5 + $0x800] sm:$0xff]
          %v4199 = vld [vmem:[%s5 + $0x808] sm:$0xff]
          %v4200 = vld [vmem:[%s5 + $0x810] sm:$0xff]
          %v4201 = vld [vmem:[%s5 + $0x818] sm:$0xff]
          %v4202 = vld [vmem:[%s5 + $0x820] sm:$0xff]
          %v4203 = vld [vmem:[%s5 + $0x828] sm:$0xff]
          %v4204 = vld [vmem:[%s5 + $0x830] sm:$0xff]
          %v4205 = vld [vmem:[%s5 + $0x838] sm:$0xff]
          %v4206 = vld [vmem:[%s5 + $0x840] sm:$0xff]
          %v4207 = vld [vmem:[%s5 + $0x848] sm:$0xff]
          %v4208 = vld [vmem:[%s5 + $0x850] sm:$0xff]
          %v4209 = vld [vmem:[%s5 + $0x858] sm:$0xff]
          %v4210 = vld [vmem:[%s5 + $0x860] sm:$0xff]
          %v4211 = vld [vmem:[%s5 + $0x868] sm:$0xff]
          %v4212 = vld [vmem:[%s5 + $0x870] sm:$0xff]
          %v4213 = vld [vmem:[%s5 + $0x878] sm:$0xff]
          %v4214 = vld [vmem:[%s5 + $0x880] sm:$0xff]
          %v4215 = vld [vmem:[%s5 + $0x888] sm:$0xff]
          %v4216 = vld [vmem:[%s5 + $0x890] sm:$0xff]
          %v4217 = vld [vmem:[%s5 + $0x898] sm:$0xff]
          %v4218 = vld [vmem:[%s5 + $0x8a0] sm:$0xff]
          %v4219 = vld [vmem:[%s5 + $0x8a8] sm:$0xff]
          %v4220 = vld [vmem:[%s5 + $0x8b0] sm:$0xff]
          %v4221 = vld [vmem:[%s5 + $0x8b8] sm:$0xff]
          %v4222 = vld [vmem:[%s5 + $0x8c0] sm:$0xff]
          %v4223 = vld [vmem:[%s5 + $0x8c8] sm:$0xff]
          %v4224 = vld [vmem:[%s5 + $0x8d0] sm:$0xff]
          %v4225 = vld [vmem:[%s5 + $0x8d8] sm:$0xff]
          %v4226 = vld [vmem:[%s5 + $0x8e0] sm:$0xff]
          %v4227 = vld [vmem:[%s5 + $0x8e8] sm:$0xff]
          %v4228 = vld [vmem:[%s5 + $0x8f0] sm:$0xff]
          %v4229 = vld [vmem:[%s5 + $0x8f8] sm:$0xff]
          %v4230 = vld [vmem:[%s5 + $0x900] sm:$0xff]
          %v4231 = vld [vmem:[%s5 + $0x908] sm:$0xff]
          %v4232 = vld [vmem:[%s5 + $0x910] sm:$0xff]
          %v4233 = vld [vmem:[%s5 + $0x918] sm:$0xff]
          %v4234 = vld [vmem:[%s5 + $0x920] sm:$0xff]
          %v4235 = vld [vmem:[%s5 + $0x928] sm:$0xff]
          %v4236 = vld [vmem:[%s5 + $0x930] sm:$0xff]
          %v4237 = vld [vmem:[%s5 + $0x938] sm:$0xff]
          %v4238 = vld [vmem:[%s5 + $0x940] sm:$0xff]
          %v4239 = vld [vmem:[%s5 + $0x948] sm:$0xff]
          %v4240 = vld [vmem:[%s5 + $0x950] sm:$0xff]
          %v4241 = vld [vmem:[%s5 + $0x958] sm:$0xff]
          %v4242 = vld [vmem:[%s5 + $0x960] sm:$0xff]
          %v4243 = vld [vmem:[%s5 + $0x968] sm:$0xff]
          %v4244 = vld [vmem:[%s5 + $0x970] sm:$0xff]
          %v4245 = vld [vmem:[%s5 + $0x978] sm:$0xff]
          %v4246 = vld [vmem:[%s5 + $0x980] sm:$0xff]
          %v4247 = vld [vmem:[%s5 + $0x988] sm:$0xff]
          %v4248 = vld [vmem:[%s5 + $0x990] sm:$0xff]
          %v4249 = vld [vmem:[%s5 + $0x998] sm:$0xff]
          %v4250 = vld [vmem:[%s5 + $0x9a0] sm:$0xff]
          %v4251 = vld [vmem:[%s5 + $0x9a8] sm:$0xff]
          %v4252 = vld [vmem:[%s5 + $0x9b0] sm:$0xff]
          %v4253 = vld [vmem:[%s5 + $0x9b8] sm:$0xff]
          %v4254 = vld [vmem:[%s5 + $0x9c0] sm:$0xff]
          %v4255 = vld [vmem:[%s5 + $0x9c8] sm:$0xff]
          %v4256 = vld [vmem:[%s5 + $0x9d0] sm:$0xff]
          %v4257 = vld [vmem:[%s5 + $0x9d8] sm:$0xff]
          %v4258 = vld [vmem:[%s5 + $0x9e0] sm:$0xff]
          %v4259 = vld [vmem:[%s5 + $0x9e8] sm:$0xff]
          %v4260 = vld [vmem:[%s5 + $0x9f0] sm:$0xff]
          %v4261 = vld [vmem:[%s5 + $0x9f8] sm:$0xff]
          %v4262 = vld [vmem:[%s6] sm:$0xf]
          %v4583 = vunpack.c.l.b16 %v3942
          %v4584 = vunpack.c.h.b16 %v3942
          %v4585 = vunpack.c.l.b16 %v3943
          %v4586 = vunpack.c.h.b16 %v3943
          %v4587 = vunpack.c.l.b16 %v3944
          %v4588 = vunpack.c.h.b16 %v3944
          %v4589 = vunpack.c.l.b16 %v3945
          %v4590 = vunpack.c.h.b16 %v3945
          %v4591 = vunpack.c.l.b16 %v3946
          %v4592 = vunpack.c.h.b16 %v3946
          %v4593 = vunpack.c.l.b16 %v3947
          %v4594 = vunpack.c.h.b16 %v3947
          %v4595 = vunpack.c.l.b16 %v3948
          %v4596 = vunpack.c.h.b16 %v3948
          %v4597 = vunpack.c.l.b16 %v3949
          %v4598 = vunpack.c.h.b16 %v3949
          %v4599 = vunpack.c.l.b16 %v3950
          %v4600 = vunpack.c.h.b16 %v3950
          %v4601 = vunpack.c.l.b16 %v3951
          %v4602 = vunpack.c.h.b16 %v3951
          %v4603 = vunpack.c.l.b16 %v3952
          %v4604 = vunpack.c.h.b16 %v3952
          %v4605 = vunpack.c.l.b16 %v3953
          %v4606 = vunpack.c.h.b16 %v3953
          %v4607 = vunpack.c.l.b16 %v3954
          %v4608 = vunpack.c.h.b16 %v3954
          %v4609 = vunpack.c.l.b16 %v3955
          %v4610 = vunpack.c.h.b16 %v3955
          %v4611 = vunpack.c.l.b16 %v3956
          %v4612 = vunpack.c.h.b16 %v3956
          %v4613 = vunpack.c.l.b16 %v3957
          %v4614 = vunpack.c.h.b16 %v3957
          %v4615 = vunpack.c.l.b16 %v3958
          %v4616 = vunpack.c.h.b16 %v3958
          %v4617 = vunpack.c.l.b16 %v3959
          %v4618 = vunpack.c.h.b16 %v3959
          %v4619 = vunpack.c.l.b16 %v3960
          %v4620 = vunpack.c.h.b16 %v3960
          %v4621 = vunpack.c.l.b16 %v3961
          %v4622 = vunpack.c.h.b16 %v3961
          %v4623 = vunpack.c.l.b16 %v3962
          %v4624 = vunpack.c.h.b16 %v3962
          %v4625 = vunpack.c.l.b16 %v3963
          %v4626 = vunpack.c.h.b16 %v3963
          %v4627 = vunpack.c.l.b16 %v3964
          %v4628 = vunpack.c.h.b16 %v3964
          %v4629 = vunpack.c.l.b16 %v3965
          %v4630 = vunpack.c.h.b16 %v3965
          %v4631 = vunpack.c.l.b16 %v3966
          %v4632 = vunpack.c.h.b16 %v3966
          %v4633 = vunpack.c.l.b16 %v3967
          %v4634 = vunpack.c.h.b16 %v3967
          %v4635 = vunpack.c.l.b16 %v3968
          %v4636 = vunpack.c.h.b16 %v3968
          %v4637 = vunpack.c.l.b16 %v3969
          %v4638 = vunpack.c.h.b16 %v3969
          %v4639 = vunpack.c.l.b16 %v3970
          %v4640 = vunpack.c.h.b16 %v3970
          %v4641 = vunpack.c.l.b16 %v3971
          %v4642 = vunpack.c.h.b16 %v3971
          %v4643 = vunpack.c.l.b16 %v3972
          %v4644 = vunpack.c.h.b16 %v3972
          %v4645 = vunpack.c.l.b16 %v3973
          %v4646 = vunpack.c.h.b16 %v3973
          %v4647 = vunpack.c.l.b16 %v3974
          %v4648 = vunpack.c.h.b16 %v3974
          %v4649 = vunpack.c.l.b16 %v3975
          %v4650 = vunpack.c.h.b16 %v3975
          %v4651 = vunpack.c.l.b16 %v3976
          %v4652 = vunpack.c.h.b16 %v3976
          %v4653 = vunpack.c.l.b16 %v3977
          %v4654 = vunpack.c.h.b16 %v3977
          %v4655 = vunpack.c.l.b16 %v3978
          %v4656 = vunpack.c.h.b16 %v3978
          %v4657 = vunpack.c.l.b16 %v3979
          %v4658 = vunpack.c.h.b16 %v3979
          %v4659 = vunpack.c.l.b16 %v3980
          %v4660 = vunpack.c.h.b16 %v3980
          %v4661 = vunpack.c.l.b16 %v3981
          %v4662 = vunpack.c.h.b16 %v3981
          %v4663 = vunpack.c.l.b16 %v3982
          %v4664 = vunpack.c.h.b16 %v3982
          %v4665 = vunpack.c.l.b16 %v3983
          %v4666 = vunpack.c.h.b16 %v3983
          %v4667 = vunpack.c.l.b16 %v3984
          %v4668 = vunpack.c.h.b16 %v3984
          %v4669 = vunpack.c.l.b16 %v3985
          %v4670 = vunpack.c.h.b16 %v3985
          %v4671 = vunpack.c.l.b16 %v3986
          %v4672 = vunpack.c.h.b16 %v3986
          %v4673 = vunpack.c.l.b16 %v3987
          %v4674 = vunpack.c.h.b16 %v3987
          %v4675 = vunpack.c.l.b16 %v3988
          %v4676 = vunpack.c.h.b16 %v3988
          %v4677 = vunpack.c.l.b16 %v3989
          %v4678 = vunpack.c.h.b16 %v3989
          %v4679 = vunpack.c.l.b16 %v3990
          %v4680 = vunpack.c.h.b16 %v3990
          %v4681 = vunpack.c.l.b16 %v3991
          %v4682 = vunpack.c.h.b16 %v3991
          %v4683 = vunpack.c.l.b16 %v3992
          %v4684 = vunpack.c.h.b16 %v3992
          %v4685 = vunpack.c.l.b16 %v3993
          %v4686 = vunpack.c.h.b16 %v3993
          %v4687 = vunpack.c.l.b16 %v3994
          %v4688 = vunpack.c.h.b16 %v3994
          %v4689 = vunpack.c.l.b16 %v3995
          %v4690 = vunpack.c.h.b16 %v3995
          %v4691 = vunpack.c.l.b16 %v3996
          %v4692 = vunpack.c.h.b16 %v3996
          %v4693 = vunpack.c.l.b16 %v3997
          %v4694 = vunpack.c.h.b16 %v3997
          %v4695 = vunpack.c.l.b16 %v3998
          %v4696 = vunpack.c.h.b16 %v3998
          %v4697 = vunpack.c.l.b16 %v3999
          %v4698 = vunpack.c.h.b16 %v3999
          %v4699 = vunpack.c.l.b16 %v4000
          %v4700 = vunpack.c.h.b16 %v4000
          %v4701 = vunpack.c.l.b16 %v4001
          %v4702 = vunpack.c.h.b16 %v4001
          %v4703 = vunpack.c.l.b16 %v4002
          %v4704 = vunpack.c.h.b16 %v4002
          %v4705 = vunpack.c.l.b16 %v4003
          %v4706 = vunpack.c.h.b16 %v4003
          %v4707 = vunpack.c.l.b16 %v4004
          %v4708 = vunpack.c.h.b16 %v4004
          %v4709 = vunpack.c.l.b16 %v4005
          %v4710 = vunpack.c.h.b16 %v4005
          %v4711 = vunpack.c.l.b16 %v4006
          %v4712 = vunpack.c.h.b16 %v4006
          %v4713 = vunpack.c.l.b16 %v4007
          %v4714 = vunpack.c.h.b16 %v4007
          %v4715 = vunpack.c.l.b16 %v4008
          %v4716 = vunpack.c.h.b16 %v4008
          %v4717 = vunpack.c.l.b16 %v4009
          %v4718 = vunpack.c.h.b16 %v4009
          %v4719 = vunpack.c.l.b16 %v4010
          %v4720 = vunpack.c.h.b16 %v4010
          %v4721 = vunpack.c.l.b16 %v4011
          %v4722 = vunpack.c.h.b16 %v4011
          %v4723 = vunpack.c.l.b16 %v4012
          %v4724 = vunpack.c.h.b16 %v4012
          %v4725 = vunpack.c.l.b16 %v4013
          %v4726 = vunpack.c.h.b16 %v4013
          %v4727 = vunpack.c.l.b16 %v4014
          %v4728 = vunpack.c.h.b16 %v4014
          %v4729 = vunpack.c.l.b16 %v4015
          %v4730 = vunpack.c.h.b16 %v4015
          %v4731 = vunpack.c.l.b16 %v4016
          %v4732 = vunpack.c.h.b16 %v4016
          %v4733 = vunpack.c.l.b16 %v4017
          %v4734 = vunpack.c.h.b16 %v4017
          %v4735 = vunpack.c.l.b16 %v4018
          %v4736 = vunpack.c.h.b16 %v4018
          %v4737 = vunpack.c.l.b16 %v4019
          %v4738 = vunpack.c.h.b16 %v4019
          %v4739 = vunpack.c.l.b16 %v4020
          %v4740 = vunpack.c.h.b16 %v4020
          %v4741 = vunpack.c.l.b16 %v4021
          %v4742 = vunpack.c.h.b16 %v4021
          %v4743 = vunpack.c.l.b16 %v4022
          %v4744 = vunpack.c.h.b16 %v4022
          %v4745 = vunpack.c.l.b16 %v4023
          %v4746 = vunpack.c.h.b16 %v4023
          %v4747 = vunpack.c.l.b16 %v4024
          %v4748 = vunpack.c.h.b16 %v4024
          %v4749 = vunpack.c.l.b16 %v4025
          %v4750 = vunpack.c.h.b16 %v4025
          %v4751 = vunpack.c.l.b16 %v4026
          %v4752 = vunpack.c.h.b16 %v4026
          %v4753 = vunpack.c.l.b16 %v4027
          %v4754 = vunpack.c.h.b16 %v4027
          %v4755 = vunpack.c.l.b16 %v4028
          %v4756 = vunpack.c.h.b16 %v4028
          %v4757 = vunpack.c.l.b16 %v4029
          %v4758 = vunpack.c.h.b16 %v4029
          %v4759 = vunpack.c.l.b16 %v4030
          %v4760 = vunpack.c.h.b16 %v4030
          %v4761 = vunpack.c.l.b16 %v4031
          %v4762 = vunpack.c.h.b16 %v4031
          %v4763 = vunpack.c.l.b16 %v4032
          %v4764 = vunpack.c.h.b16 %v4032
          %v4765 = vunpack.c.l.b16 %v4033
          %v4766 = vunpack.c.h.b16 %v4033
          %v4767 = vunpack.c.l.b16 %v4034
          %v4768 = vunpack.c.h.b16 %v4034
          %v4769 = vunpack.c.l.b16 %v4035
          %v4770 = vunpack.c.h.b16 %v4035
          %v4771 = vunpack.c.l.b16 %v4036
          %v4772 = vunpack.c.h.b16 %v4036
          %v4773 = vunpack.c.l.b16 %v4037
          %v4774 = vunpack.c.h.b16 %v4037
          %v4775 = vunpack.c.l.b16 %v4038
          %v4776 = vunpack.c.h.b16 %v4038
          %v4777 = vunpack.c.l.b16 %v4039
          %v4778 = vunpack.c.h.b16 %v4039
          %v4779 = vunpack.c.l.b16 %v4040
          %v4780 = vunpack.c.h.b16 %v4040
          %v4781 = vunpack.c.l.b16 %v4041
          %v4782 = vunpack.c.h.b16 %v4041
          %v4783 = vunpack.c.l.b16 %v4042
          %v4784 = vunpack.c.h.b16 %v4042
          %v4785 = vunpack.c.l.b16 %v4043
          %v4786 = vunpack.c.h.b16 %v4043
          %v4787 = vunpack.c.l.b16 %v4044
          %v4788 = vunpack.c.h.b16 %v4044
          %v4789 = vunpack.c.l.b16 %v4045
          %v4790 = vunpack.c.h.b16 %v4045
          %v4791 = vunpack.c.l.b16 %v4046
          %v4792 = vunpack.c.h.b16 %v4046
          %v4793 = vunpack.c.l.b16 %v4047
          %v4794 = vunpack.c.h.b16 %v4047
          %v4795 = vunpack.c.l.b16 %v4048
          %v4796 = vunpack.c.h.b16 %v4048
          %v4797 = vunpack.c.l.b16 %v4049
          %v4798 = vunpack.c.h.b16 %v4049
          %v4799 = vunpack.c.l.b16 %v4050
          %v4800 = vunpack.c.h.b16 %v4050
          %v4801 = vunpack.c.l.b16 %v4051
          %v4802 = vunpack.c.h.b16 %v4051
          %v4803 = vunpack.c.l.b16 %v4052
          %v4804 = vunpack.c.h.b16 %v4052
          %v4805 = vunpack.c.l.b16 %v4053
          %v4806 = vunpack.c.h.b16 %v4053
          %v4807 = vunpack.c.l.b16 %v4054
          %v4808 = vunpack.c.h.b16 %v4054
          %v4809 = vunpack.c.l.b16 %v4055
          %v4810 = vunpack.c.h.b16 %v4055
          %v4811 = vunpack.c.l.b16 %v4056
          %v4812 = vunpack.c.h.b16 %v4056
          %v4813 = vunpack.c.l.b16 %v4057
          %v4814 = vunpack.c.h.b16 %v4057
          %v4815 = vunpack.c.l.b16 %v4058
          %v4816 = vunpack.c.h.b16 %v4058
          %v4817 = vunpack.c.l.b16 %v4059
          %v4818 = vunpack.c.h.b16 %v4059
          %v4819 = vunpack.c.l.b16 %v4060
          %v4820 = vunpack.c.h.b16 %v4060
          %v4821 = vunpack.c.l.b16 %v4061
          %v4822 = vunpack.c.h.b16 %v4061
          %v4823 = vunpack.c.l.b16 %v4062
          %v4824 = vunpack.c.h.b16 %v4062
          %v4825 = vunpack.c.l.b16 %v4063
          %v4826 = vunpack.c.h.b16 %v4063
          %v4827 = vunpack.c.l.b16 %v4064
          %v4828 = vunpack.c.h.b16 %v4064
          %v4829 = vunpack.c.l.b16 %v4065
          %v4830 = vunpack.c.h.b16 %v4065
          %v4831 = vunpack.c.l.b16 %v4066
          %v4832 = vunpack.c.h.b16 %v4066
          %v4833 = vunpack.c.l.b16 %v4067
          %v4834 = vunpack.c.h.b16 %v4067
          %v4835 = vunpack.c.l.b16 %v4068
          %v4836 = vunpack.c.h.b16 %v4068
          %v4837 = vunpack.c.l.b16 %v4069
          %v4838 = vunpack.c.h.b16 %v4069
          %v4839 = vunpack.c.l.b16 %v4070
          %v4840 = vunpack.c.h.b16 %v4070
          %v4841 = vunpack.c.l.b16 %v4071
          %v4842 = vunpack.c.h.b16 %v4071
          %v4843 = vunpack.c.l.b16 %v4072
          %v4844 = vunpack.c.h.b16 %v4072
          %v4845 = vunpack.c.l.b16 %v4073
          %v4846 = vunpack.c.h.b16 %v4073
          %v4847 = vunpack.c.l.b16 %v4074
          %v4848 = vunpack.c.h.b16 %v4074
          %v4849 = vunpack.c.l.b16 %v4075
          %v4850 = vunpack.c.h.b16 %v4075
          %v4851 = vunpack.c.l.b16 %v4076
          %v4852 = vunpack.c.h.b16 %v4076
          %v4853 = vunpack.c.l.b16 %v4077
          %v4854 = vunpack.c.h.b16 %v4077
          %v4855 = vunpack.c.l.b16 %v4078
          %v4856 = vunpack.c.h.b16 %v4078
          %v4857 = vunpack.c.l.b16 %v4079
          %v4858 = vunpack.c.h.b16 %v4079
          %v4859 = vunpack.c.l.b16 %v4080
          %v4860 = vunpack.c.h.b16 %v4080
          %v4861 = vunpack.c.l.b16 %v4081
          %v4862 = vunpack.c.h.b16 %v4081
          %v4863 = vunpack.c.l.b16 %v4082
          %v4864 = vunpack.c.h.b16 %v4082
          %v4865 = vunpack.c.l.b16 %v4083
          %v4866 = vunpack.c.h.b16 %v4083
          %v4867 = vunpack.c.l.b16 %v4084
          %v4868 = vunpack.c.h.b16 %v4084
          %v4869 = vunpack.c.l.b16 %v4085
          %v4870 = vunpack.c.h.b16 %v4085
          %v4871 = vunpack.c.l.b16 %v4086
          %v4872 = vunpack.c.h.b16 %v4086
          %v4873 = vunpack.c.l.b16 %v4087
          %v4874 = vunpack.c.h.b16 %v4087
          %v4875 = vunpack.c.l.b16 %v4088
          %v4876 = vunpack.c.h.b16 %v4088
          %v4877 = vunpack.c.l.b16 %v4089
          %v4878 = vunpack.c.h.b16 %v4089
          %v4879 = vunpack.c.l.b16 %v4090
          %v4880 = vunpack.c.h.b16 %v4090
          %v4881 = vunpack.c.l.b16 %v4091
          %v4882 = vunpack.c.h.b16 %v4091
          %v4883 = vunpack.c.l.b16 %v4092
          %v4884 = vunpack.c.h.b16 %v4092
          %v4885 = vunpack.c.l.b16 %v4093
          %v4886 = vunpack.c.h.b16 %v4093
          %v4887 = vunpack.c.l.b16 %v4094
          %v4888 = vunpack.c.h.b16 %v4094
          %v4889 = vunpack.c.l.b16 %v4095
          %v4890 = vunpack.c.h.b16 %v4095
          %v4891 = vunpack.c.l.b16 %v4096
          %v4892 = vunpack.c.h.b16 %v4096
          %v4893 = vunpack.c.l.b16 %v4097
          %v4894 = vunpack.c.h.b16 %v4097
          %v4895 = vunpack.c.l.b16 %v4098
          %v4896 = vunpack.c.h.b16 %v4098
          %v4897 = vunpack.c.l.b16 %v4099
          %v4898 = vunpack.c.h.b16 %v4099
          %v4899 = vunpack.c.l.b16 %v4100
          %v4900 = vunpack.c.h.b16 %v4100
          %v4901 = vunpack.c.l.b16 %v4101
          %v4902 = vunpack.c.h.b16 %v4101
          %v4903 = vunpack.c.l.b16 %v4102
          %v4904 = vunpack.c.h.b16 %v4102
          %v4905 = vunpack.c.l.b16 %v4103
          %v4906 = vunpack.c.h.b16 %v4103
          %v4907 = vunpack.c.l.b16 %v4104
          %v4908 = vunpack.c.h.b16 %v4104
          %v4909 = vunpack.c.l.b16 %v4105
          %v4910 = vunpack.c.h.b16 %v4105
          %v4911 = vunpack.c.l.b16 %v4106
          %v4912 = vunpack.c.h.b16 %v4106
          %v4913 = vunpack.c.l.b16 %v4107
          %v4914 = vunpack.c.h.b16 %v4107
          %v4915 = vunpack.c.l.b16 %v4108
          %v4916 = vunpack.c.h.b16 %v4108
          %v4917 = vunpack.c.l.b16 %v4109
          %v4918 = vunpack.c.h.b16 %v4109
          %v4919 = vunpack.c.l.b16 %v4110
          %v4920 = vunpack.c.h.b16 %v4110
          %v4921 = vunpack.c.l.b16 %v4111
          %v4922 = vunpack.c.h.b16 %v4111
          %v4923 = vunpack.c.l.b16 %v4112
          %v4924 = vunpack.c.h.b16 %v4112
          %v4925 = vunpack.c.l.b16 %v4113
          %v4926 = vunpack.c.h.b16 %v4113
          %v4927 = vunpack.c.l.b16 %v4114
          %v4928 = vunpack.c.h.b16 %v4114
          %v4929 = vunpack.c.l.b16 %v4115
          %v4930 = vunpack.c.h.b16 %v4115
          %v4931 = vunpack.c.l.b16 %v4116
          %v4932 = vunpack.c.h.b16 %v4116
          %v4933 = vunpack.c.l.b16 %v4117
          %v4934 = vunpack.c.h.b16 %v4117
          %v4935 = vunpack.c.l.b16 %v4118
          %v4936 = vunpack.c.h.b16 %v4118
          %v4937 = vunpack.c.l.b16 %v4119
          %v4938 = vunpack.c.h.b16 %v4119
          %v4939 = vunpack.c.l.b16 %v4120
          %v4940 = vunpack.c.h.b16 %v4120
          %v4941 = vunpack.c.l.b16 %v4121
          %v4942 = vunpack.c.h.b16 %v4121
          %v4943 = vunpack.c.l.b16 %v4122
          %v4944 = vunpack.c.h.b16 %v4122
          %v4945 = vunpack.c.l.b16 %v4123
          %v4946 = vunpack.c.h.b16 %v4123
          %v4947 = vunpack.c.l.b16 %v4124
          %v4948 = vunpack.c.h.b16 %v4124
          %v4949 = vunpack.c.l.b16 %v4125
          %v4950 = vunpack.c.h.b16 %v4125
          %v4951 = vunpack.c.l.b16 %v4126
          %v4952 = vunpack.c.h.b16 %v4126
          %v4953 = vunpack.c.l.b16 %v4127
          %v4954 = vunpack.c.h.b16 %v4127
          %v4955 = vunpack.c.l.b16 %v4128
          %v4956 = vunpack.c.h.b16 %v4128
          %v4957 = vunpack.c.l.b16 %v4129
          %v4958 = vunpack.c.h.b16 %v4129
          %v4959 = vunpack.c.l.b16 %v4130
          %v4960 = vunpack.c.h.b16 %v4130
          %v4961 = vunpack.c.l.b16 %v4131
          %v4962 = vunpack.c.h.b16 %v4131
          %v4963 = vunpack.c.l.b16 %v4132
          %v4964 = vunpack.c.h.b16 %v4132
          %v4965 = vunpack.c.l.b16 %v4133
          %v4966 = vunpack.c.h.b16 %v4133
          %v4967 = vunpack.c.l.b16 %v4134
          %v4968 = vunpack.c.h.b16 %v4134
          %v4969 = vunpack.c.l.b16 %v4135
          %v4970 = vunpack.c.h.b16 %v4135
          %v4971 = vunpack.c.l.b16 %v4136
          %v4972 = vunpack.c.h.b16 %v4136
          %v4973 = vunpack.c.l.b16 %v4137
          %v4974 = vunpack.c.h.b16 %v4137
          %v4975 = vunpack.c.l.b16 %v4138
          %v4976 = vunpack.c.h.b16 %v4138
          %v4977 = vunpack.c.l.b16 %v4139
          %v4978 = vunpack.c.h.b16 %v4139
          %v4979 = vunpack.c.l.b16 %v4140
          %v4980 = vunpack.c.h.b16 %v4140
          %v4981 = vunpack.c.l.b16 %v4141
          %v4982 = vunpack.c.h.b16 %v4141
          %v4983 = vunpack.c.l.b16 %v4142
          %v4984 = vunpack.c.h.b16 %v4142
          %v4985 = vunpack.c.l.b16 %v4143
          %v4986 = vunpack.c.h.b16 %v4143
          %v4987 = vunpack.c.l.b16 %v4144
          %v4988 = vunpack.c.h.b16 %v4144
          %v4989 = vunpack.c.l.b16 %v4145
          %v4990 = vunpack.c.h.b16 %v4145
          %v4991 = vunpack.c.l.b16 %v4146
          %v4992 = vunpack.c.h.b16 %v4146
          %v4993 = vunpack.c.l.b16 %v4147
          %v4994 = vunpack.c.h.b16 %v4147
          %v4995 = vunpack.c.l.b16 %v4148
          %v4996 = vunpack.c.h.b16 %v4148
          %v4997 = vunpack.c.l.b16 %v4149
          %v4998 = vunpack.c.h.b16 %v4149
          %v4999 = vunpack.c.l.b16 %v4150
          %v5000 = vunpack.c.h.b16 %v4150
          %v5001 = vunpack.c.l.b16 %v4151
          %v5002 = vunpack.c.h.b16 %v4151
          %v5003 = vunpack.c.l.b16 %v4152
          %v5004 = vunpack.c.h.b16 %v4152
          %v5005 = vunpack.c.l.b16 %v4153
          %v5006 = vunpack.c.h.b16 %v4153
          %v5007 = vunpack.c.l.b16 %v4154
          %v5008 = vunpack.c.h.b16 %v4154
          %v5009 = vunpack.c.l.b16 %v4155
          %v5010 = vunpack.c.h.b16 %v4155
          %v5011 = vunpack.c.l.b16 %v4156
          %v5012 = vunpack.c.h.b16 %v4156
          %v5013 = vunpack.c.l.b16 %v4157
          %v5014 = vunpack.c.h.b16 %v4157
          %v5015 = vunpack.c.l.b16 %v4158
          %v5016 = vunpack.c.h.b16 %v4158
          %v5017 = vunpack.c.l.b16 %v4159
          %v5018 = vunpack.c.h.b16 %v4159
          %v5019 = vunpack.c.l.b16 %v4160
          %v5020 = vunpack.c.h.b16 %v4160
          %v5021 = vunpack.c.l.b16 %v4161
          %v5022 = vunpack.c.h.b16 %v4161
          %v5023 = vunpack.c.l.b16 %v4162
          %v5024 = vunpack.c.h.b16 %v4162
          %v5025 = vunpack.c.l.b16 %v4163
          %v5026 = vunpack.c.h.b16 %v4163
          %v5027 = vunpack.c.l.b16 %v4164
          %v5028 = vunpack.c.h.b16 %v4164
          %v5029 = vunpack.c.l.b16 %v4165
          %v5030 = vunpack.c.h.b16 %v4165
          %v5031 = vunpack.c.l.b16 %v4166
          %v5032 = vunpack.c.h.b16 %v4166
          %v5033 = vunpack.c.l.b16 %v4167
          %v5034 = vunpack.c.h.b16 %v4167
          %v5035 = vunpack.c.l.b16 %v4168
          %v5036 = vunpack.c.h.b16 %v4168
          %v5037 = vunpack.c.l.b16 %v4169
          %v5038 = vunpack.c.h.b16 %v4169
          %v5039 = vunpack.c.l.b16 %v4170
          %v5040 = vunpack.c.h.b16 %v4170
          %v5041 = vunpack.c.l.b16 %v4171
          %v5042 = vunpack.c.h.b16 %v4171
          %v5043 = vunpack.c.l.b16 %v4172
          %v5044 = vunpack.c.h.b16 %v4172
          %v5045 = vunpack.c.l.b16 %v4173
          %v5046 = vunpack.c.h.b16 %v4173
          %v5047 = vunpack.c.l.b16 %v4174
          %v5048 = vunpack.c.h.b16 %v4174
          %v5049 = vunpack.c.l.b16 %v4175
          %v5050 = vunpack.c.h.b16 %v4175
          %v5051 = vunpack.c.l.b16 %v4176
          %v5052 = vunpack.c.h.b16 %v4176
          %v5053 = vunpack.c.l.b16 %v4177
          %v5054 = vunpack.c.h.b16 %v4177
          %v5055 = vunpack.c.l.b16 %v4178
          %v5056 = vunpack.c.h.b16 %v4178
          %v5057 = vunpack.c.l.b16 %v4179
          %v5058 = vunpack.c.h.b16 %v4179
          %v5059 = vunpack.c.l.b16 %v4180
          %v5060 = vunpack.c.h.b16 %v4180
          %v5061 = vunpack.c.l.b16 %v4181
          %v5062 = vunpack.c.h.b16 %v4181
          %v5063 = vunpack.c.l.b16 %v4182
          %v5064 = vunpack.c.h.b16 %v4182
          %v5065 = vunpack.c.l.b16 %v4183
          %v5066 = vunpack.c.h.b16 %v4183
          %v5067 = vunpack.c.l.b16 %v4184
          %v5068 = vunpack.c.h.b16 %v4184
          %v5069 = vunpack.c.l.b16 %v4185
          %v5070 = vunpack.c.h.b16 %v4185
          %v5071 = vunpack.c.l.b16 %v4186
          %v5072 = vunpack.c.h.b16 %v4186
          %v5073 = vunpack.c.l.b16 %v4187
          %v5074 = vunpack.c.h.b16 %v4187
          %v5075 = vunpack.c.l.b16 %v4188
          %v5076 = vunpack.c.h.b16 %v4188
          %v5077 = vunpack.c.l.b16 %v4189
          %v5078 = vunpack.c.h.b16 %v4189
          %v5079 = vunpack.c.l.b16 %v4190
          %v5080 = vunpack.c.h.b16 %v4190
          %v5081 = vunpack.c.l.b16 %v4191
          %v5082 = vunpack.c.h.b16 %v4191
          %v5083 = vunpack.c.l.b16 %v4192
          %v5084 = vunpack.c.h.b16 %v4192
          %v5085 = vunpack.c.l.b16 %v4193
          %v5086 = vunpack.c.h.b16 %v4193
          %v5087 = vunpack.c.l.b16 %v4194
          %v5088 = vunpack.c.h.b16 %v4194
          %v5089 = vunpack.c.l.b16 %v4195
          %v5090 = vunpack.c.h.b16 %v4195
          %v5091 = vunpack.c.l.b16 %v4196
          %v5092 = vunpack.c.h.b16 %v4196
          %v5093 = vunpack.c.l.b16 %v4197
          %v5094 = vunpack.c.h.b16 %v4197
          %v5095 = vunpack.c.l.b16 %v4198
          %v5096 = vunpack.c.h.b16 %v4198
          %v5097 = vunpack.c.l.b16 %v4199
          %v5098 = vunpack.c.h.b16 %v4199
          %v5099 = vunpack.c.l.b16 %v4200
          %v5100 = vunpack.c.h.b16 %v4200
          %v5101 = vunpack.c.l.b16 %v4201
          %v5102 = vunpack.c.h.b16 %v4201
          %v5103 = vunpack.c.l.b16 %v4202
          %v5104 = vunpack.c.h.b16 %v4202
          %v5105 = vunpack.c.l.b16 %v4203
          %v5106 = vunpack.c.h.b16 %v4203
          %v5107 = vunpack.c.l.b16 %v4204
          %v5108 = vunpack.c.h.b16 %v4204
          %v5109 = vunpack.c.l.b16 %v4205
          %v5110 = vunpack.c.h.b16 %v4205
          %v5111 = vunpack.c.l.b16 %v4206
          %v5112 = vunpack.c.h.b16 %v4206
          %v5113 = vunpack.c.l.b16 %v4207
          %v5114 = vunpack.c.h.b16 %v4207
          %v5115 = vunpack.c.l.b16 %v4208
          %v5116 = vunpack.c.h.b16 %v4208
          %v5117 = vunpack.c.l.b16 %v4209
          %v5118 = vunpack.c.h.b16 %v4209
          %v5119 = vunpack.c.l.b16 %v4210
          %v5120 = vunpack.c.h.b16 %v4210
          %v5121 = vunpack.c.l.b16 %v4211
          %v5122 = vunpack.c.h.b16 %v4211
          %v5123 = vunpack.c.l.b16 %v4212
          %v5124 = vunpack.c.h.b16 %v4212
          %v5125 = vunpack.c.l.b16 %v4213
          %v5126 = vunpack.c.h.b16 %v4213
          %v5127 = vunpack.c.l.b16 %v4214
          %v5128 = vunpack.c.h.b16 %v4214
          %v5129 = vunpack.c.l.b16 %v4215
          %v5130 = vunpack.c.h.b16 %v4215
          %v5131 = vunpack.c.l.b16 %v4216
          %v5132 = vunpack.c.h.b16 %v4216
          %v5133 = vunpack.c.l.b16 %v4217
          %v5134 = vunpack.c.h.b16 %v4217
          %v5135 = vunpack.c.l.b16 %v4218
          %v5136 = vunpack.c.h.b16 %v4218
          %v5137 = vunpack.c.l.b16 %v4219
          %v5138 = vunpack.c.h.b16 %v4219
          %v5139 = vunpack.c.l.b16 %v4220
          %v5140 = vunpack.c.h.b16 %v4220
          %v5141 = vunpack.c.l.b16 %v4221
          %v5142 = vunpack.c.h.b16 %v4221
          %v5143 = vunpack.c.l.b16 %v4222
          %v5144 = vunpack.c.h.b16 %v4222
          %v5145 = vunpack.c.l.b16 %v4223
          %v5146 = vunpack.c.h.b16 %v4223
          %v5147 = vunpack.c.l.b16 %v4224
          %v5148 = vunpack.c.h.b16 %v4224
          %v5149 = vunpack.c.l.b16 %v4225
          %v5150 = vunpack.c.h.b16 %v4225
          %v5151 = vunpack.c.l.b16 %v4226
          %v5152 = vunpack.c.h.b16 %v4226
          %v5153 = vunpack.c.l.b16 %v4227
          %v5154 = vunpack.c.h.b16 %v4227
          %v5155 = vunpack.c.l.b16 %v4228
          %v5156 = vunpack.c.h.b16 %v4228
          %v5157 = vunpack.c.l.b16 %v4229
          %v5158 = vunpack.c.h.b16 %v4229
          %v5159 = vunpack.c.l.b16 %v4230
          %v5160 = vunpack.c.h.b16 %v4230
          %v5161 = vunpack.c.l.b16 %v4231
          %v5162 = vunpack.c.h.b16 %v4231
          %v5163 = vunpack.c.l.b16 %v4232
          %v5164 = vunpack.c.h.b16 %v4232
          %v5165 = vunpack.c.l.b16 %v4233
          %v5166 = vunpack.c.h.b16 %v4233
          %v5167 = vunpack.c.l.b16 %v4234
          %v5168 = vunpack.c.h.b16 %v4234
          %v5169 = vunpack.c.l.b16 %v4235
          %v5170 = vunpack.c.h.b16 %v4235
          %v5171 = vunpack.c.l.b16 %v4236
          %v5172 = vunpack.c.h.b16 %v4236
          %v5173 = vunpack.c.l.b16 %v4237
          %v5174 = vunpack.c.h.b16 %v4237
          %v5175 = vunpack.c.l.b16 %v4238
          %v5176 = vunpack.c.h.b16 %v4238
          %v5177 = vunpack.c.l.b16 %v4239
          %v5178 = vunpack.c.h.b16 %v4239
          %v5179 = vunpack.c.l.b16 %v4240
          %v5180 = vunpack.c.h.b16 %v4240
          %v5181 = vunpack.c.l.b16 %v4241
          %v5182 = vunpack.c.h.b16 %v4241
          %v5183 = vunpack.c.l.b16 %v4242
          %v5184 = vunpack.c.h.b16 %v4242
          %v5185 = vunpack.c.l.b16 %v4243
          %v5186 = vunpack.c.h.b16 %v4243
          %v5187 = vunpack.c.l.b16 %v4244
          %v5188 = vunpack.c.h.b16 %v4244
          %v5189 = vunpack.c.l.b16 %v4245
          %v5190 = vunpack.c.h.b16 %v4245
          %v5191 = vunpack.c.l.b16 %v4246
          %v5192 = vunpack.c.h.b16 %v4246
          %v5193 = vunpack.c.l.b16 %v4247
          %v5194 = vunpack.c.h.b16 %v4247
          %v5195 = vunpack.c.l.b16 %v4248
          %v5196 = vunpack.c.h.b16 %v4248
          %v5197 = vunpack.c.l.b16 %v4249
          %v5198 = vunpack.c.h.b16 %v4249
          %v5199 = vunpack.c.l.b16 %v4250
          %v5200 = vunpack.c.h.b16 %v4250
          %v5201 = vunpack.c.l.b16 %v4251
          %v5202 = vunpack.c.h.b16 %v4251
          %v5203 = vunpack.c.l.b16 %v4252
          %v5204 = vunpack.c.h.b16 %v4252
          %v5205 = vunpack.c.l.b16 %v4253
          %v5206 = vunpack.c.h.b16 %v4253
          %v5207 = vunpack.c.l.b16 %v4254
          %v5208 = vunpack.c.h.b16 %v4254
          %v5209 = vunpack.c.l.b16 %v4255
          %v5210 = vunpack.c.h.b16 %v4255
          %v5211 = vunpack.c.l.b16 %v4256
          %v5212 = vunpack.c.h.b16 %v4256
          %v5213 = vunpack.c.l.b16 %v4257
          %v5214 = vunpack.c.h.b16 %v4257
          %v5215 = vunpack.c.l.b16 %v4258
          %v5216 = vunpack.c.h.b16 %v4258
          %v5217 = vunpack.c.l.b16 %v4259
          %v5218 = vunpack.c.h.b16 %v4259
          %v5219 = vunpack.c.l.b16 %v4260
          %v5220 = vunpack.c.h.b16 %v4260
          %v5221 = vunpack.c.l.b16 %v4261
          %v5222 = vunpack.c.h.b16 %v4261
          %v5223 = vpack.c.b16 %v4587, %v4583
          %v5224 = vpack.c.b16 %v4588, %v4584
          %v5225 = vpack.c.b16 %v4589, %v4585
          %v5226 = vpack.c.b16 %v4590, %v4586
          %v5227 = vpack.c.b16 %v4595, %v4591
          %v5228 = vpack.c.b16 %v4596, %v4592
          %v5229 = vpack.c.b16 %v4597, %v4593
          %v5230 = vpack.c.b16 %v4598, %v4594
          %v5231 = vpack.c.b16 %v4603, %v4599
          %v5232 = vpack.c.b16 %v4604, %v4600
          %v5233 = vpack.c.b16 %v4605, %v4601
          %v5234 = vpack.c.b16 %v4606, %v4602
          %v5235 = vpack.c.b16 %v4611, %v4607
          %v5236 = vpack.c.b16 %v4612, %v4608
          %v5237 = vpack.c.b16 %v4613, %v4609
          %v5238 = vpack.c.b16 %v4614, %v4610
          %v5239 = vpack.c.b16 %v4619, %v4615
          %v5240 = vpack.c.b16 %v4620, %v4616
          %v5241 = vpack.c.b16 %v4621, %v4617
          %v5242 = vpack.c.b16 %v4622, %v4618
          %v5243 = vpack.c.b16 %v4627, %v4623
          %v5244 = vpack.c.b16 %v4628, %v4624
          %v5245 = vpack.c.b16 %v4629, %v4625
          %v5246 = vpack.c.b16 %v4630, %v4626
          %v5247 = vpack.c.b16 %v4635, %v4631
          %v5248 = vpack.c.b16 %v4636, %v4632
          %v5249 = vpack.c.b16 %v4637, %v4633
          %v5250 = vpack.c.b16 %v4638, %v4634
          %v5251 = vpack.c.b16 %v4643, %v4639
          %v5252 = vpack.c.b16 %v4644, %v4640
          %v5253 = vpack.c.b16 %v4645, %v4641
          %v5254 = vpack.c.b16 %v4646, %v4642
          %v5255 = vpack.c.b16 %v4651, %v4647
          %v5256 = vpack.c.b16 %v4652, %v4648
          %v5257 = vpack.c.b16 %v4653, %v4649
          %v5258 = vpack.c.b16 %v4654, %v4650
          %v5259 = vpack.c.b16 %v4659, %v4655
          %v5260 = vpack.c.b16 %v4660, %v4656
          %v5261 = vpack.c.b16 %v4661, %v4657
          %v5262 = vpack.c.b16 %v4662, %v4658
          %v5263 = vpack.c.b16 %v4667, %v4663
          %v5264 = vpack.c.b16 %v4668, %v4664
          %v5265 = vpack.c.b16 %v4669, %v4665
          %v5266 = vpack.c.b16 %v4670, %v4666
          %v5267 = vpack.c.b16 %v4675, %v4671
          %v5268 = vpack.c.b16 %v4676, %v4672
          %v5269 = vpack.c.b16 %v4677, %v4673
          %v5270 = vpack.c.b16 %v4678, %v4674
          %v5271 = vpack.c.b16 %v4683, %v4679
          %v5272 = vpack.c.b16 %v4684, %v4680
          %v5273 = vpack.c.b16 %v4685, %v4681
          %v5274 = vpack.c.b16 %v4686, %v4682
          %v5275 = vpack.c.b16 %v4691, %v4687
          %v5276 = vpack.c.b16 %v4692, %v4688
          %v5277 = vpack.c.b16 %v4693, %v4689
          %v5278 = vpack.c.b16 %v4694, %v4690
          %v5279 = vpack.c.b16 %v4699, %v4695
          %v5280 = vpack.c.b16 %v4700, %v4696
          %v5281 = vpack.c.b16 %v4701, %v4697
          %v5282 = vpack.c.b16 %v4702, %v4698
          %v5283 = vpack.c.b16 %v4707, %v4703
          %v5284 = vpack.c.b16 %v4708, %v4704
          %v5285 = vpack.c.b16 %v4709, %v4705
          %v5286 = vpack.c.b16 %v4710, %v4706
          %v5287 = vpack.c.b16 %v4715, %v4711
          %v5288 = vpack.c.b16 %v4716, %v4712
          %v5289 = vpack.c.b16 %v4717, %v4713
          %v5290 = vpack.c.b16 %v4718, %v4714
          %v5291 = vpack.c.b16 %v4723, %v4719
          %v5292 = vpack.c.b16 %v4724, %v4720
          %v5293 = vpack.c.b16 %v4725, %v4721
          %v5294 = vpack.c.b16 %v4726, %v4722
          %v5295 = vpack.c.b16 %v4731, %v4727
          %v5296 = vpack.c.b16 %v4732, %v4728
          %v5297 = vpack.c.b16 %v4733, %v4729
          %v5298 = vpack.c.b16 %v4734, %v4730
          %v5299 = vpack.c.b16 %v4739, %v4735
          %v5300 = vpack.c.b16 %v4740, %v4736
          %v5301 = vpack.c.b16 %v4741, %v4737
          %v5302 = vpack.c.b16 %v4742, %v4738
          %v5303 = vpack.c.b16 %v4747, %v4743
          %v5304 = vpack.c.b16 %v4748, %v4744
          %v5305 = vpack.c.b16 %v4749, %v4745
          %v5306 = vpack.c.b16 %v4750, %v4746
          %v5307 = vpack.c.b16 %v4755, %v4751
          %v5308 = vpack.c.b16 %v4756, %v4752
          %v5309 = vpack.c.b16 %v4757, %v4753
          %v5310 = vpack.c.b16 %v4758, %v4754
          %v5311 = vpack.c.b16 %v4763, %v4759
          %v5312 = vpack.c.b16 %v4764, %v4760
          %v5313 = vpack.c.b16 %v4765, %v4761
          %v5314 = vpack.c.b16 %v4766, %v4762
          %v5315 = vpack.c.b16 %v4771, %v4767
          %v5316 = vpack.c.b16 %v4772, %v4768
          %v5317 = vpack.c.b16 %v4773, %v4769
          %v5318 = vpack.c.b16 %v4774, %v4770
          %v5319 = vpack.c.b16 %v4779, %v4775
          %v5320 = vpack.c.b16 %v4780, %v4776
          %v5321 = vpack.c.b16 %v4781, %v4777
          %v5322 = vpack.c.b16 %v4782, %v4778
          %v5323 = vpack.c.b16 %v4787, %v4783
          %v5324 = vpack.c.b16 %v4788, %v4784
          %v5325 = vpack.c.b16 %v4789, %v4785
          %v5326 = vpack.c.b16 %v4790, %v4786
          %v5327 = vpack.c.b16 %v4795, %v4791
          %v5328 = vpack.c.b16 %v4796, %v4792
          %v5329 = vpack.c.b16 %v4797, %v4793
          %v5330 = vpack.c.b16 %v4798, %v4794
          %v5331 = vpack.c.b16 %v4803, %v4799
          %v5332 = vpack.c.b16 %v4804, %v4800
          %v5333 = vpack.c.b16 %v4805, %v4801
          %v5334 = vpack.c.b16 %v4806, %v4802
          %v5335 = vpack.c.b16 %v4811, %v4807
          %v5336 = vpack.c.b16 %v4812, %v4808
          %v5337 = vpack.c.b16 %v4813, %v4809
          %v5338 = vpack.c.b16 %v4814, %v4810
          %v5339 = vpack.c.b16 %v4819, %v4815
          %v5340 = vpack.c.b16 %v4820, %v4816
          %v5341 = vpack.c.b16 %v4821, %v4817
          %v5342 = vpack.c.b16 %v4822, %v4818
          %v5343 = vpack.c.b16 %v4827, %v4823
          %v5344 = vpack.c.b16 %v4828, %v4824
          %v5345 = vpack.c.b16 %v4829, %v4825
          %v5346 = vpack.c.b16 %v4830, %v4826
          %v5347 = vpack.c.b16 %v4835, %v4831
          %v5348 = vpack.c.b16 %v4836, %v4832
          %v5349 = vpack.c.b16 %v4837, %v4833
          %v5350 = vpack.c.b16 %v4838, %v4834
          %v5351 = vpack.c.b16 %v4843, %v4839
          %v5352 = vpack.c.b16 %v4844, %v4840
          %v5353 = vpack.c.b16 %v4845, %v4841
          %v5354 = vpack.c.b16 %v4846, %v4842
          %v5355 = vpack.c.b16 %v4851, %v4847
          %v5356 = vpack.c.b16 %v4852, %v4848
          %v5357 = vpack.c.b16 %v4853, %v4849
          %v5358 = vpack.c.b16 %v4854, %v4850
          %v5359 = vpack.c.b16 %v4859, %v4855
          %v5360 = vpack.c.b16 %v4860, %v4856
          %v5361 = vpack.c.b16 %v4861, %v4857
          %v5362 = vpack.c.b16 %v4862, %v4858
          %v5363 = vpack.c.b16 %v4867, %v4863
          %v5364 = vpack.c.b16 %v4868, %v4864
          %v5365 = vpack.c.b16 %v4869, %v4865
          %v5366 = vpack.c.b16 %v4870, %v4866
          %v5367 = vpack.c.b16 %v4875, %v4871
          %v5368 = vpack.c.b16 %v4876, %v4872
          %v5369 = vpack.c.b16 %v4877, %v4873
          %v5370 = vpack.c.b16 %v4878, %v4874
          %v5371 = vpack.c.b16 %v4883, %v4879
          %v5372 = vpack.c.b16 %v4884, %v4880
          %v5373 = vpack.c.b16 %v4885, %v4881
          %v5374 = vpack.c.b16 %v4886, %v4882
          %v5375 = vpack.c.b16 %v4891, %v4887
          %v5376 = vpack.c.b16 %v4892, %v4888
          %v5377 = vpack.c.b16 %v4893, %v4889
          %v5378 = vpack.c.b16 %v4894, %v4890
          %v5379 = vpack.c.b16 %v4899, %v4895
          %v5380 = vpack.c.b16 %v4900, %v4896
          %v5381 = vpack.c.b16 %v4901, %v4897
          %v5382 = vpack.c.b16 %v4902, %v4898
          %v5383 = vpack.c.b16 %v4907, %v4903
          %v5384 = vpack.c.b16 %v4908, %v4904
          %v5385 = vpack.c.b16 %v4909, %v4905
          %v5386 = vpack.c.b16 %v4910, %v4906
          %v5387 = vpack.c.b16 %v4915, %v4911
          %v5388 = vpack.c.b16 %v4916, %v4912
          %v5389 = vpack.c.b16 %v4917, %v4913
          %v5390 = vpack.c.b16 %v4918, %v4914
          %v5391 = vpack.c.b16 %v4923, %v4919
          %v5392 = vpack.c.b16 %v4924, %v4920
          %v5393 = vpack.c.b16 %v4925, %v4921
          %v5394 = vpack.c.b16 %v4926, %v4922
          %v5395 = vpack.c.b16 %v4931, %v4927
          %v5396 = vpack.c.b16 %v4932, %v4928
          %v5397 = vpack.c.b16 %v4933, %v4929
          %v5398 = vpack.c.b16 %v4934, %v4930
          %v5399 = vpack.c.b16 %v4939, %v4935
          %v5400 = vpack.c.b16 %v4940, %v4936
          %v5401 = vpack.c.b16 %v4941, %v4937
          %v5402 = vpack.c.b16 %v4942, %v4938
          %v5403 = vpack.c.b16 %v4947, %v4943
          %v5404 = vpack.c.b16 %v4948, %v4944
          %v5405 = vpack.c.b16 %v4949, %v4945
          %v5406 = vpack.c.b16 %v4950, %v4946
          %v5407 = vpack.c.b16 %v4955, %v4951
          %v5408 = vpack.c.b16 %v4956, %v4952
          %v5409 = vpack.c.b16 %v4957, %v4953
          %v5410 = vpack.c.b16 %v4958, %v4954
          %v5411 = vpack.c.b16 %v4963, %v4959
          %v5412 = vpack.c.b16 %v4964, %v4960
          %v5413 = vpack.c.b16 %v4965, %v4961
          %v5414 = vpack.c.b16 %v4966, %v4962
          %v5415 = vpack.c.b16 %v4971, %v4967
          %v5416 = vpack.c.b16 %v4972, %v4968
          %v5417 = vpack.c.b16 %v4973, %v4969
          %v5418 = vpack.c.b16 %v4974, %v4970
          %v5419 = vpack.c.b16 %v4979, %v4975
          %v5420 = vpack.c.b16 %v4980, %v4976
          %v5421 = vpack.c.b16 %v4981, %v4977
          %v5422 = vpack.c.b16 %v4982, %v4978
          %v5423 = vpack.c.b16 %v4987, %v4983
          %v5424 = vpack.c.b16 %v4988, %v4984
          %v5425 = vpack.c.b16 %v4989, %v4985
          %v5426 = vpack.c.b16 %v4990, %v4986
          %v5427 = vpack.c.b16 %v4995, %v4991
          %v5428 = vpack.c.b16 %v4996, %v4992
          %v5429 = vpack.c.b16 %v4997, %v4993
          %v5430 = vpack.c.b16 %v4998, %v4994
          %v5431 = vpack.c.b16 %v5003, %v4999
          %v5432 = vpack.c.b16 %v5004, %v5000
          %v5433 = vpack.c.b16 %v5005, %v5001
          %v5434 = vpack.c.b16 %v5006, %v5002
          %v5435 = vpack.c.b16 %v5011, %v5007
          %v5436 = vpack.c.b16 %v5012, %v5008
          %v5437 = vpack.c.b16 %v5013, %v5009
          %v5438 = vpack.c.b16 %v5014, %v5010
          %v5439 = vpack.c.b16 %v5019, %v5015
          %v5440 = vpack.c.b16 %v5020, %v5016
          %v5441 = vpack.c.b16 %v5021, %v5017
          %v5442 = vpack.c.b16 %v5022, %v5018
          %v5443 = vpack.c.b16 %v5027, %v5023
          %v5444 = vpack.c.b16 %v5028, %v5024
          %v5445 = vpack.c.b16 %v5029, %v5025
          %v5446 = vpack.c.b16 %v5030, %v5026
          %v5447 = vpack.c.b16 %v5035, %v5031
          %v5448 = vpack.c.b16 %v5036, %v5032
          %v5449 = vpack.c.b16 %v5037, %v5033
          %v5450 = vpack.c.b16 %v5038, %v5034
          %v5451 = vpack.c.b16 %v5043, %v5039
          %v5452 = vpack.c.b16 %v5044, %v5040
          %v5453 = vpack.c.b16 %v5045, %v5041
          %v5454 = vpack.c.b16 %v5046, %v5042
          %v5455 = vpack.c.b16 %v5051, %v5047
          %v5456 = vpack.c.b16 %v5052, %v5048
          %v5457 = vpack.c.b16 %v5053, %v5049
          %v5458 = vpack.c.b16 %v5054, %v5050
          %v5459 = vpack.c.b16 %v5059, %v5055
          %v5460 = vpack.c.b16 %v5060, %v5056
          %v5461 = vpack.c.b16 %v5061, %v5057
          %v5462 = vpack.c.b16 %v5062, %v5058
          %v5463 = vpack.c.b16 %v5067, %v5063
          %v5464 = vpack.c.b16 %v5068, %v5064
          %v5465 = vpack.c.b16 %v5069, %v5065
          %v5466 = vpack.c.b16 %v5070, %v5066
          %v5467 = vpack.c.b16 %v5075, %v5071
          %v5468 = vpack.c.b16 %v5076, %v5072
          %v5469 = vpack.c.b16 %v5077, %v5073
          %v5470 = vpack.c.b16 %v5078, %v5074
          %v5471 = vpack.c.b16 %v5083, %v5079
          %v5472 = vpack.c.b16 %v5084, %v5080
          %v5473 = vpack.c.b16 %v5085, %v5081
          %v5474 = vpack.c.b16 %v5086, %v5082
          %v5475 = vpack.c.b16 %v5091, %v5087
          %v5476 = vpack.c.b16 %v5092, %v5088
          %v5477 = vpack.c.b16 %v5093, %v5089
          %v5478 = vpack.c.b16 %v5094, %v5090
          %v5479 = vpack.c.b16 %v5099, %v5095
          %v5480 = vpack.c.b16 %v5100, %v5096
          %v5481 = vpack.c.b16 %v5101, %v5097
          %v5482 = vpack.c.b16 %v5102, %v5098
          %v5483 = vpack.c.b16 %v5107, %v5103
          %v5484 = vpack.c.b16 %v5108, %v5104
          %v5485 = vpack.c.b16 %v5109, %v5105
          %v5486 = vpack.c.b16 %v5110, %v5106
          %v5487 = vpack.c.b16 %v5115, %v5111
          %v5488 = vpack.c.b16 %v5116, %v5112
          %v5489 = vpack.c.b16 %v5117, %v5113
          %v5490 = vpack.c.b16 %v5118, %v5114
          %v5491 = vpack.c.b16 %v5123, %v5119
          %v5492 = vpack.c.b16 %v5124, %v5120
          %v5493 = vpack.c.b16 %v5125, %v5121
          %v5494 = vpack.c.b16 %v5126, %v5122
          %v5495 = vpack.c.b16 %v5131, %v5127
          %v5496 = vpack.c.b16 %v5132, %v5128
          %v5497 = vpack.c.b16 %v5133, %v5129
          %v5498 = vpack.c.b16 %v5134, %v5130
          %v5499 = vpack.c.b16 %v5139, %v5135
          %v5500 = vpack.c.b16 %v5140, %v5136
          %v5501 = vpack.c.b16 %v5141, %v5137
          %v5502 = vpack.c.b16 %v5142, %v5138
          %v5503 = vpack.c.b16 %v5147, %v5143
          %v5504 = vpack.c.b16 %v5148, %v5144
          %v5505 = vpack.c.b16 %v5149, %v5145
          %v5506 = vpack.c.b16 %v5150, %v5146
          %v5507 = vpack.c.b16 %v5155, %v5151
          %v5508 = vpack.c.b16 %v5156, %v5152
          %v5509 = vpack.c.b16 %v5157, %v5153
          %v5510 = vpack.c.b16 %v5158, %v5154
          %v5511 = vpack.c.b16 %v5163, %v5159
          %v5512 = vpack.c.b16 %v5164, %v5160
          %v5513 = vpack.c.b16 %v5165, %v5161
          %v5514 = vpack.c.b16 %v5166, %v5162
          %v5515 = vpack.c.b16 %v5171, %v5167
          %v5516 = vpack.c.b16 %v5172, %v5168
          %v5517 = vpack.c.b16 %v5173, %v5169
          %v5518 = vpack.c.b16 %v5174, %v5170
          %v5519 = vpack.c.b16 %v5179, %v5175
          %v5520 = vpack.c.b16 %v5180, %v5176
          %v5521 = vpack.c.b16 %v5181, %v5177
          %v5522 = vpack.c.b16 %v5182, %v5178
          %v5523 = vpack.c.b16 %v5187, %v5183
          %v5524 = vpack.c.b16 %v5188, %v5184
          %v5525 = vpack.c.b16 %v5189, %v5185
          %v5526 = vpack.c.b16 %v5190, %v5186
          %v5527 = vpack.c.b16 %v5195, %v5191
          %v5528 = vpack.c.b16 %v5196, %v5192
          %v5529 = vpack.c.b16 %v5197, %v5193
          %v5530 = vpack.c.b16 %v5198, %v5194
          %v5531 = vpack.c.b16 %v5203, %v5199
          %v5532 = vpack.c.b16 %v5204, %v5200
          %v5533 = vpack.c.b16 %v5205, %v5201
          %v5534 = vpack.c.b16 %v5206, %v5202
          %v5535 = vpack.c.b16 %v5211, %v5207
          %v5536 = vpack.c.b16 %v5212, %v5208
          %v5537 = vpack.c.b16 %v5213, %v5209
          %v5538 = vpack.c.b16 %v5214, %v5210
          %v5539 = vpack.c.b16 %v5219, %v5215
          %v5540 = vpack.c.b16 %v5220, %v5216
          %v5541 = vpack.c.b16 %v5221, %v5217
          %v5542 = vpack.c.b16 %v5222, %v5218
          %v5864 = vlaneseq
          %v5865 = vshrl.u32 %v5864, 7
          %v5866 = vsub.s32 0, %v5865
          %v5867 = vrot.slane %v4262, %v5866
          %v5868 = vlaneseq
          %v5869 = vshrl.u32 %v5868, 7
          %v5870 = vsub.s32 1, %v5869
          %v5871 = vrot.slane %v4262, %v5870
          %v5872 = vlaneseq
          %v5873 = vshrl.u32 %v5872, 7
          %v5874 = vsub.s32 2, %v5873
          %v5875 = vrot.slane %v4262, %v5874
          %v5876 = vlaneseq
          %v5877 = vshrl.u32 %v5876, 7
          %v5878 = vsub.s32 3, %v5877
          %v5879 = vrot.slane %v4262, %v5878
          %5884 = vmatprep.subr.bf16.mxu0 %v5252
          %5885 = vmatpush1.bf16.msra.mxu0 %v5251
          %5886 = vmatprep.subr.bf16.mxu0 %v5248
          %5887 = vmatpush1.bf16.msra.mxu0 %v5247
          %5888 = vmatprep.subr.bf16.mxu0 %v5244
          %5889 = vmatpush1.bf16.msra.mxu0 %v5243
          %5890 = vmatprep.subr.bf16.mxu0 %v5240
          %5891 = vmatpush1.bf16.msra.mxu0 %v5239
          %5892 = vmatprep.subr.bf16.mxu0 %v5236
          %5893 = vmatpush1.bf16.msra.mxu0 %v5235
          %5894 = vmatprep.subr.bf16.mxu0 %v5232
          %5895 = vmatpush1.bf16.msra.mxu0 %v5231
          %5896 = vmatprep.subr.bf16.mxu0 %v5228
          %5897 = vmatpush1.bf16.msra.mxu0 %v5227
          %5898 = vmatprep.subr.bf16.mxu0 %v5224
          %5899 = vmatpush1.bf16.msra.mxu0 %v5223
          %5900 = vmatprep.subr.bf16.mxu0 %v5284
          %5901 = vmatpush2.bf16.msra.mxu0 %v5283
          %5902 = vmatprep.subr.bf16.mxu0 %v5280
          %5903 = vmatpush2.bf16.msra.mxu0 %v5279
          %5904 = vmatprep.subr.bf16.mxu0 %v5276
          %5905 = vmatpush2.bf16.msra.mxu0 %v5275
          %5906 = vmatprep.subr.bf16.mxu0 %v5272
          %5907 = vmatpush2.bf16.msra.mxu0 %v5271
          %5908 = vmatprep.subr.bf16.mxu0 %v5268
          %5909 = vmatpush2.bf16.msra.mxu0 %v5267
          %5910 = vmatprep.subr.bf16.mxu0 %v5264
          %5911 = vmatpush2.bf16.msra.mxu0 %v5263
          %5912 = vmatprep.subr.bf16.mxu0 %v5260
          %5913 = vmatpush2.bf16.msra.mxu0 %v5259
          %5914 = vmatprep.subr.bf16.mxu0 %v5256
          %5915 = vmatpush2.bf16.msra.mxu0 %v5255
          %5916 = vmatprep.mubr.bf16.mxu0 %v3933
          %5917 = vmatmul.mubr.bf16.gmra.mxu0 %v3932
          %v5918 = vpop.f32.mrf.mxu0
          %v5919 = vadd.f32 %v5867, %v5918
          %v5920 = vpop.f32.mrf.mxu0
          %v5921 = vadd.f32 %v5871, %v5920
          %v5922 = vpop.f32.mrf.mxu0
          %v5923 = vpop.f32.mrf.mxu0
          %5924 = vdwg.mxu0
          %5925 = vmatprep.subr.bf16.mxu0 %v5316
          %5926 = vmatpush1.bf16.msra.mxu0 %v5315
          %5927 = vmatprep.subr.bf16.mxu0 %v5312
          %5928 = vmatpush1.bf16.msra.mxu0 %v5311
          %5929 = vmatprep.subr.bf16.mxu0 %v5308
          %5930 = vmatpush1.bf16.msra.mxu0 %v5307
          %5931 = vmatprep.subr.bf16.mxu0 %v5304
          %5932 = vmatpush1.bf16.msra.mxu0 %v5303
          %5933 = vmatprep.subr.bf16.mxu0 %v5300
          %5934 = vmatpush1.bf16.msra.mxu0 %v5299
          %5935 = vmatprep.subr.bf16.mxu0 %v5296
          %5936 = vmatpush1.bf16.msra.mxu0 %v5295
          %5937 = vmatprep.subr.bf16.mxu0 %v5292
          %5938 = vmatpush1.bf16.msra.mxu0 %v5291
          %5939 = vmatprep.subr.bf16.mxu0 %v5288
          %5940 = vmatpush1.bf16.msra.mxu0 %v5287
          %5941 = vmatprep.subr.bf16.mxu0 %v5348
          %5942 = vmatpush2.bf16.msra.mxu0 %v5347
          %5943 = vmatprep.subr.bf16.mxu0 %v5344
          %5944 = vmatpush2.bf16.msra.mxu0 %v5343
          %5945 = vmatprep.subr.bf16.mxu0 %v5340
          %5946 = vmatpush2.bf16.msra.mxu0 %v5339
          %5947 = vmatprep.subr.bf16.mxu0 %v5336
          %5948 = vmatpush2.bf16.msra.mxu0 %v5335
          %5949 = vmatprep.subr.bf16.mxu0 %v5332
          %5950 = vmatpush2.bf16.msra.mxu0 %v5331
          %5951 = vmatprep.subr.bf16.mxu0 %v5328
          %5952 = vmatpush2.bf16.msra.mxu0 %v5327
          %5953 = vmatprep.subr.bf16.mxu0 %v5324
          %5954 = vmatpush2.bf16.msra.mxu0 %v5323
          %5955 = vmatprep.subr.bf16.mxu0 %v5320
          %5956 = vmatpush2.bf16.msra.mxu0 %v5319
          %5957 = vmatprep.mubr.bf16.mxu0 %v3935
          %5958 = vmatmul.mubr.bf16.gmra.mxu0 %v3934
          %v5959 = vpop.f32.mrf.mxu0
          %v5960 = vadd.f32 %v5919, %v5959
          %v5961 = vpop.f32.mrf.mxu0
          %v5962 = vadd.f32 %v5921, %v5961
          %v5963 = vpop.f32.mrf.mxu0
          %v5964 = vpop.f32.mrf.mxu0
          %5965 = vdwg.mxu0
          %5966 = vmatprep.subr.bf16.mxu0 %v5380
          %5967 = vmatpush1.bf16.msra.mxu0 %v5379
          %5968 = vmatprep.subr.bf16.mxu0 %v5376
          %5969 = vmatpush1.bf16.msra.mxu0 %v5375
          %5970 = vmatprep.subr.bf16.mxu0 %v5372
          %5971 = vmatpush1.bf16.msra.mxu0 %v5371
          %5972 = vmatprep.subr.bf16.mxu0 %v5368
          %5973 = vmatpush1.bf16.msra.mxu0 %v5367
          %5974 = vmatprep.subr.bf16.mxu0 %v5364
          %5975 = vmatpush1.bf16.msra.mxu0 %v5363
          %5976 = vmatprep.subr.bf16.mxu0 %v5360
          %5977 = vmatpush1.bf16.msra.mxu0 %v5359
          %5978 = vmatprep.subr.bf16.mxu0 %v5356
          %5979 = vmatpush1.bf16.msra.mxu0 %v5355
          %5980 = vmatprep.subr.bf16.mxu0 %v5352
          %5981 = vmatpush1.bf16.msra.mxu0 %v5351
          %5982 = vmatprep.subr.bf16.mxu0 %v5412
          %5983 = vmatpush2.bf16.msra.mxu0 %v5411
          %5984 = vmatprep.subr.bf16.mxu0 %v5408
          %5985 = vmatpush2.bf16.msra.mxu0 %v5407
          %5986 = vmatprep.subr.bf16.mxu0 %v5404
          %5987 = vmatpush2.bf16.msra.mxu0 %v5403
          %5988 = vmatprep.subr.bf16.mxu0 %v5400
          %5989 = vmatpush2.bf16.msra.mxu0 %v5399
          %5990 = vmatprep.subr.bf16.mxu0 %v5396
          %5991 = vmatpush2.bf16.msra.mxu0 %v5395
          %5992 = vmatprep.subr.bf16.mxu0 %v5392
          %5993 = vmatpush2.bf16.msra.mxu0 %v5391
          %5994 = vmatprep.subr.bf16.mxu0 %v5388
          %5995 = vmatpush2.bf16.msra.mxu0 %v5387
          %5996 = vmatprep.subr.bf16.mxu0 %v5384
          %5997 = vmatpush2.bf16.msra.mxu0 %v5383
          %5998 = vmatprep.mubr.bf16.mxu0 %v3937
          %5999 = vmatmul.mubr.bf16.gmra.mxu0 %v3936
          %v6000 = vpop.f32.mrf.mxu0
          %v6001 = vadd.f32 %v5960, %v6000
          %v6002 = vpop.f32.mrf.mxu0
          %v6003 = vadd.f32 %v5962, %v6002
          %v6004 = vpop.f32.mrf.mxu0
          %v6005 = vpop.f32.mrf.mxu0
          %6006 = vdwg.mxu0
          %6007 = vmatprep.subr.bf16.mxu0 %v5444
          %6008 = vmatpush1.bf16.msra.mxu0 %v5443
          %6009 = vmatprep.subr.bf16.mxu0 %v5440
          %6010 = vmatpush1.bf16.msra.mxu0 %v5439
          %6011 = vmatprep.subr.bf16.mxu0 %v5436
          %6012 = vmatpush1.bf16.msra.mxu0 %v5435
          %6013 = vmatprep.subr.bf16.mxu0 %v5432
          %6014 = vmatpush1.bf16.msra.mxu0 %v5431
          %6015 = vmatprep.subr.bf16.mxu0 %v5428
          %6016 = vmatpush1.bf16.msra.mxu0 %v5427
          %6017 = vmatprep.subr.bf16.mxu0 %v5424
          %6018 = vmatpush1.bf16.msra.mxu0 %v5423
          %6019 = vmatprep.subr.bf16.mxu0 %v5420
          %6020 = vmatpush1.bf16.msra.mxu0 %v5419
          %6021 = vmatprep.subr.bf16.mxu0 %v5416
          %6022 = vmatpush1.bf16.msra.mxu0 %v5415
          %6023 = vmatprep.subr.bf16.mxu0 %v5476
          %6024 = vmatpush2.bf16.msra.mxu0 %v5475
          %6025 = vmatprep.subr.bf16.mxu0 %v5472
          %6026 = vmatpush2.bf16.msra.mxu0 %v5471
          %6027 = vmatprep.subr.bf16.mxu0 %v5468
          %6028 = vmatpush2.bf16.msra.mxu0 %v5467
          %6029 = vmatprep.subr.bf16.mxu0 %v5464
          %6030 = vmatpush2.bf16.msra.mxu0 %v5463
          %6031 = vmatprep.subr.bf16.mxu0 %v5460
          %6032 = vmatpush2.bf16.msra.mxu0 %v5459
          %6033 = vmatprep.subr.bf16.mxu0 %v5456
          %6034 = vmatpush2.bf16.msra.mxu0 %v5455
          %6035 = vmatprep.subr.bf16.mxu0 %v5452
          %6036 = vmatpush2.bf16.msra.mxu0 %v5451
          %6037 = vmatprep.subr.bf16.mxu0 %v5448
          %6038 = vmatpush2.bf16.msra.mxu0 %v5447
          %6039 = vmatprep.mubr.bf16.mxu0 %v3939
          %6040 = vmatmul.mubr.bf16.gmra.mxu0 %v3938
          %v6041 = vpop.f32.mrf.mxu0
          %v6042 = vadd.f32 %v6001, %v6041
          %v6043 = vpop.f32.mrf.mxu0
          %v6044 = vadd.f32 %v6003, %v6043
          %v6045 = vpop.f32.mrf.mxu0
          %v6046 = vpop.f32.mrf.mxu0
          %6047 = vdwg.mxu0
          %6048 = vmatprep.subr.bf16.mxu0 %v5508
          %6049 = vmatpush1.bf16.msra.mxu0 %v5507
          %6050 = vmatprep.subr.bf16.mxu0 %v5504
          %6051 = vmatpush1.bf16.msra.mxu0 %v5503
          %6052 = vmatprep.subr.bf16.mxu0 %v5500
          %6053 = vmatpush1.bf16.msra.mxu0 %v5499
          %6054 = vmatprep.subr.bf16.mxu0 %v5496
          %6055 = vmatpush1.bf16.msra.mxu0 %v5495
          %6056 = vmatprep.subr.bf16.mxu0 %v5492
          %6057 = vmatpush1.bf16.msra.mxu0 %v5491
          %6058 = vmatprep.subr.bf16.mxu0 %v5488
          %6059 = vmatpush1.bf16.msra.mxu0 %v5487
          %6060 = vmatprep.subr.bf16.mxu0 %v5484
          %6061 = vmatpush1.bf16.msra.mxu0 %v5483
          %6062 = vmatprep.subr.bf16.mxu0 %v5480
          %6063 = vmatpush1.bf16.msra.mxu0 %v5479
          %6064 = vmatprep.subr.bf16.mxu0 %v5540
          %6065 = vmatpush2.bf16.msra.mxu0 %v5539
          %6066 = vmatprep.subr.bf16.mxu0 %v5536
          %6067 = vmatpush2.bf16.msra.mxu0 %v5535
          %6068 = vmatprep.subr.bf16.mxu0 %v5532
          %6069 = vmatpush2.bf16.msra.mxu0 %v5531
          %6070 = vmatprep.subr.bf16.mxu0 %v5528
          %6071 = vmatpush2.bf16.msra.mxu0 %v5527
          %6072 = vmatprep.subr.bf16.mxu0 %v5524
          %6073 = vmatpush2.bf16.msra.mxu0 %v5523
          %6074 = vmatprep.subr.bf16.mxu0 %v5520
          %6075 = vmatpush2.bf16.msra.mxu0 %v5519
          %6076 = vmatprep.subr.bf16.mxu0 %v5516
          %6077 = vmatpush2.bf16.msra.mxu0 %v5515
          %6078 = vmatprep.subr.bf16.mxu0 %v5512
          %6079 = vmatpush2.bf16.msra.mxu0 %v5511
          %6080 = vmatprep.mubr.bf16.mxu0 %v3941
          %6081 = vmatmul.mubr.bf16.gmra.mxu0 %v3940
          %v6082 = vpop.f32.mrf.mxu0
          %v6083 = vadd.f32 %v6042, %v6082
          %v6084 = vpop.f32.mrf.mxu0
          %v6085 = vadd.f32 %v6044, %v6084
          %v6086 = vpop.f32.mrf.mxu0
          %v6087 = vpop.f32.mrf.mxu0
          %6088 = vdwg.mxu0
          %6089 = vmatprep.subr.bf16.mxu0 %v5254
          %6090 = vmatpush1.bf16.msra.mxu0 %v5253
          %6091 = vmatprep.subr.bf16.mxu0 %v5250
          %6092 = vmatpush1.bf16.msra.mxu0 %v5249
          %6093 = vmatprep.subr.bf16.mxu0 %v5246
          %6094 = vmatpush1.bf16.msra.mxu0 %v5245
          %6095 = vmatprep.subr.bf16.mxu0 %v5242
          %6096 = vmatpush1.bf16.msra.mxu0 %v5241
          %6097 = vmatprep.subr.bf16.mxu0 %v5238
          %6098 = vmatpush1.bf16.msra.mxu0 %v5237
          %6099 = vmatprep.subr.bf16.mxu0 %v5234
          %6100 = vmatpush1.bf16.msra.mxu0 %v5233
          %6101 = vmatprep.subr.bf16.mxu0 %v5230
          %6102 = vmatpush1.bf16.msra.mxu0 %v5229
          %6103 = vmatprep.subr.bf16.mxu0 %v5226
          %6104 = vmatpush1.bf16.msra.mxu0 %v5225
          %6105 = vmatprep.subr.bf16.mxu0 %v5286
          %6106 = vmatpush2.bf16.msra.mxu0 %v5285
          %6107 = vmatprep.subr.bf16.mxu0 %v5282
          %6108 = vmatpush2.bf16.msra.mxu0 %v5281
          %6109 = vmatprep.subr.bf16.mxu0 %v5278
          %6110 = vmatpush2.bf16.msra.mxu0 %v5277
          %6111 = vmatprep.subr.bf16.mxu0 %v5274
          %6112 = vmatpush2.bf16.msra.mxu0 %v5273
          %6113 = vmatprep.subr.bf16.mxu0 %v5270
          %6114 = vmatpush2.bf16.msra.mxu0 %v5269
          %6115 = vmatprep.subr.bf16.mxu0 %v5266
          %6116 = vmatpush2.bf16.msra.mxu0 %v5265
          %6117 = vmatprep.subr.bf16.mxu0 %v5262
          %6118 = vmatpush2.bf16.msra.mxu0 %v5261
          %6119 = vmatprep.subr.bf16.mxu0 %v5258
          %6120 = vmatpush2.bf16.msra.mxu0 %v5257
          %6121 = vmatprep.mubr.bf16.mxu0 %v3933
          %6122 = vmatmul.mubr.bf16.gmra.mxu0 %v3932
          %v6123 = vpop.f32.mrf.mxu0
          %v6124 = vadd.f32 %v5875, %v6123
          %v6125 = vpop.f32.mrf.mxu0
          %v6126 = vadd.f32 %v5879, %v6125
          %v6127 = vpop.f32.mrf.mxu0
          %v6128 = vpop.f32.mrf.mxu0
          %6129 = vdwg.mxu0
          %6130 = vmatprep.subr.bf16.mxu0 %v5318
          %6131 = vmatpush1.bf16.msra.mxu0 %v5317
          %6132 = vmatprep.subr.bf16.mxu0 %v5314
          %6133 = vmatpush1.bf16.msra.mxu0 %v5313
          %6134 = vmatprep.subr.bf16.mxu0 %v5310
          %6135 = vmatpush1.bf16.msra.mxu0 %v5309
          %6136 = vmatprep.subr.bf16.mxu0 %v5306
          %6137 = vmatpush1.bf16.msra.mxu0 %v5305
          %6138 = vmatprep.subr.bf16.mxu0 %v5302
          %6139 = vmatpush1.bf16.msra.mxu0 %v5301
          %6140 = vmatprep.subr.bf16.mxu0 %v5298
          %6141 = vmatpush1.bf16.msra.mxu0 %v5297
          %6142 = vmatprep.subr.bf16.mxu0 %v5294
          %6143 = vmatpush1.bf16.msra.mxu0 %v5293
          %6144 = vmatprep.subr.bf16.mxu0 %v5290
          %6145 = vmatpush1.bf16.msra.mxu0 %v5289
          %6146 = vmatprep.subr.bf16.mxu0 %v5350
          %6147 = vmatpush2.bf16.msra.mxu0 %v5349
          %6148 = vmatprep.subr.bf16.mxu0 %v5346
          %6149 = vmatpush2.bf16.msra.mxu0 %v5345
          %6150 = vmatprep.subr.bf16.mxu0 %v5342
          %6151 = vmatpush2.bf16.msra.mxu0 %v5341
          %6152 = vmatprep.subr.bf16.mxu0 %v5338
          %6153 = vmatpush2.bf16.msra.mxu0 %v5337
          %6154 = vmatprep.subr.bf16.mxu0 %v5334
          %6155 = vmatpush2.bf16.msra.mxu0 %v5333
          %6156 = vmatprep.subr.bf16.mxu0 %v5330
          %6157 = vmatpush2.bf16.msra.mxu0 %v5329
          %6158 = vmatprep.subr.bf16.mxu0 %v5326
          %6159 = vmatpush2.bf16.msra.mxu0 %v5325
          %6160 = vmatprep.subr.bf16.mxu0 %v5322
          %6161 = vmatpush2.bf16.msra.mxu0 %v5321
          %6162 = vmatprep.mubr.bf16.mxu0 %v3935
          %6163 = vmatmul.mubr.bf16.gmra.mxu0 %v3934
          %v6164 = vpop.f32.mrf.mxu0
          %v6165 = vadd.f32 %v6124, %v6164
          %v6166 = vpop.f32.mrf.mxu0
          %v6167 = vadd.f32 %v6126, %v6166
          %v6168 = vpop.f32.mrf.mxu0
          %v6169 = vpop.f32.mrf.mxu0
          %6170 = vdwg.mxu0
          %6171 = vmatprep.subr.bf16.mxu0 %v5382
          %6172 = vmatpush1.bf16.msra.mxu0 %v5381
          %6173 = vmatprep.subr.bf16.mxu0 %v5378
          %6174 = vmatpush1.bf16.msra.mxu0 %v5377
          %6175 = vmatprep.subr.bf16.mxu0 %v5374
          %6176 = vmatpush1.bf16.msra.mxu0 %v5373
          %6177 = vmatprep.subr.bf16.mxu0 %v5370
          %6178 = vmatpush1.bf16.msra.mxu0 %v5369
          %6179 = vmatprep.subr.bf16.mxu0 %v5366
          %6180 = vmatpush1.bf16.msra.mxu0 %v5365
          %6181 = vmatprep.subr.bf16.mxu0 %v5362
          %6182 = vmatpush1.bf16.msra.mxu0 %v5361
          %6183 = vmatprep.subr.bf16.mxu0 %v5358
          %6184 = vmatpush1.bf16.msra.mxu0 %v5357
          %6185 = vmatprep.subr.bf16.mxu0 %v5354
          %6186 = vmatpush1.bf16.msra.mxu0 %v5353
          %6187 = vmatprep.subr.bf16.mxu0 %v5414
          %6188 = vmatpush2.bf16.msra.mxu0 %v5413
          %6189 = vmatprep.subr.bf16.mxu0 %v5410
          %6190 = vmatpush2.bf16.msra.mxu0 %v5409
          %6191 = vmatprep.subr.bf16.mxu0 %v5406
          %6192 = vmatpush2.bf16.msra.mxu0 %v5405
          %6193 = vmatprep.subr.bf16.mxu0 %v5402
          %6194 = vmatpush2.bf16.msra.mxu0 %v5401
          %6195 = vmatprep.subr.bf16.mxu0 %v5398
          %6196 = vmatpush2.bf16.msra.mxu0 %v5397
          %6197 = vmatprep.subr.bf16.mxu0 %v5394
          %6198 = vmatpush2.bf16.msra.mxu0 %v5393
          %6199 = vmatprep.subr.bf16.mxu0 %v5390
          %6200 = vmatpush2.bf16.msra.mxu0 %v5389
          %6201 = vmatprep.subr.bf16.mxu0 %v5386
          %6202 = vmatpush2.bf16.msra.mxu0 %v5385
          %6203 = vmatprep.mubr.bf16.mxu0 %v3937
          %6204 = vmatmul.mubr.bf16.gmra.mxu0 %v3936
          %v6205 = vpop.f32.mrf.mxu0
          %v6206 = vadd.f32 %v6165, %v6205
          %v6207 = vpop.f32.mrf.mxu0
          %v6208 = vadd.f32 %v6167, %v6207
          %v6209 = vpop.f32.mrf.mxu0
          %v6210 = vpop.f32.mrf.mxu0
          %6211 = vdwg.mxu0
          %6212 = vmatprep.subr.bf16.mxu0 %v5446
          %6213 = vmatpush1.bf16.msra.mxu0 %v5445
          %6214 = vmatprep.subr.bf16.mxu0 %v5442
          %6215 = vmatpush1.bf16.msra.mxu0 %v5441
          %6216 = vmatprep.subr.bf16.mxu0 %v5438
          %6217 = vmatpush1.bf16.msra.mxu0 %v5437
          %6218 = vmatprep.subr.bf16.mxu0 %v5434
          %6219 = vmatpush1.bf16.msra.mxu0 %v5433
          %6220 = vmatprep.subr.bf16.mxu0 %v5430
          %6221 = vmatpush1.bf16.msra.mxu0 %v5429
          %6222 = vmatprep.subr.bf16.mxu0 %v5426
          %6223 = vmatpush1.bf16.msra.mxu0 %v5425
          %6224 = vmatprep.subr.bf16.mxu0 %v5422
          %6225 = vmatpush1.bf16.msra.mxu0 %v5421
          %6226 = vmatprep.subr.bf16.mxu0 %v5418
          %6227 = vmatpush1.bf16.msra.mxu0 %v5417
          %6228 = vmatprep.subr.bf16.mxu0 %v5478
          %6229 = vmatpush2.bf16.msra.mxu0 %v5477
          %6230 = vmatprep.subr.bf16.mxu0 %v5474
          %6231 = vmatpush2.bf16.msra.mxu0 %v5473
          %6232 = vmatprep.subr.bf16.mxu0 %v5470
          %6233 = vmatpush2.bf16.msra.mxu0 %v5469
          %6234 = vmatprep.subr.bf16.mxu0 %v5466
          %6235 = vmatpush2.bf16.msra.mxu0 %v5465
          %6236 = vmatprep.subr.bf16.mxu0 %v5462
          %6237 = vmatpush2.bf16.msra.mxu0 %v5461
          %6238 = vmatprep.subr.bf16.mxu0 %v5458
          %6239 = vmatpush2.bf16.msra.mxu0 %v5457
          %6240 = vmatprep.subr.bf16.mxu0 %v5454
          %6241 = vmatpush2.bf16.msra.mxu0 %v5453
          %6242 = vmatprep.subr.bf16.mxu0 %v5450
          %6243 = vmatpush2.bf16.msra.mxu0 %v5449
          %6244 = vmatprep.mubr.bf16.mxu0 %v3939
          %6245 = vmatmul.mubr.bf16.gmra.mxu0 %v3938
          %v6246 = vpop.f32.mrf.mxu0
          %v6247 = vadd.f32 %v6206, %v6246
          %v6248 = vpop.f32.mrf.mxu0
          %v6249 = vadd.f32 %v6208, %v6248
          %v6250 = vpop.f32.mrf.mxu0
          %v6251 = vpop.f32.mrf.mxu0
          %6252 = vdwg.mxu0
          %6253 = vmatprep.subr.bf16.mxu0 %v5510
          %6254 = vmatpush1.bf16.msra.mxu0 %v5509
          %6255 = vmatprep.subr.bf16.mxu0 %v5506
          %6256 = vmatpush1.bf16.msra.mxu0 %v5505
          %6257 = vmatprep.subr.bf16.mxu0 %v5502
          %6258 = vmatpush1.bf16.msra.mxu0 %v5501
          %6259 = vmatprep.subr.bf16.mxu0 %v5498
          %6260 = vmatpush1.bf16.msra.mxu0 %v5497
          %6261 = vmatprep.subr.bf16.mxu0 %v5494
          %6262 = vmatpush1.bf16.msra.mxu0 %v5493
          %6263 = vmatprep.subr.bf16.mxu0 %v5490
          %6264 = vmatpush1.bf16.msra.mxu0 %v5489
          %6265 = vmatprep.subr.bf16.mxu0 %v5486
          %6266 = vmatpush1.bf16.msra.mxu0 %v5485
          %6267 = vmatprep.subr.bf16.mxu0 %v5482
          %6268 = vmatpush1.bf16.msra.mxu0 %v5481
          %6269 = vmatprep.subr.bf16.mxu0 %v5542
          %6270 = vmatpush2.bf16.msra.mxu0 %v5541
          %6271 = vmatprep.subr.bf16.mxu0 %v5538
          %6272 = vmatpush2.bf16.msra.mxu0 %v5537
          %6273 = vmatprep.subr.bf16.mxu0 %v5534
          %6274 = vmatpush2.bf16.msra.mxu0 %v5533
          %6275 = vmatprep.subr.bf16.mxu0 %v5530
          %6276 = vmatpush2.bf16.msra.mxu0 %v5529
          %6277 = vmatprep.subr.bf16.mxu0 %v5526
          %6278 = vmatpush2.bf16.msra.mxu0 %v5525
          %6279 = vmatprep.subr.bf16.mxu0 %v5522
          %6280 = vmatpush2.bf16.msra.mxu0 %v5521
          %6281 = vmatprep.subr.bf16.mxu0 %v5518
          %6282 = vmatpush2.bf16.msra.mxu0 %v5517
          %6283 = vmatprep.subr.bf16.mxu0 %v5514
          %6284 = vmatpush2.bf16.msra.mxu0 %v5513
          %6285 = vmatprep.mubr.bf16.mxu0 %v3941
          %6286 = vmatmul.mubr.bf16.gmra.mxu0 %v3940
          %v6287 = vpop.f32.mrf.mxu0
          %v6288 = vadd.f32 %v6247, %v6287
          %v6289 = vpop.f32.mrf.mxu0
          %v6290 = vadd.f32 %v6249, %v6289
          %v6291 = vpop.f32.mrf.mxu0
          %v6292 = vpop.f32.mrf.mxu0
          %6293 = vdwg.mxu0
          %v6294 = vmax.f32 %v6083, 0.0
          %v6295 = vmax.f32 %v6085, 0.0
          %v6296 = vmax.f32 %v6288, 0.0
          %v6297 = vmax.f32 %v6290, 0.0
          %v6298 = vpack.c.bf16 %v6294, %v6294
          %v6299 = vpack.c.bf16 %v6295, %v6295
          %v6300 = vpack.c.bf16 %v6296, %v6296
          %v6301 = vpack.c.bf16 %v6297, %v6297
          %v6302 = vld [vmem:[%s7] sm:$0xf]
          %v6303 = vld [vmem:[%s7 + $0x4] sm:$0xf]
          %v6304 = vld [vmem:[%s7 + $0x8] sm:$0xf]
          %v6305 = vld [vmem:[%s7 + $0xc] sm:$0xf]
          %v6306 = vld [vmem:[%s7 + $0x10] sm:$0xf]
          %v6307 = vld [vmem:[%s7 + $0x14] sm:$0xf]
          %v6308 = vld [vmem:[%s7 + $0x18] sm:$0xf]
          %v6309 = vld [vmem:[%s7 + $0x1c] sm:$0xf]
          %v6310 = vld [vmem:[%s7 + $0x20] sm:$0xf]
          %v6311 = vld [vmem:[%s7 + $0x24] sm:$0xf]
          %v6312 = vld [vmem:[%s7 + $0x28] sm:$0xf]
          %v6313 = vld [vmem:[%s7 + $0x2c] sm:$0xf]
          %v6314 = vld [vmem:[%s7 + $0x30] sm:$0xf]
          %v6315 = vld [vmem:[%s7 + $0x34] sm:$0xf]
          %v6316 = vld [vmem:[%s7 + $0x38] sm:$0xf]
          %v6317 = vld [vmem:[%s7 + $0x3c] sm:$0xf]
          %v6318 = vld [vmem:[%s7 + $0x40] sm:$0xf]
          %v6319 = vld [vmem:[%s7 + $0x44] sm:$0xf]
          %v6320 = vld [vmem:[%s7 + $0x48] sm:$0xf]
          %v6321 = vld [vmem:[%s7 + $0x4c] sm:$0xf]
          %v6322 = vld [vmem:[%s7 + $0x50] sm:$0xf]
          %v6323 = vld [vmem:[%s7 + $0x54] sm:$0xf]
          %v6324 = vld [vmem:[%s7 + $0x58] sm:$0xf]
          %v6325 = vld [vmem:[%s7 + $0x5c] sm:$0xf]
          %v6326 = vld [vmem:[%s7 + $0x60] sm:$0xf]
          %v6327 = vld [vmem:[%s7 + $0x64] sm:$0xf]
          %v6328 = vld [vmem:[%s7 + $0x68] sm:$0xf]
          %v6329 = vld [vmem:[%s7 + $0x6c] sm:$0xf]
          %v6330 = vld [vmem:[%s7 + $0x70] sm:$0xf]
          %v6331 = vld [vmem:[%s7 + $0x74] sm:$0xf]
          %v6332 = vld [vmem:[%s7 + $0x78] sm:$0xf]
          %v6333 = vld [vmem:[%s7 + $0x7c] sm:$0xf]
          %v6334 = vld [vmem:[%s7 + $0x80] sm:$0xf]
          %v6335 = vld [vmem:[%s7 + $0x84] sm:$0xf]
          %v6336 = vld [vmem:[%s7 + $0x88] sm:$0xf]
          %v6337 = vld [vmem:[%s7 + $0x8c] sm:$0xf]
          %v6338 = vld [vmem:[%s7 + $0x90] sm:$0xf]
          %v6339 = vld [vmem:[%s7 + $0x94] sm:$0xf]
          %v6340 = vld [vmem:[%s7 + $0x98] sm:$0xf]
          %v6341 = vld [vmem:[%s7 + $0x9c] sm:$0xf]
          %v6342 = vld [vmem:[%s7 + $0xa0] sm:$0xf]
          %v6343 = vld [vmem:[%s7 + $0xa4] sm:$0xf]
          %v6344 = vld [vmem:[%s7 + $0xa8] sm:$0xf]
          %v6345 = vld [vmem:[%s7 + $0xac] sm:$0xf]
          %v6346 = vld [vmem:[%s7 + $0xb0] sm:$0xf]
          %v6347 = vld [vmem:[%s7 + $0xb4] sm:$0xf]
          %v6348 = vld [vmem:[%s7 + $0xb8] sm:$0xf]
          %v6349 = vld [vmem:[%s7 + $0xbc] sm:$0xf]
          %v6350 = vld [vmem:[%s7 + $0xc0] sm:$0xf]
          %v6351 = vld [vmem:[%s7 + $0xc4] sm:$0xf]
          %v6352 = vld [vmem:[%s7 + $0xc8] sm:$0xf]
          %v6353 = vld [vmem:[%s7 + $0xcc] sm:$0xf]
          %v6354 = vld [vmem:[%s7 + $0xd0] sm:$0xf]
          %v6355 = vld [vmem:[%s7 + $0xd4] sm:$0xf]
          %v6356 = vld [vmem:[%s7 + $0xd8] sm:$0xf]
          %v6357 = vld [vmem:[%s7 + $0xdc] sm:$0xf]
          %v6358 = vld [vmem:[%s7 + $0xe0] sm:$0xf]
          %v6359 = vld [vmem:[%s7 + $0xe4] sm:$0xf]
          %v6360 = vld [vmem:[%s7 + $0xe8] sm:$0xf]
          %v6361 = vld [vmem:[%s7 + $0xec] sm:$0xf]
          %v6362 = vld [vmem:[%s7 + $0xf0] sm:$0xf]
          %v6363 = vld [vmem:[%s7 + $0xf4] sm:$0xf]
          %v6364 = vld [vmem:[%s7 + $0xf8] sm:$0xf]
          %v6365 = vld [vmem:[%s7 + $0xfc] sm:$0xf]
          %v6366 = vld [vmem:[%s8] sm:$0x1]
          %v6431 = vunpack.c.l.b16 %v6302
          %v6432 = vunpack.c.l.b16 %v6303
          %v6433 = vunpack.c.l.b16 %v6304
          %v6434 = vunpack.c.l.b16 %v6305
          %v6435 = vunpack.c.l.b16 %v6306
          %v6436 = vunpack.c.l.b16 %v6307
          %v6437 = vunpack.c.l.b16 %v6308
          %v6438 = vunpack.c.l.b16 %v6309
          %v6439 = vunpack.c.l.b16 %v6310
          %v6440 = vunpack.c.l.b16 %v6311
          %v6441 = vunpack.c.l.b16 %v6312
          %v6442 = vunpack.c.l.b16 %v6313
          %v6443 = vunpack.c.l.b16 %v6314
          %v6444 = vunpack.c.l.b16 %v6315
          %v6445 = vunpack.c.l.b16 %v6316
          %v6446 = vunpack.c.l.b16 %v6317
          %v6447 = vunpack.c.l.b16 %v6318
          %v6448 = vunpack.c.l.b16 %v6319
          %v6449 = vunpack.c.l.b16 %v6320
          %v6450 = vunpack.c.l.b16 %v6321
          %v6451 = vunpack.c.l.b16 %v6322
          %v6452 = vunpack.c.l.b16 %v6323
          %v6453 = vunpack.c.l.b16 %v6324
          %v6454 = vunpack.c.l.b16 %v6325
          %v6455 = vunpack.c.l.b16 %v6326
          %v6456 = vunpack.c.l.b16 %v6327
          %v6457 = vunpack.c.l.b16 %v6328
          %v6458 = vunpack.c.l.b16 %v6329
          %v6459 = vunpack.c.l.b16 %v6330
          %v6460 = vunpack.c.l.b16 %v6331
          %v6461 = vunpack.c.l.b16 %v6332
          %v6462 = vunpack.c.l.b16 %v6333
          %v6463 = vunpack.c.l.b16 %v6334
          %v6464 = vunpack.c.l.b16 %v6335
          %v6465 = vunpack.c.l.b16 %v6336
          %v6466 = vunpack.c.l.b16 %v6337
          %v6467 = vunpack.c.l.b16 %v6338
          %v6468 = vunpack.c.l.b16 %v6339
          %v6469 = vunpack.c.l.b16 %v6340
          %v6470 = vunpack.c.l.b16 %v6341
          %v6471 = vunpack.c.l.b16 %v6342
          %v6472 = vunpack.c.l.b16 %v6343
          %v6473 = vunpack.c.l.b16 %v6344
          %v6474 = vunpack.c.l.b16 %v6345
          %v6475 = vunpack.c.l.b16 %v6346
          %v6476 = vunpack.c.l.b16 %v6347
          %v6477 = vunpack.c.l.b16 %v6348
          %v6478 = vunpack.c.l.b16 %v6349
          %v6479 = vunpack.c.l.b16 %v6350
          %v6480 = vunpack.c.l.b16 %v6351
          %v6481 = vunpack.c.l.b16 %v6352
          %v6482 = vunpack.c.l.b16 %v6353
          %v6483 = vunpack.c.l.b16 %v6354
          %v6484 = vunpack.c.l.b16 %v6355
          %v6485 = vunpack.c.l.b16 %v6356
          %v6486 = vunpack.c.l.b16 %v6357
          %v6487 = vunpack.c.l.b16 %v6358
          %v6488 = vunpack.c.l.b16 %v6359
          %v6489 = vunpack.c.l.b16 %v6360
          %v6490 = vunpack.c.l.b16 %v6361
          %v6491 = vunpack.c.l.b16 %v6362
          %v6492 = vunpack.c.l.b16 %v6363
          %v6493 = vunpack.c.l.b16 %v6364
          %v6494 = vunpack.c.l.b16 %v6365
          %v6495 = vpack.c.b16 %v6432, %v6431
          %v6496 = vpack.c.b16 %v6434, %v6433
          %v6497 = vpack.c.b16 %v6436, %v6435
          %v6498 = vpack.c.b16 %v6438, %v6437
          %v6499 = vpack.c.b16 %v6440, %v6439
          %v6500 = vpack.c.b16 %v6442, %v6441
          %v6501 = vpack.c.b16 %v6444, %v6443
          %v6502 = vpack.c.b16 %v6446, %v6445
          %v6503 = vpack.c.b16 %v6448, %v6447
          %v6504 = vpack.c.b16 %v6450, %v6449
          %v6505 = vpack.c.b16 %v6452, %v6451
          %v6506 = vpack.c.b16 %v6454, %v6453
          %v6507 = vpack.c.b16 %v6456, %v6455
          %v6508 = vpack.c.b16 %v6458, %v6457
          %v6509 = vpack.c.b16 %v6460, %v6459
          %v6510 = vpack.c.b16 %v6462, %v6461
          %v6511 = vpack.c.b16 %v6464, %v6463
          %v6512 = vpack.c.b16 %v6466, %v6465
          %v6513 = vpack.c.b16 %v6468, %v6467
          %v6514 = vpack.c.b16 %v6470, %v6469
          %v6515 = vpack.c.b16 %v6472, %v6471
          %v6516 = vpack.c.b16 %v6474, %v6473
          %v6517 = vpack.c.b16 %v6476, %v6475
          %v6518 = vpack.c.b16 %v6478, %v6477
          %v6519 = vpack.c.b16 %v6480, %v6479
          %v6520 = vpack.c.b16 %v6482, %v6481
          %v6521 = vpack.c.b16 %v6484, %v6483
          %v6522 = vpack.c.b16 %v6486, %v6485
          %v6523 = vpack.c.b16 %v6488, %v6487
          %v6524 = vpack.c.b16 %v6490, %v6489
          %v6525 = vpack.c.b16 %v6492, %v6491
          %v6526 = vpack.c.b16 %v6494, %v6493
          %6559 = vmatprep.subr.bf16.mxu0 0
          %6560 = vmatpush1.bf16.msra.mxu0 %v6502
          %6561 = vmatprep.subr.bf16.mxu0 0
          %6562 = vmatpush1.bf16.msra.mxu0 %v6501
          %6563 = vmatprep.subr.bf16.mxu0 0
          %6564 = vmatpush1.bf16.msra.mxu0 %v6500
          %6565 = vmatprep.subr.bf16.mxu0 0
          %6566 = vmatpush1.bf16.msra.mxu0 %v6499
          %6567 = vmatprep.subr.bf16.mxu0 0
          %6568 = vmatpush1.bf16.msra.mxu0 %v6498
          %6569 = vmatprep.subr.bf16.mxu0 0
          %6570 = vmatpush1.bf16.msra.mxu0 %v6497
          %6571 = vmatprep.subr.bf16.mxu0 0
          %6572 = vmatpush1.bf16.msra.mxu0 %v6496
          %6573 = vmatprep.subr.bf16.mxu0 0
          %6574 = vmatpush1.bf16.msra.mxu0 %v6495
          %6575 = vmatprep.subr.bf16.mxu0 0
          %6576 = vmatpush2.bf16.msra.mxu0 %v6510
          %6577 = vmatprep.subr.bf16.mxu0 0
          %6578 = vmatpush2.bf16.msra.mxu0 %v6509
          %6579 = vmatprep.subr.bf16.mxu0 0
          %6580 = vmatpush2.bf16.msra.mxu0 %v6508
          %6581 = vmatprep.subr.bf16.mxu0 0
          %6582 = vmatpush2.bf16.msra.mxu0 %v6507
          %6583 = vmatprep.subr.bf16.mxu0 0
          %6584 = vmatpush2.bf16.msra.mxu0 %v6506
          %6585 = vmatprep.subr.bf16.mxu0 0
          %6586 = vmatpush2.bf16.msra.mxu0 %v6505
          %6587 = vmatprep.subr.bf16.mxu0 0
          %6588 = vmatpush2.bf16.msra.mxu0 %v6504
          %6589 = vmatprep.subr.bf16.mxu0 0
          %6590 = vmatpush2.bf16.msra.mxu0 %v6503
          %6591 = vmatprep.mubr.bf16.mxu0 %v6299
          %6592 = vmatmul.mubr.bf16.gmra.mxu0 %v6298
          %v6593 = vpop.f32.mrf.mxu0
          %v6594 = vadd.f32 %v6366, %v6593
          %v6595 = vpop.f32.mrf.mxu0
          %v6596 = vpop.f32.mrf.mxu0
          %v6597 = vpop.f32.mrf.mxu0
          %6598 = vdwg.mxu0
          %6599 = vmatprep.subr.bf16.mxu0 0
          %6600 = vmatpush1.bf16.msra.mxu0 %v6518
          %6601 = vmatprep.subr.bf16.mxu0 0
          %6602 = vmatpush1.bf16.msra.mxu0 %v6517
          %6603 = vmatprep.subr.bf16.mxu0 0
          %6604 = vmatpush1.bf16.msra.mxu0 %v6516
          %6605 = vmatprep.subr.bf16.mxu0 0
          %6606 = vmatpush1.bf16.msra.mxu0 %v6515
          %6607 = vmatprep.subr.bf16.mxu0 0
          %6608 = vmatpush1.bf16.msra.mxu0 %v6514
          %6609 = vmatprep.subr.bf16.mxu0 0
          %6610 = vmatpush1.bf16.msra.mxu0 %v6513
          %6611 = vmatprep.subr.bf16.mxu0 0
          %6612 = vmatpush1.bf16.msra.mxu0 %v6512
          %6613 = vmatprep.subr.bf16.mxu0 0
          %6614 = vmatpush1.bf16.msra.mxu0 %v6511
          %6615 = vmatprep.subr.bf16.mxu0 0
          %6616 = vmatpush2.bf16.msra.mxu0 %v6526
          %6617 = vmatprep.subr.bf16.mxu0 0
          %6618 = vmatpush2.bf16.msra.mxu0 %v6525
          %6619 = vmatprep.subr.bf16.mxu0 0
          %6620 = vmatpush2.bf16.msra.mxu0 %v6524
          %6621 = vmatprep.subr.bf16.mxu0 0
          %6622 = vmatpush2.bf16.msra.mxu0 %v6523
          %6623 = vmatprep.subr.bf16.mxu0 0
          %6624 = vmatpush2.bf16.msra.mxu0 %v6522
          %6625 = vmatprep.subr.bf16.mxu0 0
          %6626 = vmatpush2.bf16.msra.mxu0 %v6521
          %6627 = vmatprep.subr.bf16.mxu0 0
          %6628 = vmatpush2.bf16.msra.mxu0 %v6520
          %6629 = vmatprep.subr.bf16.mxu0 0
          %6630 = vmatpush2.bf16.msra.mxu0 %v6519
          %6631 = vmatprep.mubr.bf16.mxu0 %v6301
          %6632 = vmatmul.mubr.bf16.gmra.mxu0 %v6300
          %v6633 = vpop.f32.mrf.mxu0
          %v6634 = vadd.f32 %v6594, %v6633
          %v6635 = vpop.f32.mrf.mxu0
          %v6636 = vpop.f32.mrf.mxu0
          %v6637 = vpop.f32.mrf.mxu0
          %6638 = vdwg.mxu0
          %6639 = vst [vmem:[%s347] sm:$0x1] %v6634
        $region64: #{modified_efficient_b0_forward.1} parent=55 // pred_fallthru
          _
        %s6640 = sand.u32 %s239, 1
        %s6641 = scalar_lea.sflag [#allocation4], %s6640
        %s6642 = sand.u32 %s239, 1
        %s6643 = scalar_lea.vmem [#allocation3], %s6642
        // Predicated region
        $region65: #{modified_efficient_b0_forward.1} parent=55 // pred_check
          %p6644 = pneg %p249
        $region66: #{modified_efficient_b0_forward.1} parent=55 // pred_check_branch
          %6646 = sbr.rel (%p6644) target = $region68
        $region67: #{modified_efficient_b0_forward.1} parent=55 // pred_region
          %s6648 = ssub.s32 16, 16
          %6649 = vsyncadd %s6641, %s6648
          %s6650 = smul.addr %s27, 16
          %s6651 = scalar_lea.hbm %s9, %s6650
          %s6653 = sshll.u32 %s6643, 4
          %s6654 = int_to_ptr.vmem [resolvable:$true] %s6653
          %6656 = dma.vmem_to_hbm [thread:$0]  %s6654, 16, %s6651, %s6641
        $region68: #{modified_efficient_b0_forward.1} parent=55 // pred_fallthru
          _
      $region56: #{modified_efficient_b0_forward.1} parent=5 // pred_fallthru
        _
      %p6657 = scmp.le.s32.totalorder 2, %s18
      // Predicated region
      $region69: #{modified_efficient_b0_forward.1} parent=5 // pred_check
        %p6658 = pneg %p6657
      $region70: #{modified_efficient_b0_forward.1} parent=5 // pred_check_branch
        %6660 = sbr.rel (%p6658) target = $region72
      $region71: #{modified_efficient_b0_forward.1} parent=5 // pred_region
        %s6661 = ssub.s32 %s18, 2
        // Predicated region
        $region73: #{modified_efficient_b0_forward.1} parent=71 // pred_check
          %p6662 = pneg %p255
        $region74: #{modified_efficient_b0_forward.1} parent=71 // pred_check_branch
          %6664 = sbr.rel (%p6662) target = $region76
        $region75: #{modified_efficient_b0_forward.1} parent=71 // pred_region
          %s6665 = sand.u32 %s240, 1
          %s6666 = scalar_lea.sflag [#allocation4], %s6665
          %s6667 = sand.u32 %s240, 1
          %s6668 = scalar_lea.vmem [#allocation3], %s6667
          %6669 = dma.done %s6666, 16
        $region76: #{modified_efficient_b0_forward.1} parent=71 // pred_fallthru
          _
      $region72: #{modified_efficient_b0_forward.1} parent=5 // pred_fallthru
        _
    $region6: #{modified_efficient_b0_forward.1} parent=1 // loop_footer
      %s22 = sadd.s32 1, %s18
    $region7: #{modified_efficient_b0_forward.1} parent=1 // loop_footer_branch
      %17 = sbr.rel target = $region3
    $region8: #{modified_efficient_b0_forward.1} parent=1 // loop_exit
      _
    %6670 = vsyncpa [#allocation4], 1
    %s6671 = scalar_lea.sflag [#allocation4], 1
    %6672 = vsyncpa %s6671, 1

</llo_original>
